<compile_context>
chip_gen: v6e
topology: v6e:2x2x1
jax: 0.10.0
libtpu: 0.0.40
codegen_flags: <defaults>
</compile_context>

<pallas_src>
import jax
import jax.numpy as jnp
from jax import lax
from jax.experimental import pallas as pl
from jax.experimental.pallas import tpu as pltpu


# ----------------------------------------------------------------------------
# Fused Pallas kernel: n_layers x LSTM + h2O linear, single invocation.
# ----------------------------------------------------------------------------
def _make_fused_lstm_kernel(n_layers, B, SL, H):
    """Builds the fused kernel for static (n_layers, B, SL, H)."""

    def kernel(*refs):
        x_ref = refs[0]                                   # (B*SL, AS)
        layer_refs = [
            (refs[1 + 3 * l], refs[2 + 3 * l], refs[3 + 3 * l])
            for l in range(n_layers)
        ]                                                 # (W_ih^T, W_hh^T, bias)
        wo_ref = refs[1 + 3 * n_layers]                   # (H, AS)
        bo_ref = refs[2 + 3 * n_layers]                   # (1, AS)
        out_ref = refs[3 + 3 * n_layers]                  # (B*SL, AS)
        gx_scr = refs[4 + 3 * n_layers]                   # (B*SL, 4H) scratch
        hseq_scr = refs[5 + 3 * n_layers]                 # (B*SL, H)  scratch

        x_in = x_ref[...]                                 # layer input, batch-major rows

        for wih_ref, whh_ref, b_ref in layer_refs:
            # ---- hoisted input projection: ONE batched matmul per layer,
            #      off the sequential critical path (bias folded in here). ----
            gx_scr[...] = (
                jnp.dot(x_in, wih_ref[...], preferred_element_type=jnp.float32)
                + b_ref[...]
            )                                             # (B*SL, 4H)

            whh = whh_ref[...]                            # (H, 4H) resident across steps

            # ---- sequential recurrence: only h_prev @ W_hh^T per step. -----
            def step(t, carry, whh=whh):
                h_prev, c_prev = carry                    # (B, H) each, vreg-carried
                # gather gates_x for timestep t of every batch element
                gx_t = jnp.concatenate(
                    [gx_scr[pl.ds(b * SL + t, 1)] for b in range(B)], axis=0
                )                                         # (B, 4H)
                gates = gx_t + jnp.dot(
                    h_prev, whh, preferred_element_type=jnp.float32
                )
                i_g = jax.nn.sigmoid(gates[:, 0 * H:1 * H])
                f_g = jax.nn.sigmoid(gates[:, 1 * H:2 * H])
                g_g = jnp.tanh(gates[:, 2 * H:3 * H])
                o_g = jax.nn.sigmoid(gates[:, 3 * H:4 * H])
                c_new = f_g * c_prev + i_g * g_g
                h_new = o_g * jnp.tanh(c_new)
                # stage h_t in VMEM scratch (consumed in bulk after the loop)
                for b in range(B):
                    hseq_scr[pl.ds(b * SL + t, 1)] = h_new[b:b + 1]
                return (h_new, c_new)

            zeros = jnp.zeros((B, H), jnp.float32)        # torch init_hidden(): zeros
            lax.fori_loop(0, SL, step, (zeros, zeros), unroll=True)

            x_in = hseq_scr[...]                          # (B*SL, H) -> next layer input

        # ---- fused h2O projection; single bulk store of the final logits. --
        out_ref[...] = (
            jnp.dot(x_in, wo_ref[...], preferred_element_type=jnp.float32)
            + bo_ref[...]
        )

    return kernel


# ----------------------------------------------------------------------------
# Wrapper
# ----------------------------------------------------------------------------
@jax.jit
def lstm_forward(params, sequence):
    """sequence: (B, SL, AS) one-hot -> (B*SL, AS), matching the torch module."""
    B, SL, AS = sequence.shape
    layers = params["layers"]
    n_layers = len(layers)
    H = layers[0]["w_hh_t"].shape[0]

    # contiguous reshape only (no transpose / no copy); rows are batch-major
    # (b*SL + t), exactly the ordering of torch's out.view(-1, alphabet_size).
    x2d = sequence.astype(jnp.float32).reshape(B * SL, AS)

    flat_weights = []
    for layer in layers:
        flat_weights += [layer["w_ih_t"], layer["w_hh_t"], layer["bias"]]
    flat_weights += [params["w_o_t"], params["b_o"]]

    kernel = _make_fused_lstm_kernel(n_layers, B, SL, H)
    return pl.pallas_call(
        kernel,
        out_shape=jax.ShapeDtypeStruct((B * SL, AS), jnp.float32),
        # whole arrays resident in VMEM (no grid); scratch for gates_x and the
        # per-layer hidden sequence.
        scratch_shapes=[
            pltpu.VMEM((B * SL, 4 * H), jnp.float32),
            pltpu.VMEM((B * SL, H), jnp.float32),
        ],
    )(x2d, *flat_weights)


def init_params(key, alphabet_size, hidden_dim, n_layers):
    """Deterministic init mirroring torch's uniform(-1/sqrt(H), 1/sqrt(H))."""
    k = 1.0 / jnp.sqrt(jnp.float32(hidden_dim))
    layers = []
    for l in range(n_layers):
        d_in = alphabet_size if l == 0 else hidden_dim
        key, k1, k2, k3, k4 = jax.random.split(key, 5)
        w_ih = jax.random.uniform(k1, (4 * hidden_dim, d_in), jnp.float32, -k, k)
        w_hh = jax.random.uniform(k2, (4 * hidden_dim, hidden_dim), jnp.float32, -k, k)
        b_ih = jax.random.uniform(k3, (4 * hidden_dim,), jnp.float32, -k, k)
        b_hh = jax.random.uniform(k4, (4 * hidden_dim,), jnp.float32, -k, k)
        layers.append(
            dict(
                w_ih_t=w_ih.T,                                   # (D_in, 4H)
                w_hh_t=w_hh.T,                                   # (H, 4H)
                bias=(b_ih + b_hh).reshape(1, 4 * hidden_dim),   # (1, 4H)
            )
        )
    key, k1, k2 = jax.random.split(key, 3)
    w_o = jax.random.uniform(k1, (alphabet_size, hidden_dim), jnp.float32, -k, k)
    b_o = jax.random.uniform(k2, (alphabet_size,), jnp.float32, -k, k)
    return dict(layers=layers, w_o_t=w_o.T, b_o=b_o.reshape(1, alphabet_size))


# Pure-JAX reference (lax.scan) for a correctness sanity check.
def lstm_forward_ref(params, sequence):
    B, SL, AS = sequence.shape
    x = jnp.transpose(sequence.astype(jnp.float32), (1, 0, 2))   # time-major
    for layer in params["layers"]:
        H = layer["w_hh_t"].shape[0]

        def step(carry, x_t, layer=layer, H=H):
            h, c = carry
            gates = x_t @ layer["w_ih_t"] + h @ layer["w_hh_t"] + layer["bias"]
            i = jax.nn.sigmoid(gates[:, 0 * H:1 * H])
            f = jax.nn.sigmoid(gates[:, 1 * H:2 * H])
            g = jnp.tanh(gates[:, 2 * H:3 * H])
            o = jax.nn.sigmoid(gates[:, 3 * H:4 * H])
            c = f * c + i * g
            h = o * jnp.tanh(c)
            return (h, c), h

        init = (jnp.zeros((B, H), jnp.float32), jnp.zeros((B, H), jnp.float32))
        _, x = lax.scan(step, init, x)
    H = x.shape[-1]
    out = jnp.transpose(x, (1, 0, 2)).reshape(B * SL, H)
    return out @ params["w_o_t"] + params["b_o"]


if __name__ == "__main__":
    # hyperparameters (the torch module's `params` dict)
    B, SL, AS, H, NL = 2, 8, 16, 32, 2   # batch, seq, alphabet_size, nhid, nlayers

    key = jax.random.PRNGKey(0)
    key, pkey, xkey = jax.random.split(key, 3)
    params = init_params(pkey, AS, H, NL)

    # one-hot input sequence of shape (B, SL, AS)
    idx = jax.random.randint(xkey, (B, SL), 0, AS)
    x = jax.nn.one_hot(idx, AS, dtype=jnp.float32)

    out = lstm_forward(params, x)
    out = jax.block_until_ready(out)
    assert out.shape == (B * SL, AS), out.shape

    ref = lstm_forward_ref(params, x)
    assert jnp.allclose(out, ref, atol=1e-4, rtol=1e-4), "mismatch vs reference"

    print("KERNEL_OK")
</pallas_src>

<mosaic_0001>
module attributes {stable_mosaic.version = 11 : i64} {
  func.func @kernel(%arg0: memref<16x16xf32, #tpu.memory_space<vmem>>, %arg1: memref<16x128xf32, #tpu.memory_space<vmem>>, %arg2: memref<32x128xf32, #tpu.memory_space<vmem>>, %arg3: memref<1x128xf32, #tpu.memory_space<vmem>>, %arg4: memref<32x128xf32, #tpu.memory_space<vmem>>, %arg5: memref<32x128xf32, #tpu.memory_space<vmem>>, %arg6: memref<1x128xf32, #tpu.memory_space<vmem>>, %arg7: memref<32x16xf32, #tpu.memory_space<vmem>>, %arg8: memref<1x16xf32, #tpu.memory_space<vmem>>, %arg9: memref<16x16xf32, #tpu.memory_space<vmem>>, %arg10: memref<16x128xf32, #tpu.memory_space<vmem>>, %arg11: memref<16x32xf32, #tpu.memory_space<vmem>>) attributes {dimension_semantics = [], scalar_prefetch = 0 : i64, scratch_operands = 2 : i64, tpu.core_type = #tpu.core_type<tc>} {
    %c0 = arith.constant 0 : index
    %c0_0 = arith.constant 0 : index
    %0 = vector.load %arg0[%c0, %c0_0] : memref<16x16xf32, #tpu.memory_space<vmem>>, vector<16x16xf32>
    %c0_1 = arith.constant 0 : index
    %c0_2 = arith.constant 0 : index
    %1 = vector.load %arg1[%c0_1, %c0_2] : memref<16x128xf32, #tpu.memory_space<vmem>>, vector<16x128xf32>
    %cst = arith.constant dense<0.000000e+00> : vector<16x128xf32>
    %2 = tpu.matmul %0, %1, %cst {dimension_numbers = #tpu.dot_dimension_numbers<[1], [0], [0], [1], [0, 0, 1, 1], [], []>} : vector<16x16xf32>, vector<16x128xf32>, vector<16x128xf32> -> vector<16x128xf32>
    %c0_3 = arith.constant 0 : index
    %c0_4 = arith.constant 0 : index
    %3 = vector.load %arg3[%c0_3, %c0_4] : memref<1x128xf32, #tpu.memory_space<vmem>>, vector<1x128xf32>
    %4 = vector.broadcast %3 : vector<1x128xf32> to vector<16x128xf32>
    %5 = arith.addf %2, %4 : vector<16x128xf32>
    %c0_5 = arith.constant 0 : index
    %c0_6 = arith.constant 0 : index
    %6 = vector.load %arg10[%c0_5, %c0_6] : memref<16x128xf32, #tpu.memory_space<vmem>>, vector<16x128xf32>
    tpu.vector_store %arg10[%c0_5, %c0_6], %5 {strides = array<i32>} : memref<16x128xf32, #tpu.memory_space<vmem>>, vector<16x128xf32>,
    %c0_7 = arith.constant 0 : index
    %c0_8 = arith.constant 0 : index
    %7 = vector.load %arg2[%c0_7, %c0_8] : memref<32x128xf32, #tpu.memory_space<vmem>>, vector<32x128xf32>
    %cst_9 = arith.constant 0.000000e+00 : f32
    %8 = vector.broadcast %cst_9 : f32 to vector<2x32xf32>
    %c0_i32 = arith.constant 0 : i32
    %c0_i32_10 = arith.constant 0 : i32
    %9 = arith.addi %c0_i32_10, %c0_i32 : i32
    %10 = arith.index_cast %9 : i32 to index
    %c0_11 = arith.constant 0 : index
    %11 = vector.load %arg10[%10, %c0_11] : memref<16x128xf32, #tpu.memory_space<vmem>>, vector<1x128xf32>
    %c8_i32 = arith.constant 8 : i32
    %12 = arith.addi %c8_i32, %c0_i32 : i32
    %13 = arith.index_cast %12 : i32 to index
    %c0_12 = arith.constant 0 : index
    %14 = vector.load %arg10[%13, %c0_12] : memref<16x128xf32, #tpu.memory_space<vmem>>, vector<1x128xf32>
    %15 = tpu.concatenate %11, %14 in 0 : vector<1x128xf32>, vector<1x128xf32> -> vector<2x128xf32>
    %cst_13 = arith.constant dense<0.000000e+00> : vector<2x128xf32>
    %16 = tpu.matmul %8, %7, %cst_13 {dimension_numbers = #tpu.dot_dimension_numbers<[1], [0], [0], [1], [0, 0, 1, 1], [], []>} : vector<2x32xf32>, vector<32x128xf32>, vector<2x128xf32> -> vector<2x128xf32>
    %17 = arith.addf %15, %16 : vector<2x128xf32>
    %18 = vector.extract_strided_slice %17 {offsets = [0, 0], sizes = [2, 32], strides = [1, 1]} : vector<2x128xf32> to vector<2x32xf32>
    %19 = arith.negf %18 : vector<2x32xf32>
    %20 = math.exp %19 : vector<2x32xf32>
    %cst_14 = arith.constant 1.000000e+00 : f32
    %21 = vector.broadcast %cst_14 : f32 to vector<2x32xf32>
    %22 = arith.addf %21, %20 : vector<2x32xf32>
    %23 = arith.divf %21, %22 : vector<2x32xf32>
    %24 = vector.extract_strided_slice %17 {offsets = [0, 32], sizes = [2, 32], strides = [1, 1]} : vector<2x128xf32> to vector<2x32xf32>
    %25 = arith.negf %24 : vector<2x32xf32>
    %26 = math.exp %25 : vector<2x32xf32>
    %cst_15 = arith.constant 1.000000e+00 : f32
    %27 = vector.broadcast %cst_15 : f32 to vector<2x32xf32>
    %28 = arith.addf %27, %26 : vector<2x32xf32>
    %29 = arith.divf %27, %28 : vector<2x32xf32>
    %30 = vector.extract_strided_slice %17 {offsets = [0, 64], sizes = [2, 32], strides = [1, 1]} : vector<2x128xf32> to vector<2x32xf32>
    %31 = math.tanh %30 : vector<2x32xf32>
    %32 = vector.extract_strided_slice %17 {offsets = [0, 96], sizes = [2, 32], strides = [1, 1]} : vector<2x128xf32> to vector<2x32xf32>
    %33 = arith.negf %32 : vector<2x32xf32>
    %34 = math.exp %33 : vector<2x32xf32>
    %cst_16 = arith.constant 1.000000e+00 : f32
    %35 = vector.broadcast %cst_16 : f32 to vector<2x32xf32>
    %36 = arith.addf %35, %34 : vector<2x32xf32>
    %37 = arith.divf %35, %36 : vector<2x32xf32>
    %38 = arith.mulf %29, %8 : vector<2x32xf32>
    %39 = arith.mulf %23, %31 : vector<2x32xf32>
    %40 = arith.addf %38, %39 : vector<2x32xf32>
    %41 = math.tanh %40 : vector<2x32xf32>
    %42 = arith.mulf %37, %41 : vector<2x32xf32>
    %43 = vector.extract_strided_slice %42 {offsets = [0, 0], sizes = [1, 32], strides = [1, 1]} : vector<2x32xf32> to vector<1x32xf32>
    %c0_i32_17 = arith.constant 0 : i32
    %44 = arith.addi %c0_i32_17, %c0_i32 : i32
    %45 = arith.index_cast %44 : i32 to index
    %c0_18 = arith.constant 0 : index
    %46 = vector.load %arg11[%45, %c0_18] : memref<16x32xf32, #tpu.memory_space<vmem>>, vector<1x32xf32>
    tpu.vector_store %arg11[%45, %c0_18], %43 {strides = array<i32>} : memref<16x32xf32, #tpu.memory_space<vmem>>, vector<1x32xf32>,
    %47 = vector.extract_strided_slice %42 {offsets = [1, 0], sizes = [1, 32], strides = [1, 1]} : vector<2x32xf32> to vector<1x32xf32>
    %c8_i32_19 = arith.constant 8 : i32
    %48 = arith.addi %c8_i32_19, %c0_i32 : i32
    %49 = arith.index_cast %48 : i32 to index
    %c0_20 = arith.constant 0 : index
    %50 = vector.load %arg11[%49, %c0_20] : memref<16x32xf32, #tpu.memory_space<vmem>>, vector<1x32xf32>
    tpu.vector_store %arg11[%49, %c0_20], %47 {strides = array<i32>} : memref<16x32xf32, #tpu.memory_space<vmem>>, vector<1x32xf32>,
    %c1_i32 = arith.constant 1 : i32
    %c0_i32_21 = arith.constant 0 : i32
    %51 = arith.addi %c0_i32_21, %c1_i32 : i32
    %52 = arith.index_cast %51 : i32 to index
    %c0_22 = arith.constant 0 : index
    %53 = vector.load %arg10[%52, %c0_22] : memref<16x128xf32, #tpu.memory_space<vmem>>, vector<1x128xf32>
    %c8_i32_23 = arith.constant 8 : i32
    %54 = arith.addi %c8_i32_23, %c1_i32 : i32
    %55 = arith.index_cast %54 : i32 to index
    %c0_24 = arith.constant 0 : index
    %56 = vector.load %arg10[%55, %c0_24] : memref<16x128xf32, #tpu.memory_space<vmem>>, vector<1x128xf32>
    %57 = tpu.concatenate %53, %56 in 0 : vector<1x128xf32>, vector<1x128xf32> -> vector<2x128xf32>
    %cst_25 = arith.constant dense<0.000000e+00> : vector<2x128xf32>
    %58 = tpu.matmul %42, %7, %cst_25 {dimension_numbers = #tpu.dot_dimension_numbers<[1], [0], [0], [1], [0, 0, 1, 1], [], []>} : vector<2x32xf32>, vector<32x128xf32>, vector<2x128xf32> -> vector<2x128xf32>
    %59 = arith.addf %57, %58 : vector<2x128xf32>
    %60 = vector.extract_strided_slice %59 {offsets = [0, 0], sizes = [2, 32], strides = [1, 1]} : vector<2x128xf32> to vector<2x32xf32>
    %61 = arith.negf %60 : vector<2x32xf32>
    %62 = math.exp %61 : vector<2x32xf32>
    %cst_26 = arith.constant 1.000000e+00 : f32
    %63 = vector.broadcast %cst_26 : f32 to vector<2x32xf32>
    %64 = arith.addf %63, %62 : vector<2x32xf32>
    %65 = arith.divf %63, %64 : vector<2x32xf32>
    %66 = vector.extract_strided_slice %59 {offsets = [0, 32], sizes = [2, 32], strides = [1, 1]} : vector<2x128xf32> to vector<2x32xf32>
    %67 = arith.negf %66 : vector<2x32xf32>
    %68 = math.exp %67 : vector<2x32xf32>
    %cst_27 = arith.constant 1.000000e+00 : f32
    %69 = vector.broadcast %cst_27 : f32 to vector<2x32xf32>
    %70 = arith.addf %69, %68 : vector<2x32xf32>
    %71 = arith.divf %69, %70 : vector<2x32xf32>
    %72 = vector.extract_strided_slice %59 {offsets = [0, 64], sizes = [2, 32], strides = [1, 1]} : vector<2x128xf32> to vector<2x32xf32>
    %73 = math.tanh %72 : vector<2x32xf32>
    %74 = vector.extract_strided_slice %59 {offsets = [0, 96], sizes = [2, 32], strides = [1, 1]} : vector<2x128xf32> to vector<2x32xf32>
    %75 = arith.negf %74 : vector<2x32xf32>
    %76 = math.exp %75 : vector<2x32xf32>
    %cst_28 = arith.constant 1.000000e+00 : f32
    %77 = vector.broadcast %cst_28 : f32 to vector<2x32xf32>
    %78 = arith.addf %77, %76 : vector<2x32xf32>
    %79 = arith.divf %77, %78 : vector<2x32xf32>
    %80 = arith.mulf %71, %40 : vector<2x32xf32>
    %81 = arith.mulf %65, %73 : vector<2x32xf32>
    %82 = arith.addf %80, %81 : vector<2x32xf32>
    %83 = math.tanh %82 : vector<2x32xf32>
    %84 = arith.mulf %79, %83 : vector<2x32xf32>
    %85 = vector.extract_strided_slice %84 {offsets = [0, 0], sizes = [1, 32], strides = [1, 1]} : vector<2x32xf32> to vector<1x32xf32>
    %c0_i32_29 = arith.constant 0 : i32
    %86 = arith.addi %c0_i32_29, %c1_i32 : i32
    %87 = arith.index_cast %86 : i32 to index
    %c0_30 = arith.constant 0 : index
    %88 = vector.load %arg11[%87, %c0_30] : memref<16x32xf32, #tpu.memory_space<vmem>>, vector<1x32xf32>
    tpu.vector_store %arg11[%87, %c0_30], %85 {strides = array<i32>} : memref<16x32xf32, #tpu.memory_space<vmem>>, vector<1x32xf32>,
    %89 = vector.extract_strided_slice %84 {offsets = [1, 0], sizes = [1, 32], strides = [1, 1]} : vector<2x32xf32> to vector<1x32xf32>
    %c8_i32_31 = arith.constant 8 : i32
    %90 = arith.addi %c8_i32_31, %c1_i32 : i32
    %91 = arith.index_cast %90 : i32 to index
    %c0_32 = arith.constant 0 : index
    %92 = vector.load %arg11[%91, %c0_32] : memref<16x32xf32, #tpu.memory_space<vmem>>, vector<1x32xf32>
    tpu.vector_store %arg11[%91, %c0_32], %89 {strides = array<i32>} : memref<16x32xf32, #tpu.memory_space<vmem>>, vector<1x32xf32>,
    %c2_i32 = arith.constant 2 : i32
    %c0_i32_33 = arith.constant 0 : i32
    %93 = arith.addi %c0_i32_33, %c2_i32 : i32
    %94 = arith.index_cast %93 : i32 to index
    %c0_34 = arith.constant 0 : index
    %95 = vector.load %arg10[%94, %c0_34] : memref<16x128xf32, #tpu.memory_space<vmem>>, vector<1x128xf32>
    %c8_i32_35 = arith.constant 8 : i32
    %96 = arith.addi %c8_i32_35, %c2_i32 : i32
    %97 = arith.index_cast %96 : i32 to index
    %c0_36 = arith.constant 0 : index
    %98 = vector.load %arg10[%97, %c0_36] : memref<16x128xf32, #tpu.memory_space<vmem>>, vector<1x128xf32>
    %99 = tpu.concatenate %95, %98 in 0 : vector<1x128xf32>, vector<1x128xf32> -> vector<2x128xf32>
    %cst_37 = arith.constant dense<0.000000e+00> : vector<2x128xf32>
    %100 = tpu.matmul %84, %7, %cst_37 {dimension_numbers = #tpu.dot_dimension_numbers<[1], [0], [0], [1], [0, 0, 1, 1], [], []>} : vector<2x32xf32>, vector<32x128xf32>, vector<2x128xf32> -> vector<2x128xf32>
    %101 = arith.addf %99, %100 : vector<2x128xf32>
    %102 = vector.extract_strided_slice %101 {offsets = [0, 0], sizes = [2, 32], strides = [1, 1]} : vector<2x128xf32> to vector<2x32xf32>
    %103 = arith.negf %102 : vector<2x32xf32>
    %104 = math.exp %103 : vector<2x32xf32>
    %cst_38 = arith.constant 1.000000e+00 : f32
    %105 = vector.broadcast %cst_38 : f32 to vector<2x32xf32>
    %106 = arith.addf %105, %104 : vector<2x32xf32>
    %107 = arith.divf %105, %106 : vector<2x32xf32>
    %108 = vector.extract_strided_slice %101 {offsets = [0, 32], sizes = [2, 32], strides = [1, 1]} : vector<2x128xf32> to vector<2x32xf32>
    %109 = arith.negf %108 : vector<2x32xf32>
    %110 = math.exp %109 : vector<2x32xf32>
    %cst_39 = arith.constant 1.000000e+00 : f32
    %111 = vector.broadcast %cst_39 : f32 to vector<2x32xf32>
    %112 = arith.addf %111, %110 : vector<2x32xf32>
    %113 = arith.divf %111, %112 : vector<2x32xf32>
    %114 = vector.extract_strided_slice %101 {offsets = [0, 64], sizes = [2, 32], strides = [1, 1]} : vector<2x128xf32> to vector<2x32xf32>
    %115 = math.tanh %114 : vector<2x32xf32>
    %116 = vector.extract_strided_slice %101 {offsets = [0, 96], sizes = [2, 32], strides = [1, 1]} : vector<2x128xf32> to vector<2x32xf32>
    %117 = arith.negf %116 : vector<2x32xf32>
    %118 = math.exp %117 : vector<2x32xf32>
    %cst_40 = arith.constant 1.000000e+00 : f32
    %119 = vector.broadcast %cst_40 : f32 to vector<2x32xf32>
    %120 = arith.addf %119, %118 : vector<2x32xf32>
    %121 = arith.divf %119, %120 : vector<2x32xf32>
    %122 = arith.mulf %113, %82 : vector<2x32xf32>
    %123 = arith.mulf %107, %115 : vector<2x32xf32>
    %124 = arith.addf %122, %123 : vector<2x32xf32>
    %125 = math.tanh %124 : vector<2x32xf32>
    %126 = arith.mulf %121, %125 : vector<2x32xf32>
    %127 = vector.extract_strided_slice %126 {offsets = [0, 0], sizes = [1, 32], strides = [1, 1]} : vector<2x32xf32> to vector<1x32xf32>
    %c0_i32_41 = arith.constant 0 : i32
    %128 = arith.addi %c0_i32_41, %c2_i32 : i32
    %129 = arith.index_cast %128 : i32 to index
    %c0_42 = arith.constant 0 : index
    %130 = vector.load %arg11[%129, %c0_42] : memref<16x32xf32, #tpu.memory_space<vmem>>, vector<1x32xf32>
    tpu.vector_store %arg11[%129, %c0_42], %127 {strides = array<i32>} : memref<16x32xf32, #tpu.memory_space<vmem>>, vector<1x32xf32>,
    %131 = vector.extract_strided_slice %126 {offsets = [1, 0], sizes = [1, 32], strides = [1, 1]} : vector<2x32xf32> to vector<1x32xf32>
    %c8_i32_43 = arith.constant 8 : i32
    %132 = arith.addi %c8_i32_43, %c2_i32 : i32
    %133 = arith.index_cast %132 : i32 to index
    %c0_44 = arith.constant 0 : index
    %134 = vector.load %arg11[%133, %c0_44] : memref<16x32xf32, #tpu.memory_space<vmem>>, vector<1x32xf32>
    tpu.vector_store %arg11[%133, %c0_44], %131 {strides = array<i32>} : memref<16x32xf32, #tpu.memory_space<vmem>>, vector<1x32xf32>,
    %c3_i32 = arith.constant 3 : i32
    %c0_i32_45 = arith.constant 0 : i32
    %135 = arith.addi %c0_i32_45, %c3_i32 : i32
    %136 = arith.index_cast %135 : i32 to index
    %c0_46 = arith.constant 0 : index
    %137 = vector.load %arg10[%136, %c0_46] : memref<16x128xf32, #tpu.memory_space<vmem>>, vector<1x128xf32>
    %c8_i32_47 = arith.constant 8 : i32
    %138 = arith.addi %c8_i32_47, %c3_i32 : i32
    %139 = arith.index_cast %138 : i32 to index
    %c0_48 = arith.constant 0 : index
    %140 = vector.load %arg10[%139, %c0_48] : memref<16x128xf32, #tpu.memory_space<vmem>>, vector<1x128xf32>
    %141 = tpu.concatenate %137, %140 in 0 : vector<1x128xf32>, vector<1x128xf32> -> vector<2x128xf32>
    %cst_49 = arith.constant dense<0.000000e+00> : vector<2x128xf32>
    %142 = tpu.matmul %126, %7, %cst_49 {dimension_numbers = #tpu.dot_dimension_numbers<[1], [0], [0], [1], [0, 0, 1, 1], [], []>} : vector<2x32xf32>, vector<32x128xf32>, vector<2x128xf32> -> vector<2x128xf32>
    %143 = arith.addf %141, %142 : vector<2x128xf32>
    %144 = vector.extract_strided_slice %143 {offsets = [0, 0], sizes = [2, 32], strides = [1, 1]} : vector<2x128xf32> to vector<2x32xf32>
    %145 = arith.negf %144 : vector<2x32xf32>
    %146 = math.exp %145 : vector<2x32xf32>
    %cst_50 = arith.constant 1.000000e+00 : f32
    %147 = vector.broadcast %cst_50 : f32 to vector<2x32xf32>
    %148 = arith.addf %147, %146 : vector<2x32xf32>
    %149 = arith.divf %147, %148 : vector<2x32xf32>
    %150 = vector.extract_strided_slice %143 {offsets = [0, 32], sizes = [2, 32], strides = [1, 1]} : vector<2x128xf32> to vector<2x32xf32>
    %151 = arith.negf %150 : vector<2x32xf32>
    %152 = math.exp %151 : vector<2x32xf32>
    %cst_51 = arith.constant 1.000000e+00 : f32
    %153 = vector.broadcast %cst_51 : f32 to vector<2x32xf32>
    %154 = arith.addf %153, %152 : vector<2x32xf32>
    %155 = arith.divf %153, %154 : vector<2x32xf32>
    %156 = vector.extract_strided_slice %143 {offsets = [0, 64], sizes = [2, 32], strides = [1, 1]} : vector<2x128xf32> to vector<2x32xf32>
    %157 = math.tanh %156 : vector<2x32xf32>
    %158 = vector.extract_strided_slice %143 {offsets = [0, 96], sizes = [2, 32], strides = [1, 1]} : vector<2x128xf32> to vector<2x32xf32>
    %159 = arith.negf %158 : vector<2x32xf32>
    %160 = math.exp %159 : vector<2x32xf32>
    %cst_52 = arith.constant 1.000000e+00 : f32
    %161 = vector.broadcast %cst_52 : f32 to vector<2x32xf32>
    %162 = arith.addf %161, %160 : vector<2x32xf32>
    %163 = arith.divf %161, %162 : vector<2x32xf32>
    %164 = arith.mulf %155, %124 : vector<2x32xf32>
    %165 = arith.mulf %149, %157 : vector<2x32xf32>
    %166 = arith.addf %164, %165 : vector<2x32xf32>
    %167 = math.tanh %166 : vector<2x32xf32>
    %168 = arith.mulf %163, %167 : vector<2x32xf32>
    %169 = vector.extract_strided_slice %168 {offsets = [0, 0], sizes = [1, 32], strides = [1, 1]} : vector<2x32xf32> to vector<1x32xf32>
    %c0_i32_53 = arith.constant 0 : i32
    %170 = arith.addi %c0_i32_53, %c3_i32 : i32
    %171 = arith.index_cast %170 : i32 to index
    %c0_54 = arith.constant 0 : index
    %172 = vector.load %arg11[%171, %c0_54] : memref<16x32xf32, #tpu.memory_space<vmem>>, vector<1x32xf32>
    tpu.vector_store %arg11[%171, %c0_54], %169 {strides = array<i32>} : memref<16x32xf32, #tpu.memory_space<vmem>>, vector<1x32xf32>,
    %173 = vector.extract_strided_slice %168 {offsets = [1, 0], sizes = [1, 32], strides = [1, 1]} : vector<2x32xf32> to vector<1x32xf32>
    %c8_i32_55 = arith.constant 8 : i32
    %174 = arith.addi %c8_i32_55, %c3_i32 : i32
    %175 = arith.index_cast %174 : i32 to index
    %c0_56 = arith.constant 0 : index
    %176 = vector.load %arg11[%175, %c0_56] : memref<16x32xf32, #tpu.memory_space<vmem>>, vector<1x32xf32>
    tpu.vector_store %arg11[%175, %c0_56], %173 {strides = array<i32>} : memref<16x32xf32, #tpu.memory_space<vmem>>, vector<1x32xf32>,
    %c4_i32 = arith.constant 4 : i32
    %c0_i32_57 = arith.constant 0 : i32
    %177 = arith.addi %c0_i32_57, %c4_i32 : i32
    %178 = arith.index_cast %177 : i32 to index
    %c0_58 = arith.constant 0 : index
    %179 = vector.load %arg10[%178, %c0_58] : memref<16x128xf32, #tpu.memory_space<vmem>>, vector<1x128xf32>
    %c8_i32_59 = arith.constant 8 : i32
    %180 = arith.addi %c8_i32_59, %c4_i32 : i32
    %181 = arith.index_cast %180 : i32 to index
    %c0_60 = arith.constant 0 : index
    %182 = vector.load %arg10[%181, %c0_60] : memref<16x128xf32, #tpu.memory_space<vmem>>, vector<1x128xf32>
    %183 = tpu.concatenate %179, %182 in 0 : vector<1x128xf32>, vector<1x128xf32> -> vector<2x128xf32>
    %cst_61 = arith.constant dense<0.000000e+00> : vector<2x128xf32>
    %184 = tpu.matmul %168, %7, %cst_61 {dimension_numbers = #tpu.dot_dimension_numbers<[1], [0], [0], [1], [0, 0, 1, 1], [], []>} : vector<2x32xf32>, vector<32x128xf32>, vector<2x128xf32> -> vector<2x128xf32>
    %185 = arith.addf %183, %184 : vector<2x128xf32>
    %186 = vector.extract_strided_slice %185 {offsets = [0, 0], sizes = [2, 32], strides = [1, 1]} : vector<2x128xf32> to vector<2x32xf32>
    %187 = arith.negf %186 : vector<2x32xf32>
    %188 = math.exp %187 : vector<2x32xf32>
    %cst_62 = arith.constant 1.000000e+00 : f32
    %189 = vector.broadcast %cst_62 : f32 to vector<2x32xf32>
    %190 = arith.addf %189, %188 : vector<2x32xf32>
    %191 = arith.divf %189, %190 : vector<2x32xf32>
    %192 = vector.extract_strided_slice %185 {offsets = [0, 32], sizes = [2, 32], strides = [1, 1]} : vector<2x128xf32> to vector<2x32xf32>
    %193 = arith.negf %192 : vector<2x32xf32>
    %194 = math.exp %193 : vector<2x32xf32>
    %cst_63 = arith.constant 1.000000e+00 : f32
    %195 = vector.broadcast %cst_63 : f32 to vector<2x32xf32>
    %196 = arith.addf %195, %194 : vector<2x32xf32>
    %197 = arith.divf %195, %196 : vector<2x32xf32>
    %198 = vector.extract_strided_slice %185 {offsets = [0, 64], sizes = [2, 32], strides = [1, 1]} : vector<2x128xf32> to vector<2x32xf32>
    %199 = math.tanh %198 : vector<2x32xf32>
    %200 = vector.extract_strided_slice %185 {offsets = [0, 96], sizes = [2, 32], strides = [1, 1]} : vector<2x128xf32> to vector<2x32xf32>
    %201 = arith.negf %200 : vector<2x32xf32>
    %202 = math.exp %201 : vector<2x32xf32>
    %cst_64 = arith.constant 1.000000e+00 : f32
    %203 = vector.broadcast %cst_64 : f32 to vector<2x32xf32>
    %204 = arith.addf %203, %202 : vector<2x32xf32>
    %205 = arith.divf %203, %204 : vector<2x32xf32>
    %206 = arith.mulf %197, %166 : vector<2x32xf32>
    %207 = arith.mulf %191, %199 : vector<2x32xf32>
    %208 = arith.addf %206, %207 : vector<2x32xf32>
    %209 = math.tanh %208 : vector<2x32xf32>
    %210 = arith.mulf %205, %209 : vector<2x32xf32>
    %211 = vector.extract_strided_slice %210 {offsets = [0, 0], sizes = [1, 32], strides = [1, 1]} : vector<2x32xf32> to vector<1x32xf32>
    %c0_i32_65 = arith.constant 0 : i32
    %212 = arith.addi %c0_i32_65, %c4_i32 : i32
    %213 = arith.index_cast %212 : i32 to index
    %c0_66 = arith.constant 0 : index
    %214 = vector.load %arg11[%213, %c0_66] : memref<16x32xf32, #tpu.memory_space<vmem>>, vector<1x32xf32>
    tpu.vector_store %arg11[%213, %c0_66], %211 {strides = array<i32>} : memref<16x32xf32, #tpu.memory_space<vmem>>, vector<1x32xf32>,
    %215 = vector.extract_strided_slice %210 {offsets = [1, 0], sizes = [1, 32], strides = [1, 1]} : vector<2x32xf32> to vector<1x32xf32>
    %c8_i32_67 = arith.constant 8 : i32
    %216 = arith.addi %c8_i32_67, %c4_i32 : i32
    %217 = arith.index_cast %216 : i32 to index
    %c0_68 = arith.constant 0 : index
    %218 = vector.load %arg11[%217, %c0_68] : memref<16x32xf32, #tpu.memory_space<vmem>>, vector<1x32xf32>
    tpu.vector_store %arg11[%217, %c0_68], %215 {strides = array<i32>} : memref<16x32xf32, #tpu.memory_space<vmem>>, vector<1x32xf32>,
    %c5_i32 = arith.constant 5 : i32
    %c0_i32_69 = arith.constant 0 : i32
    %219 = arith.addi %c0_i32_69, %c5_i32 : i32
    %220 = arith.index_cast %219 : i32 to index
    %c0_70 = arith.constant 0 : index
    %221 = vector.load %arg10[%220, %c0_70] : memref<16x128xf32, #tpu.memory_space<vmem>>, vector<1x128xf32>
    %c8_i32_71 = arith.constant 8 : i32
    %222 = arith.addi %c8_i32_71, %c5_i32 : i32
    %223 = arith.index_cast %222 : i32 to index
    %c0_72 = arith.constant 0 : index
    %224 = vector.load %arg10[%223, %c0_72] : memref<16x128xf32, #tpu.memory_space<vmem>>, vector<1x128xf32>
    %225 = tpu.concatenate %221, %224 in 0 : vector<1x128xf32>, vector<1x128xf32> -> vector<2x128xf32>
    %cst_73 = arith.constant dense<0.000000e+00> : vector<2x128xf32>
    %226 = tpu.matmul %210, %7, %cst_73 {dimension_numbers = #tpu.dot_dimension_numbers<[1], [0], [0], [1], [0, 0, 1, 1], [], []>} : vector<2x32xf32>, vector<32x128xf32>, vector<2x128xf32> -> vector<2x128xf32>
    %227 = arith.addf %225, %226 : vector<2x128xf32>
    %228 = vector.extract_strided_slice %227 {offsets = [0, 0], sizes = [2, 32], strides = [1, 1]} : vector<2x128xf32> to vector<2x32xf32>
    %229 = arith.negf %228 : vector<2x32xf32>
    %230 = math.exp %229 : vector<2x32xf32>
    %cst_74 = arith.constant 1.000000e+00 : f32
    %231 = vector.broadcast %cst_74 : f32 to vector<2x32xf32>
    %232 = arith.addf %231, %230 : vector<2x32xf32>
    %233 = arith.divf %231, %232 : vector<2x32xf32>
    %234 = vector.extract_strided_slice %227 {offsets = [0, 32], sizes = [2, 32], strides = [1, 1]} : vector<2x128xf32> to vector<2x32xf32>
    %235 = arith.negf %234 : vector<2x32xf32>
    %236 = math.exp %235 : vector<2x32xf32>
    %cst_75 = arith.constant 1.000000e+00 : f32
    %237 = vector.broadcast %cst_75 : f32 to vector<2x32xf32>
    %238 = arith.addf %237, %236 : vector<2x32xf32>
    %239 = arith.divf %237, %238 : vector<2x32xf32>
    %240 = vector.extract_strided_slice %227 {offsets = [0, 64], sizes = [2, 32], strides = [1, 1]} : vector<2x128xf32> to vector<2x32xf32>
    %241 = math.tanh %240 : vector<2x32xf32>
    %242 = vector.extract_strided_slice %227 {offsets = [0, 96], sizes = [2, 32], strides = [1, 1]} : vector<2x128xf32> to vector<2x32xf32>
    %243 = arith.negf %242 : vector<2x32xf32>
    %244 = math.exp %243 : vector<2x32xf32>
    %cst_76 = arith.constant 1.000000e+00 : f32
    %245 = vector.broadcast %cst_76 : f32 to vector<2x32xf32>
    %246 = arith.addf %245, %244 : vector<2x32xf32>
    %247 = arith.divf %245, %246 : vector<2x32xf32>
    %248 = arith.mulf %239, %208 : vector<2x32xf32>
    %249 = arith.mulf %233, %241 : vector<2x32xf32>
    %250 = arith.addf %248, %249 : vector<2x32xf32>
    %251 = math.tanh %250 : vector<2x32xf32>
    %252 = arith.mulf %247, %251 : vector<2x32xf32>
    %253 = vector.extract_strided_slice %252 {offsets = [0, 0], sizes = [1, 32], strides = [1, 1]} : vector<2x32xf32> to vector<1x32xf32>
    %c0_i32_77 = arith.constant 0 : i32
    %254 = arith.addi %c0_i32_77, %c5_i32 : i32
    %255 = arith.index_cast %254 : i32 to index
    %c0_78 = arith.constant 0 : index
    %256 = vector.load %arg11[%255, %c0_78] : memref<16x32xf32, #tpu.memory_space<vmem>>, vector<1x32xf32>
    tpu.vector_store %arg11[%255, %c0_78], %253 {strides = array<i32>} : memref<16x32xf32, #tpu.memory_space<vmem>>, vector<1x32xf32>,
    %257 = vector.extract_strided_slice %252 {offsets = [1, 0], sizes = [1, 32], strides = [1, 1]} : vector<2x32xf32> to vector<1x32xf32>
    %c8_i32_79 = arith.constant 8 : i32
    %258 = arith.addi %c8_i32_79, %c5_i32 : i32
    %259 = arith.index_cast %258 : i32 to index
    %c0_80 = arith.constant 0 : index
    %260 = vector.load %arg11[%259, %c0_80] : memref<16x32xf32, #tpu.memory_space<vmem>>, vector<1x32xf32>
    tpu.vector_store %arg11[%259, %c0_80], %257 {strides = array<i32>} : memref<16x32xf32, #tpu.memory_space<vmem>>, vector<1x32xf32>,
    %c6_i32 = arith.constant 6 : i32
    %c0_i32_81 = arith.constant 0 : i32
    %261 = arith.addi %c0_i32_81, %c6_i32 : i32
    %262 = arith.index_cast %261 : i32 to index
    %c0_82 = arith.constant 0 : index
    %263 = vector.load %arg10[%262, %c0_82] : memref<16x128xf32, #tpu.memory_space<vmem>>, vector<1x128xf32>
    %c8_i32_83 = arith.constant 8 : i32
    %264 = arith.addi %c8_i32_83, %c6_i32 : i32
    %265 = arith.index_cast %264 : i32 to index
    %c0_84 = arith.constant 0 : index
    %266 = vector.load %arg10[%265, %c0_84] : memref<16x128xf32, #tpu.memory_space<vmem>>, vector<1x128xf32>
    %267 = tpu.concatenate %263, %266 in 0 : vector<1x128xf32>, vector<1x128xf32> -> vector<2x128xf32>
    %cst_85 = arith.constant dense<0.000000e+00> : vector<2x128xf32>
    %268 = tpu.matmul %252, %7, %cst_85 {dimension_numbers = #tpu.dot_dimension_numbers<[1], [0], [0], [1], [0, 0, 1, 1], [], []>} : vector<2x32xf32>, vector<32x128xf32>, vector<2x128xf32> -> vector<2x128xf32>
    %269 = arith.addf %267, %268 : vector<2x128xf32>
    %270 = vector.extract_strided_slice %269 {offsets = [0, 0], sizes = [2, 32], strides = [1, 1]} : vector<2x128xf32> to vector<2x32xf32>
    %271 = arith.negf %270 : vector<2x32xf32>
    %272 = math.exp %271 : vector<2x32xf32>
    %cst_86 = arith.constant 1.000000e+00 : f32
    %273 = vector.broadcast %cst_86 : f32 to vector<2x32xf32>
    %274 = arith.addf %273, %272 : vector<2x32xf32>
    %275 = arith.divf %273, %274 : vector<2x32xf32>
    %276 = vector.extract_strided_slice %269 {offsets = [0, 32], sizes = [2, 32], strides = [1, 1]} : vector<2x128xf32> to vector<2x32xf32>
    %277 = arith.negf %276 : vector<2x32xf32>
    %278 = math.exp %277 : vector<2x32xf32>
    %cst_87 = arith.constant 1.000000e+00 : f32
    %279 = vector.broadcast %cst_87 : f32 to vector<2x32xf32>
    %280 = arith.addf %279, %278 : vector<2x32xf32>
    %281 = arith.divf %279, %280 : vector<2x32xf32>
    %282 = vector.extract_strided_slice %269 {offsets = [0, 64], sizes = [2, 32], strides = [1, 1]} : vector<2x128xf32> to vector<2x32xf32>
    %283 = math.tanh %282 : vector<2x32xf32>
    %284 = vector.extract_strided_slice %269 {offsets = [0, 96], sizes = [2, 32], strides = [1, 1]} : vector<2x128xf32> to vector<2x32xf32>
    %285 = arith.negf %284 : vector<2x32xf32>
    %286 = math.exp %285 : vector<2x32xf32>
    %cst_88 = arith.constant 1.000000e+00 : f32
    %287 = vector.broadcast %cst_88 : f32 to vector<2x32xf32>
    %288 = arith.addf %287, %286 : vector<2x32xf32>
    %289 = arith.divf %287, %288 : vector<2x32xf32>
    %290 = arith.mulf %281, %250 : vector<2x32xf32>
    %291 = arith.mulf %275, %283 : vector<2x32xf32>
    %292 = arith.addf %290, %291 : vector<2x32xf32>
    %293 = math.tanh %292 : vector<2x32xf32>
    %294 = arith.mulf %289, %293 : vector<2x32xf32>
    %295 = vector.extract_strided_slice %294 {offsets = [0, 0], sizes = [1, 32], strides = [1, 1]} : vector<2x32xf32> to vector<1x32xf32>
    %c0_i32_89 = arith.constant 0 : i32
    %296 = arith.addi %c0_i32_89, %c6_i32 : i32
    %297 = arith.index_cast %296 : i32 to index
    %c0_90 = arith.constant 0 : index
    %298 = vector.load %arg11[%297, %c0_90] : memref<16x32xf32, #tpu.memory_space<vmem>>, vector<1x32xf32>
    tpu.vector_store %arg11[%297, %c0_90], %295 {strides = array<i32>} : memref<16x32xf32, #tpu.memory_space<vmem>>, vector<1x32xf32>,
    %299 = vector.extract_strided_slice %294 {offsets = [1, 0], sizes = [1, 32], strides = [1, 1]} : vector<2x32xf32> to vector<1x32xf32>
    %c8_i32_91 = arith.constant 8 : i32
    %300 = arith.addi %c8_i32_91, %c6_i32 : i32
    %301 = arith.index_cast %300 : i32 to index
    %c0_92 = arith.constant 0 : index
    %302 = vector.load %arg11[%301, %c0_92] : memref<16x32xf32, #tpu.memory_space<vmem>>, vector<1x32xf32>
    tpu.vector_store %arg11[%301, %c0_92], %299 {strides = array<i32>} : memref<16x32xf32, #tpu.memory_space<vmem>>, vector<1x32xf32>,
    %c7_i32 = arith.constant 7 : i32
    %c0_i32_93 = arith.constant 0 : i32
    %303 = arith.addi %c0_i32_93, %c7_i32 : i32
    %304 = arith.index_cast %303 : i32 to index
    %c0_94 = arith.constant 0 : index
    %305 = vector.load %arg10[%304, %c0_94] : memref<16x128xf32, #tpu.memory_space<vmem>>, vector<1x128xf32>
    %c8_i32_95 = arith.constant 8 : i32
    %306 = arith.addi %c8_i32_95, %c7_i32 : i32
    %307 = arith.index_cast %306 : i32 to index
    %c0_96 = arith.constant 0 : index
    %308 = vector.load %arg10[%307, %c0_96] : memref<16x128xf32, #tpu.memory_space<vmem>>, vector<1x128xf32>
    %309 = tpu.concatenate %305, %308 in 0 : vector<1x128xf32>, vector<1x128xf32> -> vector<2x128xf32>
    %cst_97 = arith.constant dense<0.000000e+00> : vector<2x128xf32>
    %310 = tpu.matmul %294, %7, %cst_97 {dimension_numbers = #tpu.dot_dimension_numbers<[1], [0], [0], [1], [0, 0, 1, 1], [], []>} : vector<2x32xf32>, vector<32x128xf32>, vector<2x128xf32> -> vector<2x128xf32>
    %311 = arith.addf %309, %310 : vector<2x128xf32>
    %312 = vector.extract_strided_slice %311 {offsets = [0, 0], sizes = [2, 32], strides = [1, 1]} : vector<2x128xf32> to vector<2x32xf32>
    %313 = arith.negf %312 : vector<2x32xf32>
    %314 = math.exp %313 : vector<2x32xf32>
    %cst_98 = arith.constant 1.000000e+00 : f32
    %315 = vector.broadcast %cst_98 : f32 to vector<2x32xf32>
    %316 = arith.addf %315, %314 : vector<2x32xf32>
    %317 = arith.divf %315, %316 : vector<2x32xf32>
    %318 = vector.extract_strided_slice %311 {offsets = [0, 32], sizes = [2, 32], strides = [1, 1]} : vector<2x128xf32> to vector<2x32xf32>
    %319 = arith.negf %318 : vector<2x32xf32>
    %320 = math.exp %319 : vector<2x32xf32>
    %cst_99 = arith.constant 1.000000e+00 : f32
    %321 = vector.broadcast %cst_99 : f32 to vector<2x32xf32>
    %322 = arith.addf %321, %320 : vector<2x32xf32>
    %323 = arith.divf %321, %322 : vector<2x32xf32>
    %324 = vector.extract_strided_slice %311 {offsets = [0, 64], sizes = [2, 32], strides = [1, 1]} : vector<2x128xf32> to vector<2x32xf32>
    %325 = math.tanh %324 : vector<2x32xf32>
    %326 = vector.extract_strided_slice %311 {offsets = [0, 96], sizes = [2, 32], strides = [1, 1]} : vector<2x128xf32> to vector<2x32xf32>
    %327 = arith.negf %326 : vector<2x32xf32>
    %328 = math.exp %327 : vector<2x32xf32>
    %cst_100 = arith.constant 1.000000e+00 : f32
    %329 = vector.broadcast %cst_100 : f32 to vector<2x32xf32>
    %330 = arith.addf %329, %328 : vector<2x32xf32>
    %331 = arith.divf %329, %330 : vector<2x32xf32>
    %332 = arith.mulf %323, %292 : vector<2x32xf32>
    %333 = arith.mulf %317, %325 : vector<2x32xf32>
    %334 = arith.addf %332, %333 : vector<2x32xf32>
    %335 = math.tanh %334 : vector<2x32xf32>
    %336 = arith.mulf %331, %335 : vector<2x32xf32>
    %337 = vector.extract_strided_slice %336 {offsets = [0, 0], sizes = [1, 32], strides = [1, 1]} : vector<2x32xf32> to vector<1x32xf32>
    %c0_i32_101 = arith.constant 0 : i32
    %338 = arith.addi %c0_i32_101, %c7_i32 : i32
    %339 = arith.index_cast %338 : i32 to index
    %c0_102 = arith.constant 0 : index
    %340 = vector.load %arg11[%339, %c0_102] : memref<16x32xf32, #tpu.memory_space<vmem>>, vector<1x32xf32>
    tpu.vector_store %arg11[%339, %c0_102], %337 {strides = array<i32>} : memref<16x32xf32, #tpu.memory_space<vmem>>, vector<1x32xf32>,
    %341 = vector.extract_strided_slice %336 {offsets = [1, 0], sizes = [1, 32], strides = [1, 1]} : vector<2x32xf32> to vector<1x32xf32>
    %c8_i32_103 = arith.constant 8 : i32
    %342 = arith.addi %c8_i32_103, %c7_i32 : i32
    %343 = arith.index_cast %342 : i32 to index
    %c0_104 = arith.constant 0 : index
    %344 = vector.load %arg11[%343, %c0_104] : memref<16x32xf32, #tpu.memory_space<vmem>>, vector<1x32xf32>
    tpu.vector_store %arg11[%343, %c0_104], %341 {strides = array<i32>} : memref<16x32xf32, #tpu.memory_space<vmem>>, vector<1x32xf32>,
    %c8_i32_105 = arith.constant 8 : i32
    %c0_106 = arith.constant 0 : index
    %c0_107 = arith.constant 0 : index
    %345 = vector.load %arg11[%c0_106, %c0_107] : memref<16x32xf32, #tpu.memory_space<vmem>>, vector<16x32xf32>
    %c0_108 = arith.constant 0 : index
    %c0_109 = arith.constant 0 : index
    %346 = vector.load %arg4[%c0_108, %c0_109] : memref<32x128xf32, #tpu.memory_space<vmem>>, vector<32x128xf32>
    %cst_110 = arith.constant dense<0.000000e+00> : vector<16x128xf32>
    %347 = tpu.matmul %345, %346, %cst_110 {dimension_numbers = #tpu.dot_dimension_numbers<[1], [0], [0], [1], [0, 0, 1, 1], [], []>} : vector<16x32xf32>, vector<32x128xf32>, vector<16x128xf32> -> vector<16x128xf32>
    %c0_111 = arith.constant 0 : index
    %c0_112 = arith.constant 0 : index
    %348 = vector.load %arg6[%c0_111, %c0_112] : memref<1x128xf32, #tpu.memory_space<vmem>>, vector<1x128xf32>
    %349 = vector.broadcast %348 : vector<1x128xf32> to vector<16x128xf32>
    %350 = arith.addf %347, %349 : vector<16x128xf32>
    %c0_113 = arith.constant 0 : index
    %c0_114 = arith.constant 0 : index
    %351 = vector.load %arg10[%c0_113, %c0_114] : memref<16x128xf32, #tpu.memory_space<vmem>>, vector<16x128xf32>
    tpu.vector_store %arg10[%c0_113, %c0_114], %350 {strides = array<i32>} : memref<16x128xf32, #tpu.memory_space<vmem>>, vector<16x128xf32>,
    %c0_115 = arith.constant 0 : index
    %c0_116 = arith.constant 0 : index
    %352 = vector.load %arg5[%c0_115, %c0_116] : memref<32x128xf32, #tpu.memory_space<vmem>>, vector<32x128xf32>
    %cst_117 = arith.constant 0.000000e+00 : f32
    %353 = vector.broadcast %cst_117 : f32 to vector<2x32xf32>
    %c0_i32_118 = arith.constant 0 : i32
    %c0_i32_119 = arith.constant 0 : i32
    %354 = arith.addi %c0_i32_119, %c0_i32_118 : i32
    %355 = arith.index_cast %354 : i32 to index
    %c0_120 = arith.constant 0 : index
    %356 = vector.load %arg10[%355, %c0_120] : memref<16x128xf32, #tpu.memory_space<vmem>>, vector<1x128xf32>
    %c8_i32_121 = arith.constant 8 : i32
    %357 = arith.addi %c8_i32_121, %c0_i32_118 : i32
    %358 = arith.index_cast %357 : i32 to index
    %c0_122 = arith.constant 0 : index
    %359 = vector.load %arg10[%358, %c0_122] : memref<16x128xf32, #tpu.memory_space<vmem>>, vector<1x128xf32>
    %360 = tpu.concatenate %356, %359 in 0 : vector<1x128xf32>, vector<1x128xf32> -> vector<2x128xf32>
    %cst_123 = arith.constant dense<0.000000e+00> : vector<2x128xf32>
    %361 = tpu.matmul %353, %352, %cst_123 {dimension_numbers = #tpu.dot_dimension_numbers<[1], [0], [0], [1], [0, 0, 1, 1], [], []>} : vector<2x32xf32>, vector<32x128xf32>, vector<2x128xf32> -> vector<2x128xf32>
    %362 = arith.addf %360, %361 : vector<2x128xf32>
    %363 = vector.extract_strided_slice %362 {offsets = [0, 0], sizes = [2, 32], strides = [1, 1]} : vector<2x128xf32> to vector<2x32xf32>
    %364 = arith.negf %363 : vector<2x32xf32>
    %365 = math.exp %364 : vector<2x32xf32>
    %cst_124 = arith.constant 1.000000e+00 : f32
    %366 = vector.broadcast %cst_124 : f32 to vector<2x32xf32>
    %367 = arith.addf %366, %365 : vector<2x32xf32>
    %368 = arith.divf %366, %367 : vector<2x32xf32>
    %369 = vector.extract_strided_slice %362 {offsets = [0, 32], sizes = [2, 32], strides = [1, 1]} : vector<2x128xf32> to vector<2x32xf32>
    %370 = arith.negf %369 : vector<2x32xf32>
    %371 = math.exp %370 : vector<2x32xf32>
    %cst_125 = arith.constant 1.000000e+00 : f32
    %372 = vector.broadcast %cst_125 : f32 to vector<2x32xf32>
    %373 = arith.addf %372, %371 : vector<2x32xf32>
    %374 = arith.divf %372, %373 : vector<2x32xf32>
    %375 = vector.extract_strided_slice %362 {offsets = [0, 64], sizes = [2, 32], strides = [1, 1]} : vector<2x128xf32> to vector<2x32xf32>
    %376 = math.tanh %375 : vector<2x32xf32>
    %377 = vector.extract_strided_slice %362 {offsets = [0, 96], sizes = [2, 32], strides = [1, 1]} : vector<2x128xf32> to vector<2x32xf32>
    %378 = arith.negf %377 : vector<2x32xf32>
    %379 = math.exp %378 : vector<2x32xf32>
    %cst_126 = arith.constant 1.000000e+00 : f32
    %380 = vector.broadcast %cst_126 : f32 to vector<2x32xf32>
    %381 = arith.addf %380, %379 : vector<2x32xf32>
    %382 = arith.divf %380, %381 : vector<2x32xf32>
    %383 = arith.mulf %374, %353 : vector<2x32xf32>
    %384 = arith.mulf %368, %376 : vector<2x32xf32>
    %385 = arith.addf %383, %384 : vector<2x32xf32>
    %386 = math.tanh %385 : vector<2x32xf32>
    %387 = arith.mulf %382, %386 : vector<2x32xf32>
    %388 = vector.extract_strided_slice %387 {offsets = [0, 0], sizes = [1, 32], strides = [1, 1]} : vector<2x32xf32> to vector<1x32xf32>
    %c0_i32_127 = arith.constant 0 : i32
    %389 = arith.addi %c0_i32_127, %c0_i32_118 : i32
    %390 = arith.index_cast %389 : i32 to index
    %c0_128 = arith.constant 0 : index
    %391 = vector.load %arg11[%390, %c0_128] : memref<16x32xf32, #tpu.memory_space<vmem>>, vector<1x32xf32>
    tpu.vector_store %arg11[%390, %c0_128], %388 {strides = array<i32>} : memref<16x32xf32, #tpu.memory_space<vmem>>, vector<1x32xf32>,
    %392 = vector.extract_strided_slice %387 {offsets = [1, 0], sizes = [1, 32], strides = [1, 1]} : vector<2x32xf32> to vector<1x32xf32>
    %c8_i32_129 = arith.constant 8 : i32
    %393 = arith.addi %c8_i32_129, %c0_i32_118 : i32
    %394 = arith.index_cast %393 : i32 to index
    %c0_130 = arith.constant 0 : index
    %395 = vector.load %arg11[%394, %c0_130] : memref<16x32xf32, #tpu.memory_space<vmem>>, vector<1x32xf32>
    tpu.vector_store %arg11[%394, %c0_130], %392 {strides = array<i32>} : memref<16x32xf32, #tpu.memory_space<vmem>>, vector<1x32xf32>,
    %c1_i32_131 = arith.constant 1 : i32
    %c0_i32_132 = arith.constant 0 : i32
    %396 = arith.addi %c0_i32_132, %c1_i32_131 : i32
    %397 = arith.index_cast %396 : i32 to index
    %c0_133 = arith.constant 0 : index
    %398 = vector.load %arg10[%397, %c0_133] : memref<16x128xf32, #tpu.memory_space<vmem>>, vector<1x128xf32>
    %c8_i32_134 = arith.constant 8 : i32
    %399 = arith.addi %c8_i32_134, %c1_i32_131 : i32
    %400 = arith.index_cast %399 : i32 to index
    %c0_135 = arith.constant 0 : index
    %401 = vector.load %arg10[%400, %c0_135] : memref<16x128xf32, #tpu.memory_space<vmem>>, vector<1x128xf32>
    %402 = tpu.concatenate %398, %401 in 0 : vector<1x128xf32>, vector<1x128xf32> -> vector<2x128xf32>
    %cst_136 = arith.constant dense<0.000000e+00> : vector<2x128xf32>
    %403 = tpu.matmul %387, %352, %cst_136 {dimension_numbers = #tpu.dot_dimension_numbers<[1], [0], [0], [1], [0, 0, 1, 1], [], []>} : vector<2x32xf32>, vector<32x128xf32>, vector<2x128xf32> -> vector<2x128xf32>
    %404 = arith.addf %402, %403 : vector<2x128xf32>
    %405 = vector.extract_strided_slice %404 {offsets = [0, 0], sizes = [2, 32], strides = [1, 1]} : vector<2x128xf32> to vector<2x32xf32>
    %406 = arith.negf %405 : vector<2x32xf32>
    %407 = math.exp %406 : vector<2x32xf32>
    %cst_137 = arith.constant 1.000000e+00 : f32
    %408 = vector.broadcast %cst_137 : f32 to vector<2x32xf32>
    %409 = arith.addf %408, %407 : vector<2x32xf32>
    %410 = arith.divf %408, %409 : vector<2x32xf32>
    %411 = vector.extract_strided_slice %404 {offsets = [0, 32], sizes = [2, 32], strides = [1, 1]} : vector<2x128xf32> to vector<2x32xf32>
    %412 = arith.negf %411 : vector<2x32xf32>
    %413 = math.exp %412 : vector<2x32xf32>
    %cst_138 = arith.constant 1.000000e+00 : f32
    %414 = vector.broadcast %cst_138 : f32 to vector<2x32xf32>
    %415 = arith.addf %414, %413 : vector<2x32xf32>
    %416 = arith.divf %414, %415 : vector<2x32xf32>
    %417 = vector.extract_strided_slice %404 {offsets = [0, 64], sizes = [2, 32], strides = [1, 1]} : vector<2x128xf32> to vector<2x32xf32>
    %418 = math.tanh %417 : vector<2x32xf32>
    %419 = vector.extract_strided_slice %404 {offsets = [0, 96], sizes = [2, 32], strides = [1, 1]} : vector<2x128xf32> to vector<2x32xf32>
    %420 = arith.negf %419 : vector<2x32xf32>
    %421 = math.exp %420 : vector<2x32xf32>
    %cst_139 = arith.constant 1.000000e+00 : f32
    %422 = vector.broadcast %cst_139 : f32 to vector<2x32xf32>
    %423 = arith.addf %422, %421 : vector<2x32xf32>
    %424 = arith.divf %422, %423 : vector<2x32xf32>
    %425 = arith.mulf %416, %385 : vector<2x32xf32>
    %426 = arith.mulf %410, %418 : vector<2x32xf32>
    %427 = arith.addf %425, %426 : vector<2x32xf32>
    %428 = math.tanh %427 : vector<2x32xf32>
    %429 = arith.mulf %424, %428 : vector<2x32xf32>
    %430 = vector.extract_strided_slice %429 {offsets = [0, 0], sizes = [1, 32], strides = [1, 1]} : vector<2x32xf32> to vector<1x32xf32>
    %c0_i32_140 = arith.constant 0 : i32
    %431 = arith.addi %c0_i32_140, %c1_i32_131 : i32
    %432 = arith.index_cast %431 : i32 to index
    %c0_141 = arith.constant 0 : index
    %433 = vector.load %arg11[%432, %c0_141] : memref<16x32xf32, #tpu.memory_space<vmem>>, vector<1x32xf32>
    tpu.vector_store %arg11[%432, %c0_141], %430 {strides = array<i32>} : memref<16x32xf32, #tpu.memory_space<vmem>>, vector<1x32xf32>,
    %434 = vector.extract_strided_slice %429 {offsets = [1, 0], sizes = [1, 32], strides = [1, 1]} : vector<2x32xf32> to vector<1x32xf32>
    %c8_i32_142 = arith.constant 8 : i32
    %435 = arith.addi %c8_i32_142, %c1_i32_131 : i32
    %436 = arith.index_cast %435 : i32 to index
    %c0_143 = arith.constant 0 : index
    %437 = vector.load %arg11[%436, %c0_143] : memref<16x32xf32, #tpu.memory_space<vmem>>, vector<1x32xf32>
    tpu.vector_store %arg11[%436, %c0_143], %434 {strides = array<i32>} : memref<16x32xf32, #tpu.memory_space<vmem>>, vector<1x32xf32>,
    %c2_i32_144 = arith.constant 2 : i32
    %c0_i32_145 = arith.constant 0 : i32
    %438 = arith.addi %c0_i32_145, %c2_i32_144 : i32
    %439 = arith.index_cast %438 : i32 to index
    %c0_146 = arith.constant 0 : index
    %440 = vector.load %arg10[%439, %c0_146] : memref<16x128xf32, #tpu.memory_space<vmem>>, vector<1x128xf32>
    %c8_i32_147 = arith.constant 8 : i32
    %441 = arith.addi %c8_i32_147, %c2_i32_144 : i32
    %442 = arith.index_cast %441 : i32 to index
    %c0_148 = arith.constant 0 : index
    %443 = vector.load %arg10[%442, %c0_148] : memref<16x128xf32, #tpu.memory_space<vmem>>, vector<1x128xf32>
    %444 = tpu.concatenate %440, %443 in 0 : vector<1x128xf32>, vector<1x128xf32> -> vector<2x128xf32>
    %cst_149 = arith.constant dense<0.000000e+00> : vector<2x128xf32>
    %445 = tpu.matmul %429, %352, %cst_149 {dimension_numbers = #tpu.dot_dimension_numbers<[1], [0], [0], [1], [0, 0, 1, 1], [], []>} : vector<2x32xf32>, vector<32x128xf32>, vector<2x128xf32> -> vector<2x128xf32>
    %446 = arith.addf %444, %445 : vector<2x128xf32>
    %447 = vector.extract_strided_slice %446 {offsets = [0, 0], sizes = [2, 32], strides = [1, 1]} : vector<2x128xf32> to vector<2x32xf32>
    %448 = arith.negf %447 : vector<2x32xf32>
    %449 = math.exp %448 : vector<2x32xf32>
    %cst_150 = arith.constant 1.000000e+00 : f32
    %450 = vector.broadcast %cst_150 : f32 to vector<2x32xf32>
    %451 = arith.addf %450, %449 : vector<2x32xf32>
    %452 = arith.divf %450, %451 : vector<2x32xf32>
    %453 = vector.extract_strided_slice %446 {offsets = [0, 32], sizes = [2, 32], strides = [1, 1]} : vector<2x128xf32> to vector<2x32xf32>
    %454 = arith.negf %453 : vector<2x32xf32>
    %455 = math.exp %454 : vector<2x32xf32>
    %cst_151 = arith.constant 1.000000e+00 : f32
    %456 = vector.broadcast %cst_151 : f32 to vector<2x32xf32>
    %457 = arith.addf %456, %455 : vector<2x32xf32>
    %458 = arith.divf %456, %457 : vector<2x32xf32>
    %459 = vector.extract_strided_slice %446 {offsets = [0, 64], sizes = [2, 32], strides = [1, 1]} : vector<2x128xf32> to vector<2x32xf32>
    %460 = math.tanh %459 : vector<2x32xf32>
    %461 = vector.extract_strided_slice %446 {offsets = [0, 96], sizes = [2, 32], strides = [1, 1]} : vector<2x128xf32> to vector<2x32xf32>
    %462 = arith.negf %461 : vector<2x32xf32>
    %463 = math.exp %462 : vector<2x32xf32>
    %cst_152 = arith.constant 1.000000e+00 : f32
    %464 = vector.broadcast %cst_152 : f32 to vector<2x32xf32>
    %465 = arith.addf %464, %463 : vector<2x32xf32>
    %466 = arith.divf %464, %465 : vector<2x32xf32>
    %467 = arith.mulf %458, %427 : vector<2x32xf32>
    %468 = arith.mulf %452, %460 : vector<2x32xf32>
    %469 = arith.addf %467, %468 : vector<2x32xf32>
    %470 = math.tanh %469 : vector<2x32xf32>
    %471 = arith.mulf %466, %470 : vector<2x32xf32>
    %472 = vector.extract_strided_slice %471 {offsets = [0, 0], sizes = [1, 32], strides = [1, 1]} : vector<2x32xf32> to vector<1x32xf32>
    %c0_i32_153 = arith.constant 0 : i32
    %473 = arith.addi %c0_i32_153, %c2_i32_144 : i32
    %474 = arith.index_cast %473 : i32 to index
    %c0_154 = arith.constant 0 : index
    %475 = vector.load %arg11[%474, %c0_154] : memref<16x32xf32, #tpu.memory_space<vmem>>, vector<1x32xf32>
    tpu.vector_store %arg11[%474, %c0_154], %472 {strides = array<i32>} : memref<16x32xf32, #tpu.memory_space<vmem>>, vector<1x32xf32>,
    %476 = vector.extract_strided_slice %471 {offsets = [1, 0], sizes = [1, 32], strides = [1, 1]} : vector<2x32xf32> to vector<1x32xf32>
    %c8_i32_155 = arith.constant 8 : i32
    %477 = arith.addi %c8_i32_155, %c2_i32_144 : i32
    %478 = arith.index_cast %477 : i32 to index
    %c0_156 = arith.constant 0 : index
    %479 = vector.load %arg11[%478, %c0_156] : memref<16x32xf32, #tpu.memory_space<vmem>>, vector<1x32xf32>
    tpu.vector_store %arg11[%478, %c0_156], %476 {strides = array<i32>} : memref<16x32xf32, #tpu.memory_space<vmem>>, vector<1x32xf32>,
    %c3_i32_157 = arith.constant 3 : i32
    %c0_i32_158 = arith.constant 0 : i32
    %480 = arith.addi %c0_i32_158, %c3_i32_157 : i32
    %481 = arith.index_cast %480 : i32 to index
    %c0_159 = arith.constant 0 : index
    %482 = vector.load %arg10[%481, %c0_159] : memref<16x128xf32, #tpu.memory_space<vmem>>, vector<1x128xf32>
    %c8_i32_160 = arith.constant 8 : i32
    %483 = arith.addi %c8_i32_160, %c3_i32_157 : i32
    %484 = arith.index_cast %483 : i32 to index
    %c0_161 = arith.constant 0 : index
    %485 = vector.load %arg10[%484, %c0_161] : memref<16x128xf32, #tpu.memory_space<vmem>>, vector<1x128xf32>
    %486 = tpu.concatenate %482, %485 in 0 : vector<1x128xf32>, vector<1x128xf32> -> vector<2x128xf32>
    %cst_162 = arith.constant dense<0.000000e+00> : vector<2x128xf32>
    %487 = tpu.matmul %471, %352, %cst_162 {dimension_numbers = #tpu.dot_dimension_numbers<[1], [0], [0], [1], [0, 0, 1, 1], [], []>} : vector<2x32xf32>, vector<32x128xf32>, vector<2x128xf32> -> vector<2x128xf32>
    %488 = arith.addf %486, %487 : vector<2x128xf32>
    %489 = vector.extract_strided_slice %488 {offsets = [0, 0], sizes = [2, 32], strides = [1, 1]} : vector<2x128xf32> to vector<2x32xf32>
    %490 = arith.negf %489 : vector<2x32xf32>
    %491 = math.exp %490 : vector<2x32xf32>
    %cst_163 = arith.constant 1.000000e+00 : f32
    %492 = vector.broadcast %cst_163 : f32 to vector<2x32xf32>
    %493 = arith.addf %492, %491 : vector<2x32xf32>
    %494 = arith.divf %492, %493 : vector<2x32xf32>
    %495 = vector.extract_strided_slice %488 {offsets = [0, 32], sizes = [2, 32], strides = [1, 1]} : vector<2x128xf32> to vector<2x32xf32>
    %496 = arith.negf %495 : vector<2x32xf32>
    %497 = math.exp %496 : vector<2x32xf32>
    %cst_164 = arith.constant 1.000000e+00 : f32
    %498 = vector.broadcast %cst_164 : f32 to vector<2x32xf32>
    %499 = arith.addf %498, %497 : vector<2x32xf32>
    %500 = arith.divf %498, %499 : vector<2x32xf32>
    %501 = vector.extract_strided_slice %488 {offsets = [0, 64], sizes = [2, 32], strides = [1, 1]} : vector<2x128xf32> to vector<2x32xf32>
    %502 = math.tanh %501 : vector<2x32xf32>
    %503 = vector.extract_strided_slice %488 {offsets = [0, 96], sizes = [2, 32], strides = [1, 1]} : vector<2x128xf32> to vector<2x32xf32>
    %504 = arith.negf %503 : vector<2x32xf32>
    %505 = math.exp %504 : vector<2x32xf32>
    %cst_165 = arith.constant 1.000000e+00 : f32
    %506 = vector.broadcast %cst_165 : f32 to vector<2x32xf32>
    %507 = arith.addf %506, %505 : vector<2x32xf32>
    %508 = arith.divf %506, %507 : vector<2x32xf32>
    %509 = arith.mulf %500, %469 : vector<2x32xf32>
    %510 = arith.mulf %494, %502 : vector<2x32xf32>
    %511 = arith.addf %509, %510 : vector<2x32xf32>
    %512 = math.tanh %511 : vector<2x32xf32>
    %513 = arith.mulf %508, %512 : vector<2x32xf32>
    %514 = vector.extract_strided_slice %513 {offsets = [0, 0], sizes = [1, 32], strides = [1, 1]} : vector<2x32xf32> to vector<1x32xf32>
    %c0_i32_166 = arith.constant 0 : i32
    %515 = arith.addi %c0_i32_166, %c3_i32_157 : i32
    %516 = arith.index_cast %515 : i32 to index
    %c0_167 = arith.constant 0 : index
    %517 = vector.load %arg11[%516, %c0_167] : memref<16x32xf32, #tpu.memory_space<vmem>>, vector<1x32xf32>
    tpu.vector_store %arg11[%516, %c0_167], %514 {strides = array<i32>} : memref<16x32xf32, #tpu.memory_space<vmem>>, vector<1x32xf32>,
    %518 = vector.extract_strided_slice %513 {offsets = [1, 0], sizes = [1, 32], strides = [1, 1]} : vector<2x32xf32> to vector<1x32xf32>
    %c8_i32_168 = arith.constant 8 : i32
    %519 = arith.addi %c8_i32_168, %c3_i32_157 : i32
    %520 = arith.index_cast %519 : i32 to index
    %c0_169 = arith.constant 0 : index
    %521 = vector.load %arg11[%520, %c0_169] : memref<16x32xf32, #tpu.memory_space<vmem>>, vector<1x32xf32>
    tpu.vector_store %arg11[%520, %c0_169], %518 {strides = array<i32>} : memref<16x32xf32, #tpu.memory_space<vmem>>, vector<1x32xf32>,
    %c4_i32_170 = arith.constant 4 : i32
    %c0_i32_171 = arith.constant 0 : i32
    %522 = arith.addi %c0_i32_171, %c4_i32_170 : i32
    %523 = arith.index_cast %522 : i32 to index
    %c0_172 = arith.constant 0 : index
    %524 = vector.load %arg10[%523, %c0_172] : memref<16x128xf32, #tpu.memory_space<vmem>>, vector<1x128xf32>
    %c8_i32_173 = arith.constant 8 : i32
    %525 = arith.addi %c8_i32_173, %c4_i32_170 : i32
    %526 = arith.index_cast %525 : i32 to index
    %c0_174 = arith.constant 0 : index
    %527 = vector.load %arg10[%526, %c0_174] : memref<16x128xf32, #tpu.memory_space<vmem>>, vector<1x128xf32>
    %528 = tpu.concatenate %524, %527 in 0 : vector<1x128xf32>, vector<1x128xf32> -> vector<2x128xf32>
    %cst_175 = arith.constant dense<0.000000e+00> : vector<2x128xf32>
    %529 = tpu.matmul %513, %352, %cst_175 {dimension_numbers = #tpu.dot_dimension_numbers<[1], [0], [0], [1], [0, 0, 1, 1], [], []>} : vector<2x32xf32>, vector<32x128xf32>, vector<2x128xf32> -> vector<2x128xf32>
    %530 = arith.addf %528, %529 : vector<2x128xf32>
    %531 = vector.extract_strided_slice %530 {offsets = [0, 0], sizes = [2, 32], strides = [1, 1]} : vector<2x128xf32> to vector<2x32xf32>
    %532 = arith.negf %531 : vector<2x32xf32>
    %533 = math.exp %532 : vector<2x32xf32>
    %cst_176 = arith.constant 1.000000e+00 : f32
    %534 = vector.broadcast %cst_176 : f32 to vector<2x32xf32>
    %535 = arith.addf %534, %533 : vector<2x32xf32>
    %536 = arith.divf %534, %535 : vector<2x32xf32>
    %537 = vector.extract_strided_slice %530 {offsets = [0, 32], sizes = [2, 32], strides = [1, 1]} : vector<2x128xf32> to vector<2x32xf32>
    %538 = arith.negf %537 : vector<2x32xf32>
    %539 = math.exp %538 : vector<2x32xf32>
    %cst_177 = arith.constant 1.000000e+00 : f32
    %540 = vector.broadcast %cst_177 : f32 to vector<2x32xf32>
    %541 = arith.addf %540, %539 : vector<2x32xf32>
    %542 = arith.divf %540, %541 : vector<2x32xf32>
    %543 = vector.extract_strided_slice %530 {offsets = [0, 64], sizes = [2, 32], strides = [1, 1]} : vector<2x128xf32> to vector<2x32xf32>
    %544 = math.tanh %543 : vector<2x32xf32>
    %545 = vector.extract_strided_slice %530 {offsets = [0, 96], sizes = [2, 32], strides = [1, 1]} : vector<2x128xf32> to vector<2x32xf32>
    %546 = arith.negf %545 : vector<2x32xf32>
    %547 = math.exp %546 : vector<2x32xf32>
    %cst_178 = arith.constant 1.000000e+00 : f32
    %548 = vector.broadcast %cst_178 : f32 to vector<2x32xf32>
    %549 = arith.addf %548, %547 : vector<2x32xf32>
    %550 = arith.divf %548, %549 : vector<2x32xf32>
    %551 = arith.mulf %542, %511 : vector<2x32xf32>
    %552 = arith.mulf %536, %544 : vector<2x32xf32>
    %553 = arith.addf %551, %552 : vector<2x32xf32>
    %554 = math.tanh %553 : vector<2x32xf32>
    %555 = arith.mulf %550, %554 : vector<2x32xf32>
    %556 = vector.extract_strided_slice %555 {offsets = [0, 0], sizes = [1, 32], strides = [1, 1]} : vector<2x32xf32> to vector<1x32xf32>
    %c0_i32_179 = arith.constant 0 : i32
    %557 = arith.addi %c0_i32_179, %c4_i32_170 : i32
    %558 = arith.index_cast %557 : i32 to index
    %c0_180 = arith.constant 0 : index
    %559 = vector.load %arg11[%558, %c0_180] : memref<16x32xf32, #tpu.memory_space<vmem>>, vector<1x32xf32>
    tpu.vector_store %arg11[%558, %c0_180], %556 {strides = array<i32>} : memref<16x32xf32, #tpu.memory_space<vmem>>, vector<1x32xf32>,
    %560 = vector.extract_strided_slice %555 {offsets = [1, 0], sizes = [1, 32], strides = [1, 1]} : vector<2x32xf32> to vector<1x32xf32>
    %c8_i32_181 = arith.constant 8 : i32
    %561 = arith.addi %c8_i32_181, %c4_i32_170 : i32
    %562 = arith.index_cast %561 : i32 to index
    %c0_182 = arith.constant 0 : index
    %563 = vector.load %arg11[%562, %c0_182] : memref<16x32xf32, #tpu.memory_space<vmem>>, vector<1x32xf32>
    tpu.vector_store %arg11[%562, %c0_182], %560 {strides = array<i32>} : memref<16x32xf32, #tpu.memory_space<vmem>>, vector<1x32xf32>,
    %c5_i32_183 = arith.constant 5 : i32
    %c0_i32_184 = arith.constant 0 : i32
    %564 = arith.addi %c0_i32_184, %c5_i32_183 : i32
    %565 = arith.index_cast %564 : i32 to index
    %c0_185 = arith.constant 0 : index
    %566 = vector.load %arg10[%565, %c0_185] : memref<16x128xf32, #tpu.memory_space<vmem>>, vector<1x128xf32>
    %c8_i32_186 = arith.constant 8 : i32
    %567 = arith.addi %c8_i32_186, %c5_i32_183 : i32
    %568 = arith.index_cast %567 : i32 to index
    %c0_187 = arith.constant 0 : index
    %569 = vector.load %arg10[%568, %c0_187] : memref<16x128xf32, #tpu.memory_space<vmem>>, vector<1x128xf32>
    %570 = tpu.concatenate %566, %569 in 0 : vector<1x128xf32>, vector<1x128xf32> -> vector<2x128xf32>
    %cst_188 = arith.constant dense<0.000000e+00> : vector<2x128xf32>
    %571 = tpu.matmul %555, %352, %cst_188 {dimension_numbers = #tpu.dot_dimension_numbers<[1], [0], [0], [1], [0, 0, 1, 1], [], []>} : vector<2x32xf32>, vector<32x128xf32>, vector<2x128xf32> -> vector<2x128xf32>
    %572 = arith.addf %570, %571 : vector<2x128xf32>
    %573 = vector.extract_strided_slice %572 {offsets = [0, 0], sizes = [2, 32], strides = [1, 1]} : vector<2x128xf32> to vector<2x32xf32>
    %574 = arith.negf %573 : vector<2x32xf32>
    %575 = math.exp %574 : vector<2x32xf32>
    %cst_189 = arith.constant 1.000000e+00 : f32
    %576 = vector.broadcast %cst_189 : f32 to vector<2x32xf32>
    %577 = arith.addf %576, %575 : vector<2x32xf32>
    %578 = arith.divf %576, %577 : vector<2x32xf32>
    %579 = vector.extract_strided_slice %572 {offsets = [0, 32], sizes = [2, 32], strides = [1, 1]} : vector<2x128xf32> to vector<2x32xf32>
    %580 = arith.negf %579 : vector<2x32xf32>
    %581 = math.exp %580 : vector<2x32xf32>
    %cst_190 = arith.constant 1.000000e+00 : f32
    %582 = vector.broadcast %cst_190 : f32 to vector<2x32xf32>
    %583 = arith.addf %582, %581 : vector<2x32xf32>
    %584 = arith.divf %582, %583 : vector<2x32xf32>
    %585 = vector.extract_strided_slice %572 {offsets = [0, 64], sizes = [2, 32], strides = [1, 1]} : vector<2x128xf32> to vector<2x32xf32>
    %586 = math.tanh %585 : vector<2x32xf32>
    %587 = vector.extract_strided_slice %572 {offsets = [0, 96], sizes = [2, 32], strides = [1, 1]} : vector<2x128xf32> to vector<2x32xf32>
    %588 = arith.negf %587 : vector<2x32xf32>
    %589 = math.exp %588 : vector<2x32xf32>
    %cst_191 = arith.constant 1.000000e+00 : f32
    %590 = vector.broadcast %cst_191 : f32 to vector<2x32xf32>
    %591 = arith.addf %590, %589 : vector<2x32xf32>
    %592 = arith.divf %590, %591 : vector<2x32xf32>
    %593 = arith.mulf %584, %553 : vector<2x32xf32>
    %594 = arith.mulf %578, %586 : vector<2x32xf32>
    %595 = arith.addf %593, %594 : vector<2x32xf32>
    %596 = math.tanh %595 : vector<2x32xf32>
    %597 = arith.mulf %592, %596 : vector<2x32xf32>
    %598 = vector.extract_strided_slice %597 {offsets = [0, 0], sizes = [1, 32], strides = [1, 1]} : vector<2x32xf32> to vector<1x32xf32>
    %c0_i32_192 = arith.constant 0 : i32
    %599 = arith.addi %c0_i32_192, %c5_i32_183 : i32
    %600 = arith.index_cast %599 : i32 to index
    %c0_193 = arith.constant 0 : index
    %601 = vector.load %arg11[%600, %c0_193] : memref<16x32xf32, #tpu.memory_space<vmem>>, vector<1x32xf32>
    tpu.vector_store %arg11[%600, %c0_193], %598 {strides = array<i32>} : memref<16x32xf32, #tpu.memory_space<vmem>>, vector<1x32xf32>,
    %602 = vector.extract_strided_slice %597 {offsets = [1, 0], sizes = [1, 32], strides = [1, 1]} : vector<2x32xf32> to vector<1x32xf32>
    %c8_i32_194 = arith.constant 8 : i32
    %603 = arith.addi %c8_i32_194, %c5_i32_183 : i32
    %604 = arith.index_cast %603 : i32 to index
    %c0_195 = arith.constant 0 : index
    %605 = vector.load %arg11[%604, %c0_195] : memref<16x32xf32, #tpu.memory_space<vmem>>, vector<1x32xf32>
    tpu.vector_store %arg11[%604, %c0_195], %602 {strides = array<i32>} : memref<16x32xf32, #tpu.memory_space<vmem>>, vector<1x32xf32>,
    %c6_i32_196 = arith.constant 6 : i32
    %c0_i32_197 = arith.constant 0 : i32
    %606 = arith.addi %c0_i32_197, %c6_i32_196 : i32
    %607 = arith.index_cast %606 : i32 to index
    %c0_198 = arith.constant 0 : index
    %608 = vector.load %arg10[%607, %c0_198] : memref<16x128xf32, #tpu.memory_space<vmem>>, vector<1x128xf32>
    %c8_i32_199 = arith.constant 8 : i32
    %609 = arith.addi %c8_i32_199, %c6_i32_196 : i32
    %610 = arith.index_cast %609 : i32 to index
    %c0_200 = arith.constant 0 : index
    %611 = vector.load %arg10[%610, %c0_200] : memref<16x128xf32, #tpu.memory_space<vmem>>, vector<1x128xf32>
    %612 = tpu.concatenate %608, %611 in 0 : vector<1x128xf32>, vector<1x128xf32> -> vector<2x128xf32>
    %cst_201 = arith.constant dense<0.000000e+00> : vector<2x128xf32>
    %613 = tpu.matmul %597, %352, %cst_201 {dimension_numbers = #tpu.dot_dimension_numbers<[1], [0], [0], [1], [0, 0, 1, 1], [], []>} : vector<2x32xf32>, vector<32x128xf32>, vector<2x128xf32> -> vector<2x128xf32>
    %614 = arith.addf %612, %613 : vector<2x128xf32>
    %615 = vector.extract_strided_slice %614 {offsets = [0, 0], sizes = [2, 32], strides = [1, 1]} : vector<2x128xf32> to vector<2x32xf32>
    %616 = arith.negf %615 : vector<2x32xf32>
    %617 = math.exp %616 : vector<2x32xf32>
    %cst_202 = arith.constant 1.000000e+00 : f32
    %618 = vector.broadcast %cst_202 : f32 to vector<2x32xf32>
    %619 = arith.addf %618, %617 : vector<2x32xf32>
    %620 = arith.divf %618, %619 : vector<2x32xf32>
    %621 = vector.extract_strided_slice %614 {offsets = [0, 32], sizes = [2, 32], strides = [1, 1]} : vector<2x128xf32> to vector<2x32xf32>
    %622 = arith.negf %621 : vector<2x32xf32>
    %623 = math.exp %622 : vector<2x32xf32>
    %cst_203 = arith.constant 1.000000e+00 : f32
    %624 = vector.broadcast %cst_203 : f32 to vector<2x32xf32>
    %625 = arith.addf %624, %623 : vector<2x32xf32>
    %626 = arith.divf %624, %625 : vector<2x32xf32>
    %627 = vector.extract_strided_slice %614 {offsets = [0, 64], sizes = [2, 32], strides = [1, 1]} : vector<2x128xf32> to vector<2x32xf32>
    %628 = math.tanh %627 : vector<2x32xf32>
    %629 = vector.extract_strided_slice %614 {offsets = [0, 96], sizes = [2, 32], strides = [1, 1]} : vector<2x128xf32> to vector<2x32xf32>
    %630 = arith.negf %629 : vector<2x32xf32>
    %631 = math.exp %630 : vector<2x32xf32>
    %cst_204 = arith.constant 1.000000e+00 : f32
    %632 = vector.broadcast %cst_204 : f32 to vector<2x32xf32>
    %633 = arith.addf %632, %631 : vector<2x32xf32>
    %634 = arith.divf %632, %633 : vector<2x32xf32>
    %635 = arith.mulf %626, %595 : vector<2x32xf32>
    %636 = arith.mulf %620, %628 : vector<2x32xf32>
    %637 = arith.addf %635, %636 : vector<2x32xf32>
    %638 = math.tanh %637 : vector<2x32xf32>
    %639 = arith.mulf %634, %638 : vector<2x32xf32>
    %640 = vector.extract_strided_slice %639 {offsets = [0, 0], sizes = [1, 32], strides = [1, 1]} : vector<2x32xf32> to vector<1x32xf32>
    %c0_i32_205 = arith.constant 0 : i32
    %641 = arith.addi %c0_i32_205, %c6_i32_196 : i32
    %642 = arith.index_cast %641 : i32 to index
    %c0_206 = arith.constant 0 : index
    %643 = vector.load %arg11[%642, %c0_206] : memref<16x32xf32, #tpu.memory_space<vmem>>, vector<1x32xf32>
    tpu.vector_store %arg11[%642, %c0_206], %640 {strides = array<i32>} : memref<16x32xf32, #tpu.memory_space<vmem>>, vector<1x32xf32>,
    %644 = vector.extract_strided_slice %639 {offsets = [1, 0], sizes = [1, 32], strides = [1, 1]} : vector<2x32xf32> to vector<1x32xf32>
    %c8_i32_207 = arith.constant 8 : i32
    %645 = arith.addi %c8_i32_207, %c6_i32_196 : i32
    %646 = arith.index_cast %645 : i32 to index
    %c0_208 = arith.constant 0 : index
    %647 = vector.load %arg11[%646, %c0_208] : memref<16x32xf32, #tpu.memory_space<vmem>>, vector<1x32xf32>
    tpu.vector_store %arg11[%646, %c0_208], %644 {strides = array<i32>} : memref<16x32xf32, #tpu.memory_space<vmem>>, vector<1x32xf32>,
    %c7_i32_209 = arith.constant 7 : i32
    %c0_i32_210 = arith.constant 0 : i32
    %648 = arith.addi %c0_i32_210, %c7_i32_209 : i32
    %649 = arith.index_cast %648 : i32 to index
    %c0_211 = arith.constant 0 : index
    %650 = vector.load %arg10[%649, %c0_211] : memref<16x128xf32, #tpu.memory_space<vmem>>, vector<1x128xf32>
    %c8_i32_212 = arith.constant 8 : i32
    %651 = arith.addi %c8_i32_212, %c7_i32_209 : i32
    %652 = arith.index_cast %651 : i32 to index
    %c0_213 = arith.constant 0 : index
    %653 = vector.load %arg10[%652, %c0_213] : memref<16x128xf32, #tpu.memory_space<vmem>>, vector<1x128xf32>
    %654 = tpu.concatenate %650, %653 in 0 : vector<1x128xf32>, vector<1x128xf32> -> vector<2x128xf32>
    %cst_214 = arith.constant dense<0.000000e+00> : vector<2x128xf32>
    %655 = tpu.matmul %639, %352, %cst_214 {dimension_numbers = #tpu.dot_dimension_numbers<[1], [0], [0], [1], [0, 0, 1, 1], [], []>} : vector<2x32xf32>, vector<32x128xf32>, vector<2x128xf32> -> vector<2x128xf32>
    %656 = arith.addf %654, %655 : vector<2x128xf32>
    %657 = vector.extract_strided_slice %656 {offsets = [0, 0], sizes = [2, 32], strides = [1, 1]} : vector<2x128xf32> to vector<2x32xf32>
    %658 = arith.negf %657 : vector<2x32xf32>
    %659 = math.exp %658 : vector<2x32xf32>
    %cst_215 = arith.constant 1.000000e+00 : f32
    %660 = vector.broadcast %cst_215 : f32 to vector<2x32xf32>
    %661 = arith.addf %660, %659 : vector<2x32xf32>
    %662 = arith.divf %660, %661 : vector<2x32xf32>
    %663 = vector.extract_strided_slice %656 {offsets = [0, 32], sizes = [2, 32], strides = [1, 1]} : vector<2x128xf32> to vector<2x32xf32>
    %664 = arith.negf %663 : vector<2x32xf32>
    %665 = math.exp %664 : vector<2x32xf32>
    %cst_216 = arith.constant 1.000000e+00 : f32
    %666 = vector.broadcast %cst_216 : f32 to vector<2x32xf32>
    %667 = arith.addf %666, %665 : vector<2x32xf32>
    %668 = arith.divf %666, %667 : vector<2x32xf32>
    %669 = vector.extract_strided_slice %656 {offsets = [0, 64], sizes = [2, 32], strides = [1, 1]} : vector<2x128xf32> to vector<2x32xf32>
    %670 = math.tanh %669 : vector<2x32xf32>
    %671 = vector.extract_strided_slice %656 {offsets = [0, 96], sizes = [2, 32], strides = [1, 1]} : vector<2x128xf32> to vector<2x32xf32>
    %672 = arith.negf %671 : vector<2x32xf32>
    %673 = math.exp %672 : vector<2x32xf32>
    %cst_217 = arith.constant 1.000000e+00 : f32
    %674 = vector.broadcast %cst_217 : f32 to vector<2x32xf32>
    %675 = arith.addf %674, %673 : vector<2x32xf32>
    %676 = arith.divf %674, %675 : vector<2x32xf32>
    %677 = arith.mulf %668, %637 : vector<2x32xf32>
    %678 = arith.mulf %662, %670 : vector<2x32xf32>
    %679 = arith.addf %677, %678 : vector<2x32xf32>
    %680 = math.tanh %679 : vector<2x32xf32>
    %681 = arith.mulf %676, %680 : vector<2x32xf32>
    %682 = vector.extract_strided_slice %681 {offsets = [0, 0], sizes = [1, 32], strides = [1, 1]} : vector<2x32xf32> to vector<1x32xf32>
    %c0_i32_218 = arith.constant 0 : i32
    %683 = arith.addi %c0_i32_218, %c7_i32_209 : i32
    %684 = arith.index_cast %683 : i32 to index
    %c0_219 = arith.constant 0 : index
    %685 = vector.load %arg11[%684, %c0_219] : memref<16x32xf32, #tpu.memory_space<vmem>>, vector<1x32xf32>
    tpu.vector_store %arg11[%684, %c0_219], %682 {strides = array<i32>} : memref<16x32xf32, #tpu.memory_space<vmem>>, vector<1x32xf32>,
    %686 = vector.extract_strided_slice %681 {offsets = [1, 0], sizes = [1, 32], strides = [1, 1]} : vector<2x32xf32> to vector<1x32xf32>
    %c8_i32_220 = arith.constant 8 : i32
    %687 = arith.addi %c8_i32_220, %c7_i32_209 : i32
    %688 = arith.index_cast %687 : i32 to index
    %c0_221 = arith.constant 0 : index
    %689 = vector.load %arg11[%688, %c0_221] : memref<16x32xf32, #tpu.memory_space<vmem>>, vector<1x32xf32>
    tpu.vector_store %arg11[%688, %c0_221], %686 {strides = array<i32>} : memref<16x32xf32, #tpu.memory_space<vmem>>, vector<1x32xf32>,
    %c8_i32_222 = arith.constant 8 : i32
    %c0_223 = arith.constant 0 : index
    %c0_224 = arith.constant 0 : index
    %690 = vector.load %arg11[%c0_223, %c0_224] : memref<16x32xf32, #tpu.memory_space<vmem>>, vector<16x32xf32>
    %c0_225 = arith.constant 0 : index
    %c0_226 = arith.constant 0 : index
    %691 = vector.load %arg7[%c0_225, %c0_226] : memref<32x16xf32, #tpu.memory_space<vmem>>, vector<32x16xf32>
    %cst_227 = arith.constant dense<0.000000e+00> : vector<16x16xf32>
    %692 = tpu.matmul %690, %691, %cst_227 {dimension_numbers = #tpu.dot_dimension_numbers<[1], [0], [0], [1], [0, 0, 1, 1], [], []>} : vector<16x32xf32>, vector<32x16xf32>, vector<16x16xf32> -> vector<16x16xf32>
    %c0_228 = arith.constant 0 : index
    %c0_229 = arith.constant 0 : index
    %693 = vector.load %arg8[%c0_228, %c0_229] : memref<1x16xf32, #tpu.memory_space<vmem>>, vector<1x16xf32>
    %694 = vector.broadcast %693 : vector<1x16xf32> to vector<16x16xf32>
    %695 = arith.addf %692, %694 : vector<16x16xf32>
    %c0_230 = arith.constant 0 : index
    %c0_231 = arith.constant 0 : index
    %696 = vector.load %arg9[%c0_230, %c0_231] : memref<16x16xf32, #tpu.memory_space<vmem>>, vector<16x16xf32>
    tpu.vector_store %arg9[%c0_230, %c0_231], %695 {strides = array<i32>} : memref<16x16xf32, #tpu.memory_space<vmem>>, vector<16x16xf32>,
    return
  }
}

</mosaic_0001>

<llo_original>
// kernel: lstm_forward.1
$region0: #{lstm_forward.1}
  #allocation0 [shape = 'u32[]', space=smem, size = 0x4, offset = 0x4, fixed_abs, tag = 'smem constant byte address 0x4 - core index']
  #allocation1 [shape = 'u32[144,128]{1,0:T(1,128)}', space=vmem, size = 0x12000, scoped, tag = 'internal scratch']
  #allocation2 [shape = 'f32[16,128]{1,0:T(8,128)}', space=vmem, size = 0x2000, scoped, tag = 'scratch operand']
  #allocation3 [shape = 'f32[16,32]{1,0:T(8,128)}', space=vmem, size = 0x2000, scoped, tag = 'scratch operand']
  %s0 = inlined_call_operand.vmem [shape: f32[16,16], index: 0, kind: input, shape index: {}]
  %s1 = inlined_call_operand.hbm [shape: f32[16,128], index: 1, kind: input, shape index: {}]
  %s2 = inlined_call_operand.vmem [shape: f32[32,128], index: 2, kind: input, shape index: {}]
  %s3 = inlined_call_operand.vmem [shape: f32[1,128], index: 3, kind: input, shape index: {}]
  %s4 = inlined_call_operand.hbm [shape: f32[32,128], index: 4, kind: input, shape index: {}]
  %s5 = inlined_call_operand.hbm [shape: f32[32,128], index: 5, kind: input, shape index: {}]
  %s6 = inlined_call_operand.vmem [shape: f32[1,128], index: 6, kind: input, shape index: {}]
  %s7 = inlined_call_operand.vmem [shape: f32[32,16], index: 7, kind: input, shape index: {}]
  %s8 = inlined_call_operand.vmem [shape: f32[1,16], index: 8, kind: input, shape index: {}]
  %s9 = inlined_call_operand.hbm [shape: f32[16,16], index: 9, kind: output, shape index: {}]
  %s10 = sld [smem:[#allocation0]]
  $region58: #{lstm_forward.1} parent=0
    _
  %s12 = ssub.s32 1, %s10
  %s13 = scalar_select 0, %s12, %s10
  $region1: #{lstm_forward.1} parent=0
    #allocation4 [shape = 'u8[8192]{0}', space=vmem, size = 0x2000, scoped, tag = 'input window, operand 1, single buffered']
    #allocation5 [shape = 's32[1]{0}', space=sflag, size = 0x4, scoped, tag = 'scoped memory for lstm_forward.1']
    #allocation6 [shape = 's32[1]{0}', space=sflag, size = 0x4, scoped, tag = 'scoped memory for lstm_forward.1']
    #allocation7 [shape = 'u8[16384]{0}', space=vmem, size = 0x4000, scoped, tag = 'input window, operand 4, single buffered']
    #allocation8 [shape = 's32[1]{0}', space=sflag, size = 0x4, scoped, tag = 'scoped memory for lstm_forward.1']
    #allocation9 [shape = 'u8[16384]{0}', space=vmem, size = 0x4000, scoped, tag = 'input window, operand 5, single buffered']
    #allocation10 [shape = 'u8[8192]{0}', space=vmem, size = 0x2000, scoped, tag = 'output window, operand 0, single buffered']
    %14 = vsyncpa [#allocation5], 0
    %15 = vsyncpa [#allocation8], 0
    %16 = vsyncpa [#allocation6], 0
    // Predicated region
    $region2: #{lstm_forward.1} parent=1 // pred_check
      _
    $region3: #{lstm_forward.1} parent=1 // pred_check_branch
      %18 = sbr.rel (0) target = $region5
    $region4: #{lstm_forward.1} parent=1 // pred_region
      _
    $region5: #{lstm_forward.1} parent=1 // pred_fallthru
      _
    // Predicated region
    $region6: #{lstm_forward.1} parent=1 // pred_check
      _
    $region7: #{lstm_forward.1} parent=1 // pred_check_branch
      %20 = sbr.rel (0) target = $region9
    $region8: #{lstm_forward.1} parent=1 // pred_region
      %s22 = ssub.s32 256, 256
      %23 = vsyncadd [#allocation5], %s22
      %s24 = sshll.u32 [#allocation4], 4
      %s25 = int_to_ptr.vmem [resolvable:$true] %s24
      %30 = dma.hbm_to_vmem [thread:$0]  %s1, 256, %s25, [#allocation5], 128, 128, 8
    $region9: #{lstm_forward.1} parent=1 // pred_fallthru
      _
    // Predicated region
    $region10: #{lstm_forward.1} parent=1 // pred_check
      _
    $region11: #{lstm_forward.1} parent=1 // pred_check_branch
      %32 = sbr.rel (0) target = $region13
    $region12: #{lstm_forward.1} parent=1 // pred_region
      _
    $region13: #{lstm_forward.1} parent=1 // pred_fallthru
      _
    // Predicated region
    $region14: #{lstm_forward.1} parent=1 // pred_check
      _
    $region15: #{lstm_forward.1} parent=1 // pred_check_branch
      %34 = sbr.rel (0) target = $region17
    $region16: #{lstm_forward.1} parent=1 // pred_region
      _
    $region17: #{lstm_forward.1} parent=1 // pred_fallthru
      _
    // Predicated region
    $region18: #{lstm_forward.1} parent=1 // pred_check
      _
    $region19: #{lstm_forward.1} parent=1 // pred_check_branch
      %36 = sbr.rel (0) target = $region21
    $region20: #{lstm_forward.1} parent=1 // pred_region
      %s38 = ssub.s32 512, 512
      %39 = vsyncadd [#allocation8], %s38
      %s40 = sshll.u32 [#allocation7], 4
      %s41 = int_to_ptr.vmem [resolvable:$true] %s40
      %46 = dma.hbm_to_vmem [thread:$0]  %s4, 512, %s41, [#allocation8], 128, 128, 8
    $region21: #{lstm_forward.1} parent=1 // pred_fallthru
      _
    // Predicated region
    $region22: #{lstm_forward.1} parent=1 // pred_check
      _
    $region23: #{lstm_forward.1} parent=1 // pred_check_branch
      %48 = sbr.rel (0) target = $region25
    $region24: #{lstm_forward.1} parent=1 // pred_region
      %s50 = ssub.s32 512, 512
      %51 = vsyncadd [#allocation8], %s50
      %s52 = sshll.u32 [#allocation9], 4
      %s53 = int_to_ptr.vmem [resolvable:$true] %s52
      %58 = dma.hbm_to_vmem [thread:$0]  %s5, 512, %s53, [#allocation8], 128, 128, 8
    $region25: #{lstm_forward.1} parent=1 // pred_fallthru
      _
    // Predicated region
    $region26: #{lstm_forward.1} parent=1 // pred_check
      _
    $region27: #{lstm_forward.1} parent=1 // pred_check_branch
      %60 = sbr.rel (0) target = $region29
    $region28: #{lstm_forward.1} parent=1 // pred_region
      _
    $region29: #{lstm_forward.1} parent=1 // pred_fallthru
      _
    // Predicated region
    $region30: #{lstm_forward.1} parent=1 // pred_check
      _
    $region31: #{lstm_forward.1} parent=1 // pred_check_branch
      %62 = sbr.rel (0) target = $region33
    $region32: #{lstm_forward.1} parent=1 // pred_region
      _
    $region33: #{lstm_forward.1} parent=1 // pred_fallthru
      _
    // Predicated region
    $region34: #{lstm_forward.1} parent=1 // pred_check
      _
    $region35: #{lstm_forward.1} parent=1 // pred_check_branch
      %64 = sbr.rel (0) target = $region37
    $region36: #{lstm_forward.1} parent=1 // pred_region
      _
    $region37: #{lstm_forward.1} parent=1 // pred_fallthru
      _
    // Predicated region
    $region38: #{lstm_forward.1} parent=1 // pred_check
      _
    $region39: #{lstm_forward.1} parent=1 // pred_check_branch
      %66 = sbr.rel (0) target = $region41
    $region40: #{lstm_forward.1} parent=1 // pred_region
      %67 = dma.done [#allocation5], 256
    $region41: #{lstm_forward.1} parent=1 // pred_fallthru
      _
    // Predicated region
    $region42: #{lstm_forward.1} parent=1 // pred_check
      _
    $region43: #{lstm_forward.1} parent=1 // pred_check_branch
      %69 = sbr.rel (0) target = $region45
    $region44: #{lstm_forward.1} parent=1 // pred_region
      %70 = dma.done [#allocation8], 512
    $region45: #{lstm_forward.1} parent=1 // pred_fallthru
      _
    // Predicated region
    $region46: #{lstm_forward.1} parent=1 // pred_check
      _
    $region47: #{lstm_forward.1} parent=1 // pred_check_branch
      %72 = sbr.rel (0) target = $region49
    $region48: #{lstm_forward.1} parent=1 // pred_region
      %73 = dma.done [#allocation8], 512
    $region49: #{lstm_forward.1} parent=1 // pred_fallthru
      _
    %v74 = vld [vmem:[%s0] sm:$0xff]
    %v75 = vld [vmem:[%s0 + $0x8] sm:$0xff]
    %v76 = vld [vmem:[#allocation4] sm:$0xff]
    %v77 = vld [vmem:[#allocation4 + $0x8] sm:$0xff]
    %v78 = vld [vmem:[%s3] sm:$0x1]
    %v80 = vlaneseq
    %v81 = vshrl.u32 %v80, 7
    %v82 = vsub.s32 0, %v81
    %v83 = vrot.slane %v78, %v82
    %vm85 = vcmask 130048
    %v87 = vsel %vm85, %v74, 0
    %v90 = vsel %vm85, %v75, 0
    %92 = vmatprep.subr.mxu0 0.0
    %93 = vmatpush1.msra.mxu0 0.0
    %94 = vmatprep.subr.mxu0 0.0
    %95 = vmatpush1.msra.mxu0 0.0
    %96 = vmatprep.subr.mxu0 0.0
    %97 = vmatpush1.msra.mxu0 0.0
    %98 = vmatprep.subr.mxu0 0.0
    %99 = vmatpush1.msra.mxu0 0.0
    %100 = vmatprep.subr.mxu0 0.0
    %101 = vmatpush1.msra.mxu0 0.0
    %102 = vmatprep.subr.mxu0 0.0
    %103 = vmatpush1.msra.mxu0 0.0
    %104 = vmatprep.subr.mxu0 0.0
    %105 = vmatpush1.msra.mxu0 0.0
    %106 = vmatprep.subr.mxu0 0.0
    %107 = vmatpush1.msra.mxu0 0.0
    %108 = vmatprep.subr.mxu0 0.0
    %109 = vmatpush1.msra.mxu0 0.0
    %110 = vmatprep.subr.mxu0 0.0
    %111 = vmatpush1.msra.mxu0 0.0
    %112 = vmatprep.subr.mxu0 0.0
    %113 = vmatpush1.msra.mxu0 0.0
    %114 = vmatprep.subr.mxu0 0.0
    %115 = vmatpush1.msra.mxu0 0.0
    %116 = vmatprep.subr.mxu0 0.0
    %117 = vmatpush1.msra.mxu0 0.0
    %118 = vmatprep.subr.mxu0 0.0
    %119 = vmatpush1.msra.mxu0 0.0
    %120 = vmatprep.subr.mxu0 0.0
    %121 = vmatpush1.msra.mxu0 %v77
    %122 = vmatprep.subr.mxu0 0.0
    %123 = vmatpush1.msra.mxu0 %v76
    %124 = vmatprep.subr.mxu0 0.0
    %125 = vmatpush2.msra.mxu0 0.0
    %126 = vmatprep.subr.mxu0 0.0
    %127 = vmatpush2.msra.mxu0 0.0
    %128 = vmatprep.subr.mxu0 0.0
    %129 = vmatpush2.msra.mxu0 0.0
    %130 = vmatprep.subr.mxu0 0.0
    %131 = vmatpush2.msra.mxu0 0.0
    %132 = vmatprep.subr.mxu0 0.0
    %133 = vmatpush2.msra.mxu0 0.0
    %134 = vmatprep.subr.mxu0 0.0
    %135 = vmatpush2.msra.mxu0 0.0
    %136 = vmatprep.subr.mxu0 0.0
    %137 = vmatpush2.msra.mxu0 0.0
    %138 = vmatprep.subr.mxu0 0.0
    %139 = vmatpush2.msra.mxu0 0.0
    %140 = vmatprep.subr.mxu0 0.0
    %141 = vmatpush2.msra.mxu0 0.0
    %142 = vmatprep.subr.mxu0 0.0
    %143 = vmatpush2.msra.mxu0 0.0
    %144 = vmatprep.subr.mxu0 0.0
    %145 = vmatpush2.msra.mxu0 0.0
    %146 = vmatprep.subr.mxu0 0.0
    %147 = vmatpush2.msra.mxu0 0.0
    %148 = vmatprep.subr.mxu0 0.0
    %149 = vmatpush2.msra.mxu0 0.0
    %150 = vmatprep.subr.mxu0 0.0
    %151 = vmatpush2.msra.mxu0 0.0
    %152 = vmatprep.subr.mxu0 0.0
    %153 = vmatpush2.msra.mxu0 0.0
    %154 = vmatprep.subr.mxu0 0.0
    %155 = vmatpush2.msra.mxu0 0.0
    %156 = vmatprep.mubr.f32.mxu0 0.0
    %157 = vmatmul.mubr.f32.gmra.mxu0 %v87
    %v158 = vpop.f32.mrf.mxu0
    %v159 = vadd.f32 %v83, %v158
    %v160 = vpop.f32.mrf.mxu0
    %161 = vmatprep.mubr.f32.mxu0 0.0
    %162 = vmatmul.mubr.f32.gmra.mxu0 %v90
    %v163 = vpop.f32.mrf.mxu0
    %v164 = vadd.f32 %v83, %v163
    %v165 = vpop.f32.mrf.mxu0
    %166 = vdwg.mxu0
    %167 = vst [vmem:[#allocation2] sm:$0xff] %v159
    %168 = vst [vmem:[#allocation2 + $0x8] sm:$0xff] %v164
    %v169 = vld [vmem:[%s2] sm:$0xff]
    %v170 = vld [vmem:[%s2 + $0x8] sm:$0xff]
    %v171 = vld [vmem:[%s2 + $0x10] sm:$0xff]
    %v172 = vld [vmem:[%s2 + $0x18] sm:$0xff]
    %v173 = vld [vmem:[#allocation2] sm:$0x1]
    %v174 = vld [vmem:[#allocation2 + $0x8] sm:$0x1]
    %v176 = vrot.slane %v174, 7
    %vm178 = vcmask 1040384
    %v179 = vsel %vm178, %v173, %v176
    %vm180 = vcmask 261120
    %v182 = vsel %vm180, 0.0, 0
    %184 = vmatprep.subr.mxu0 0.0
    %185 = vmatpush1.msra.mxu0 0.0
    %186 = vmatprep.subr.mxu0 0.0
    %187 = vmatpush1.msra.mxu0 0.0
    %188 = vmatprep.subr.mxu0 0.0
    %189 = vmatpush1.msra.mxu0 0.0
    %190 = vmatprep.subr.mxu0 0.0
    %191 = vmatpush1.msra.mxu0 0.0
    %192 = vmatprep.subr.mxu0 0.0
    %193 = vmatpush1.msra.mxu0 0.0
    %194 = vmatprep.subr.mxu0 0.0
    %195 = vmatpush1.msra.mxu0 0.0
    %196 = vmatprep.subr.mxu0 0.0
    %197 = vmatpush1.msra.mxu0 0.0
    %198 = vmatprep.subr.mxu0 0.0
    %199 = vmatpush1.msra.mxu0 0.0
    %200 = vmatprep.subr.mxu0 0.0
    %201 = vmatpush1.msra.mxu0 0.0
    %202 = vmatprep.subr.mxu0 0.0
    %203 = vmatpush1.msra.mxu0 0.0
    %204 = vmatprep.subr.mxu0 0.0
    %205 = vmatpush1.msra.mxu0 0.0
    %206 = vmatprep.subr.mxu0 0.0
    %207 = vmatpush1.msra.mxu0 0.0
    %208 = vmatprep.subr.mxu0 0.0
    %209 = vmatpush1.msra.mxu0 %v172
    %210 = vmatprep.subr.mxu0 0.0
    %211 = vmatpush1.msra.mxu0 %v171
    %212 = vmatprep.subr.mxu0 0.0
    %213 = vmatpush1.msra.mxu0 %v170
    %214 = vmatprep.subr.mxu0 0.0
    %215 = vmatpush1.msra.mxu0 %v169
    %216 = vmatprep.subr.mxu0 0.0
    %217 = vmatpush2.msra.mxu0 0.0
    %218 = vmatprep.subr.mxu0 0.0
    %219 = vmatpush2.msra.mxu0 0.0
    %220 = vmatprep.subr.mxu0 0.0
    %221 = vmatpush2.msra.mxu0 0.0
    %222 = vmatprep.subr.mxu0 0.0
    %223 = vmatpush2.msra.mxu0 0.0
    %224 = vmatprep.subr.mxu0 0.0
    %225 = vmatpush2.msra.mxu0 0.0
    %226 = vmatprep.subr.mxu0 0.0
    %227 = vmatpush2.msra.mxu0 0.0
    %228 = vmatprep.subr.mxu0 0.0
    %229 = vmatpush2.msra.mxu0 0.0
    %230 = vmatprep.subr.mxu0 0.0
    %231 = vmatpush2.msra.mxu0 0.0
    %232 = vmatprep.subr.mxu0 0.0
    %233 = vmatpush2.msra.mxu0 0.0
    %234 = vmatprep.subr.mxu0 0.0
    %235 = vmatpush2.msra.mxu0 0.0
    %236 = vmatprep.subr.mxu0 0.0
    %237 = vmatpush2.msra.mxu0 0.0
    %238 = vmatprep.subr.mxu0 0.0
    %239 = vmatpush2.msra.mxu0 0.0
    %240 = vmatprep.subr.mxu0 0.0
    %241 = vmatpush2.msra.mxu0 0.0
    %242 = vmatprep.subr.mxu0 0.0
    %243 = vmatpush2.msra.mxu0 0.0
    %244 = vmatprep.subr.mxu0 0.0
    %245 = vmatpush2.msra.mxu0 0.0
    %246 = vmatprep.subr.mxu0 0.0
    %247 = vmatpush2.msra.mxu0 0.0
    %248 = vmatprep.mubr.f32.mxu0 0.0
    %249 = vmatmul.mubr.f32.gmra.mxu0 %v182
    %v250 = vpop.f32.mrf.mxu0
    %v251 = vadd.f32 0.0, %v250
    %v252 = vpop.f32.mrf.mxu0
    %253 = vdwg.mxu0
    %v254 = vadd.f32 %v179, %v251
    %v255 = vxor.u32 %v254, 2147483648
    %v256 = vmul.f32 %v255, 1.442695
    %v257 = vpow.pop %v256
    %v258 = vadd.f32 %v257, 1.0
    %v259 = vrcp.pop %v258
    %v260 = vmul.f32 1.0, %v259
    %v261 = vtanh.pop %v254
    %v262 = vmul.f32 %v260, 0.0
    %264 = vrot.lane.b32.xlu0 %v261, 64
    %v265 = vpop.permute.xlu0 %264
    %v267 = vmul.f32 %v260, %v265
    %269 = vrot.lane.b32.xlu0 %v267, 32
    %v270 = vpop.permute.xlu0 %269
    %v272 = vadd.f32 %v262, %v270
    %v273 = vtanh.pop %v272
    %275 = vrot.lane.b32.xlu0 %v273, 64
    %v276 = vpop.permute.xlu0 %275
    %v278 = vmul.f32 %v260, %v276
    %280 = vrot.lane.b32.xlu0 %v278, 32
    %v281 = vpop.permute.xlu0 %280
    %vm283 = vcmask 253952
    %284 = vst.msk [vmem:[#allocation3] sm:$0x1] %vm283, %v281
    %vm285 = vcmask 254977
    %286 = vst.msk [vmem:[#allocation3 + $0x7] sm:$0x2] %vm285, %v281
    %v287 = vld [vmem:[#allocation2 + $0x1] sm:$0x1]
    %v288 = vld [vmem:[#allocation2 + $0x9] sm:$0x1]
    %v290 = vrot.slane %v288, 7
    %v292 = vsel %vm178, %v287, %v290
    %v293 = vsel %vm180, %v281, 0
    %295 = vmatprep.subr.mxu0 0.0
    %296 = vmatpush1.msra.mxu0 0.0
    %297 = vmatprep.subr.mxu0 0.0
    %298 = vmatpush1.msra.mxu0 0.0
    %299 = vmatprep.subr.mxu0 0.0
    %300 = vmatpush1.msra.mxu0 0.0
    %301 = vmatprep.subr.mxu0 0.0
    %302 = vmatpush1.msra.mxu0 0.0
    %303 = vmatprep.subr.mxu0 0.0
    %304 = vmatpush1.msra.mxu0 0.0
    %305 = vmatprep.subr.mxu0 0.0
    %306 = vmatpush1.msra.mxu0 0.0
    %307 = vmatprep.subr.mxu0 0.0
    %308 = vmatpush1.msra.mxu0 0.0
    %309 = vmatprep.subr.mxu0 0.0
    %310 = vmatpush1.msra.mxu0 0.0
    %311 = vmatprep.subr.mxu0 0.0
    %312 = vmatpush1.msra.mxu0 0.0
    %313 = vmatprep.subr.mxu0 0.0
    %314 = vmatpush1.msra.mxu0 0.0
    %315 = vmatprep.subr.mxu0 0.0
    %316 = vmatpush1.msra.mxu0 0.0
    %317 = vmatprep.subr.mxu0 0.0
    %318 = vmatpush1.msra.mxu0 0.0
    %319 = vmatprep.subr.mxu0 0.0
    %320 = vmatpush1.msra.mxu0 %v172
    %321 = vmatprep.subr.mxu0 0.0
    %322 = vmatpush1.msra.mxu0 %v171
    %323 = vmatprep.subr.mxu0 0.0
    %324 = vmatpush1.msra.mxu0 %v170
    %325 = vmatprep.subr.mxu0 0.0
    %326 = vmatpush1.msra.mxu0 %v169
    %327 = vmatprep.subr.mxu0 0.0
    %328 = vmatpush2.msra.mxu0 0.0
    %329 = vmatprep.subr.mxu0 0.0
    %330 = vmatpush2.msra.mxu0 0.0
    %331 = vmatprep.subr.mxu0 0.0
    %332 = vmatpush2.msra.mxu0 0.0
    %333 = vmatprep.subr.mxu0 0.0
    %334 = vmatpush2.msra.mxu0 0.0
    %335 = vmatprep.subr.mxu0 0.0
    %336 = vmatpush2.msra.mxu0 0.0
    %337 = vmatprep.subr.mxu0 0.0
    %338 = vmatpush2.msra.mxu0 0.0
    %339 = vmatprep.subr.mxu0 0.0
    %340 = vmatpush2.msra.mxu0 0.0
    %341 = vmatprep.subr.mxu0 0.0
    %342 = vmatpush2.msra.mxu0 0.0
    %343 = vmatprep.subr.mxu0 0.0
    %344 = vmatpush2.msra.mxu0 0.0
    %345 = vmatprep.subr.mxu0 0.0
    %346 = vmatpush2.msra.mxu0 0.0
    %347 = vmatprep.subr.mxu0 0.0
    %348 = vmatpush2.msra.mxu0 0.0
    %349 = vmatprep.subr.mxu0 0.0
    %350 = vmatpush2.msra.mxu0 0.0
    %351 = vmatprep.subr.mxu0 0.0
    %352 = vmatpush2.msra.mxu0 0.0
    %353 = vmatprep.subr.mxu0 0.0
    %354 = vmatpush2.msra.mxu0 0.0
    %355 = vmatprep.subr.mxu0 0.0
    %356 = vmatpush2.msra.mxu0 0.0
    %357 = vmatprep.subr.mxu0 0.0
    %358 = vmatpush2.msra.mxu0 0.0
    %359 = vmatprep.mubr.f32.mxu0 0.0
    %360 = vmatmul.mubr.f32.gmra.mxu0 %v293
    %v361 = vpop.f32.mrf.mxu0
    %v362 = vadd.f32 0.0, %v361
    %v363 = vpop.f32.mrf.mxu0
    %364 = vdwg.mxu0
    %v365 = vadd.f32 %v292, %v362
    %v366 = vxor.u32 %v365, 2147483648
    %v367 = vmul.f32 %v366, 1.442695
    %v368 = vpow.pop %v367
    %v369 = vadd.f32 %v368, 1.0
    %v370 = vrcp.pop %v369
    %v371 = vmul.f32 1.0, %v370
    %v372 = vtanh.pop %v365
    %v373 = vmul.f32 %v371, %v272
    %375 = vrot.lane.b32.xlu0 %v372, 64
    %v376 = vpop.permute.xlu0 %375
    %v378 = vmul.f32 %v371, %v376
    %380 = vrot.lane.b32.xlu0 %v378, 32
    %v381 = vpop.permute.xlu0 %380
    %v383 = vadd.f32 %v373, %v381
    %v384 = vtanh.pop %v383
    %386 = vrot.lane.b32.xlu0 %v384, 64
    %v387 = vpop.permute.xlu0 %386
    %v389 = vmul.f32 %v371, %v387
    %391 = vrot.lane.b32.xlu0 %v389, 32
    %v392 = vpop.permute.xlu0 %391
    %394 = vst.msk [vmem:[#allocation3 + $0x1] sm:$0x1] %vm283, %v392
    %395 = vst.msk [vmem:[#allocation3 + $0x8] sm:$0x2] %vm285, %v392
    %v396 = vld [vmem:[#allocation2 + $0x2] sm:$0x1]
    %v397 = vld [vmem:[#allocation2 + $0xa] sm:$0x1]
    %v399 = vrot.slane %v397, 7
    %v401 = vsel %vm178, %v396, %v399
    %v402 = vsel %vm180, %v392, 0
    %404 = vmatprep.subr.mxu0 0.0
    %405 = vmatpush1.msra.mxu0 0.0
    %406 = vmatprep.subr.mxu0 0.0
    %407 = vmatpush1.msra.mxu0 0.0
    %408 = vmatprep.subr.mxu0 0.0
    %409 = vmatpush1.msra.mxu0 0.0
    %410 = vmatprep.subr.mxu0 0.0
    %411 = vmatpush1.msra.mxu0 0.0
    %412 = vmatprep.subr.mxu0 0.0
    %413 = vmatpush1.msra.mxu0 0.0
    %414 = vmatprep.subr.mxu0 0.0
    %415 = vmatpush1.msra.mxu0 0.0
    %416 = vmatprep.subr.mxu0 0.0
    %417 = vmatpush1.msra.mxu0 0.0
    %418 = vmatprep.subr.mxu0 0.0
    %419 = vmatpush1.msra.mxu0 0.0
    %420 = vmatprep.subr.mxu0 0.0
    %421 = vmatpush1.msra.mxu0 0.0
    %422 = vmatprep.subr.mxu0 0.0
    %423 = vmatpush1.msra.mxu0 0.0
    %424 = vmatprep.subr.mxu0 0.0
    %425 = vmatpush1.msra.mxu0 0.0
    %426 = vmatprep.subr.mxu0 0.0
    %427 = vmatpush1.msra.mxu0 0.0
    %428 = vmatprep.subr.mxu0 0.0
    %429 = vmatpush1.msra.mxu0 %v172
    %430 = vmatprep.subr.mxu0 0.0
    %431 = vmatpush1.msra.mxu0 %v171
    %432 = vmatprep.subr.mxu0 0.0
    %433 = vmatpush1.msra.mxu0 %v170
    %434 = vmatprep.subr.mxu0 0.0
    %435 = vmatpush1.msra.mxu0 %v169
    %436 = vmatprep.subr.mxu0 0.0
    %437 = vmatpush2.msra.mxu0 0.0
    %438 = vmatprep.subr.mxu0 0.0
    %439 = vmatpush2.msra.mxu0 0.0
    %440 = vmatprep.subr.mxu0 0.0
    %441 = vmatpush2.msra.mxu0 0.0
    %442 = vmatprep.subr.mxu0 0.0
    %443 = vmatpush2.msra.mxu0 0.0
    %444 = vmatprep.subr.mxu0 0.0
    %445 = vmatpush2.msra.mxu0 0.0
    %446 = vmatprep.subr.mxu0 0.0
    %447 = vmatpush2.msra.mxu0 0.0
    %448 = vmatprep.subr.mxu0 0.0
    %449 = vmatpush2.msra.mxu0 0.0
    %450 = vmatprep.subr.mxu0 0.0
    %451 = vmatpush2.msra.mxu0 0.0
    %452 = vmatprep.subr.mxu0 0.0
    %453 = vmatpush2.msra.mxu0 0.0
    %454 = vmatprep.subr.mxu0 0.0
    %455 = vmatpush2.msra.mxu0 0.0
    %456 = vmatprep.subr.mxu0 0.0
    %457 = vmatpush2.msra.mxu0 0.0
    %458 = vmatprep.subr.mxu0 0.0
    %459 = vmatpush2.msra.mxu0 0.0
    %460 = vmatprep.subr.mxu0 0.0
    %461 = vmatpush2.msra.mxu0 0.0
    %462 = vmatprep.subr.mxu0 0.0
    %463 = vmatpush2.msra.mxu0 0.0
    %464 = vmatprep.subr.mxu0 0.0
    %465 = vmatpush2.msra.mxu0 0.0
    %466 = vmatprep.subr.mxu0 0.0
    %467 = vmatpush2.msra.mxu0 0.0
    %468 = vmatprep.mubr.f32.mxu0 0.0
    %469 = vmatmul.mubr.f32.gmra.mxu0 %v402
    %v470 = vpop.f32.mrf.mxu0
    %v471 = vadd.f32 0.0, %v470
    %v472 = vpop.f32.mrf.mxu0
    %473 = vdwg.mxu0
    %v474 = vadd.f32 %v401, %v471
    %v475 = vxor.u32 %v474, 2147483648
    %v476 = vmul.f32 %v475, 1.442695
    %v477 = vpow.pop %v476
    %v478 = vadd.f32 %v477, 1.0
    %v479 = vrcp.pop %v478
    %v480 = vmul.f32 1.0, %v479
    %v481 = vtanh.pop %v474
    %v482 = vmul.f32 %v480, %v383
    %484 = vrot.lane.b32.xlu0 %v481, 64
    %v485 = vpop.permute.xlu0 %484
    %v487 = vmul.f32 %v480, %v485
    %489 = vrot.lane.b32.xlu0 %v487, 32
    %v490 = vpop.permute.xlu0 %489
    %v492 = vadd.f32 %v482, %v490
    %v493 = vtanh.pop %v492
    %495 = vrot.lane.b32.xlu0 %v493, 64
    %v496 = vpop.permute.xlu0 %495
    %v498 = vmul.f32 %v480, %v496
    %500 = vrot.lane.b32.xlu0 %v498, 32
    %v501 = vpop.permute.xlu0 %500
    %503 = vst.msk [vmem:[#allocation3 + $0x2] sm:$0x1] %vm283, %v501
    %504 = vst.msk [vmem:[#allocation3 + $0x9] sm:$0x2] %vm285, %v501
    %v505 = vld [vmem:[#allocation2 + $0x3] sm:$0x1]
    %v506 = vld [vmem:[#allocation2 + $0xb] sm:$0x1]
    %v508 = vrot.slane %v506, 7
    %v510 = vsel %vm178, %v505, %v508
    %v511 = vsel %vm180, %v501, 0
    %513 = vmatprep.subr.mxu0 0.0
    %514 = vmatpush1.msra.mxu0 0.0
    %515 = vmatprep.subr.mxu0 0.0
    %516 = vmatpush1.msra.mxu0 0.0
    %517 = vmatprep.subr.mxu0 0.0
    %518 = vmatpush1.msra.mxu0 0.0
    %519 = vmatprep.subr.mxu0 0.0
    %520 = vmatpush1.msra.mxu0 0.0
    %521 = vmatprep.subr.mxu0 0.0
    %522 = vmatpush1.msra.mxu0 0.0
    %523 = vmatprep.subr.mxu0 0.0
    %524 = vmatpush1.msra.mxu0 0.0
    %525 = vmatprep.subr.mxu0 0.0
    %526 = vmatpush1.msra.mxu0 0.0
    %527 = vmatprep.subr.mxu0 0.0
    %528 = vmatpush1.msra.mxu0 0.0
    %529 = vmatprep.subr.mxu0 0.0
    %530 = vmatpush1.msra.mxu0 0.0
    %531 = vmatprep.subr.mxu0 0.0
    %532 = vmatpush1.msra.mxu0 0.0
    %533 = vmatprep.subr.mxu0 0.0
    %534 = vmatpush1.msra.mxu0 0.0
    %535 = vmatprep.subr.mxu0 0.0
    %536 = vmatpush1.msra.mxu0 0.0
    %537 = vmatprep.subr.mxu0 0.0
    %538 = vmatpush1.msra.mxu0 %v172
    %539 = vmatprep.subr.mxu0 0.0
    %540 = vmatpush1.msra.mxu0 %v171
    %541 = vmatprep.subr.mxu0 0.0
    %542 = vmatpush1.msra.mxu0 %v170
    %543 = vmatprep.subr.mxu0 0.0
    %544 = vmatpush1.msra.mxu0 %v169
    %545 = vmatprep.subr.mxu0 0.0
    %546 = vmatpush2.msra.mxu0 0.0
    %547 = vmatprep.subr.mxu0 0.0
    %548 = vmatpush2.msra.mxu0 0.0
    %549 = vmatprep.subr.mxu0 0.0
    %550 = vmatpush2.msra.mxu0 0.0
    %551 = vmatprep.subr.mxu0 0.0
    %552 = vmatpush2.msra.mxu0 0.0
    %553 = vmatprep.subr.mxu0 0.0
    %554 = vmatpush2.msra.mxu0 0.0
    %555 = vmatprep.subr.mxu0 0.0
    %556 = vmatpush2.msra.mxu0 0.0
    %557 = vmatprep.subr.mxu0 0.0
    %558 = vmatpush2.msra.mxu0 0.0
    %559 = vmatprep.subr.mxu0 0.0
    %560 = vmatpush2.msra.mxu0 0.0
    %561 = vmatprep.subr.mxu0 0.0
    %562 = vmatpush2.msra.mxu0 0.0
    %563 = vmatprep.subr.mxu0 0.0
    %564 = vmatpush2.msra.mxu0 0.0
    %565 = vmatprep.subr.mxu0 0.0
    %566 = vmatpush2.msra.mxu0 0.0
    %567 = vmatprep.subr.mxu0 0.0
    %568 = vmatpush2.msra.mxu0 0.0
    %569 = vmatprep.subr.mxu0 0.0
    %570 = vmatpush2.msra.mxu0 0.0
    %571 = vmatprep.subr.mxu0 0.0
    %572 = vmatpush2.msra.mxu0 0.0
    %573 = vmatprep.subr.mxu0 0.0
    %574 = vmatpush2.msra.mxu0 0.0
    %575 = vmatprep.subr.mxu0 0.0
    %576 = vmatpush2.msra.mxu0 0.0
    %577 = vmatprep.mubr.f32.mxu0 0.0
    %578 = vmatmul.mubr.f32.gmra.mxu0 %v511
    %v579 = vpop.f32.mrf.mxu0
    %v580 = vadd.f32 0.0, %v579
    %v581 = vpop.f32.mrf.mxu0
    %582 = vdwg.mxu0
    %v583 = vadd.f32 %v510, %v580
    %v584 = vxor.u32 %v583, 2147483648
    %v585 = vmul.f32 %v584, 1.442695
    %v586 = vpow.pop %v585
    %v587 = vadd.f32 %v586, 1.0
    %v588 = vrcp.pop %v587
    %v589 = vmul.f32 1.0, %v588
    %v590 = vtanh.pop %v583
    %v591 = vmul.f32 %v589, %v492
    %593 = vrot.lane.b32.xlu0 %v590, 64
    %v594 = vpop.permute.xlu0 %593
    %v596 = vmul.f32 %v589, %v594
    %598 = vrot.lane.b32.xlu0 %v596, 32
    %v599 = vpop.permute.xlu0 %598
    %v601 = vadd.f32 %v591, %v599
    %v602 = vtanh.pop %v601
    %604 = vrot.lane.b32.xlu0 %v602, 64
    %v605 = vpop.permute.xlu0 %604
    %v607 = vmul.f32 %v589, %v605
    %609 = vrot.lane.b32.xlu0 %v607, 32
    %v610 = vpop.permute.xlu0 %609
    %612 = vst.msk [vmem:[#allocation3 + $0x3] sm:$0x1] %vm283, %v610
    %613 = vst.msk [vmem:[#allocation3 + $0xa] sm:$0x2] %vm285, %v610
    %v614 = vld [vmem:[#allocation2 + $0x4] sm:$0x1]
    %v615 = vld [vmem:[#allocation2 + $0xc] sm:$0x1]
    %v617 = vrot.slane %v615, 7
    %v619 = vsel %vm178, %v614, %v617
    %v620 = vsel %vm180, %v610, 0
    %622 = vmatprep.subr.mxu0 0.0
    %623 = vmatpush1.msra.mxu0 0.0
    %624 = vmatprep.subr.mxu0 0.0
    %625 = vmatpush1.msra.mxu0 0.0
    %626 = vmatprep.subr.mxu0 0.0
    %627 = vmatpush1.msra.mxu0 0.0
    %628 = vmatprep.subr.mxu0 0.0
    %629 = vmatpush1.msra.mxu0 0.0
    %630 = vmatprep.subr.mxu0 0.0
    %631 = vmatpush1.msra.mxu0 0.0
    %632 = vmatprep.subr.mxu0 0.0
    %633 = vmatpush1.msra.mxu0 0.0
    %634 = vmatprep.subr.mxu0 0.0
    %635 = vmatpush1.msra.mxu0 0.0
    %636 = vmatprep.subr.mxu0 0.0
    %637 = vmatpush1.msra.mxu0 0.0
    %638 = vmatprep.subr.mxu0 0.0
    %639 = vmatpush1.msra.mxu0 0.0
    %640 = vmatprep.subr.mxu0 0.0
    %641 = vmatpush1.msra.mxu0 0.0
    %642 = vmatprep.subr.mxu0 0.0
    %643 = vmatpush1.msra.mxu0 0.0
    %644 = vmatprep.subr.mxu0 0.0
    %645 = vmatpush1.msra.mxu0 0.0
    %646 = vmatprep.subr.mxu0 0.0
    %647 = vmatpush1.msra.mxu0 %v172
    %648 = vmatprep.subr.mxu0 0.0
    %649 = vmatpush1.msra.mxu0 %v171
    %650 = vmatprep.subr.mxu0 0.0
    %651 = vmatpush1.msra.mxu0 %v170
    %652 = vmatprep.subr.mxu0 0.0
    %653 = vmatpush1.msra.mxu0 %v169
    %654 = vmatprep.subr.mxu0 0.0
    %655 = vmatpush2.msra.mxu0 0.0
    %656 = vmatprep.subr.mxu0 0.0
    %657 = vmatpush2.msra.mxu0 0.0
    %658 = vmatprep.subr.mxu0 0.0
    %659 = vmatpush2.msra.mxu0 0.0
    %660 = vmatprep.subr.mxu0 0.0
    %661 = vmatpush2.msra.mxu0 0.0
    %662 = vmatprep.subr.mxu0 0.0
    %663 = vmatpush2.msra.mxu0 0.0
    %664 = vmatprep.subr.mxu0 0.0
    %665 = vmatpush2.msra.mxu0 0.0
    %666 = vmatprep.subr.mxu0 0.0
    %667 = vmatpush2.msra.mxu0 0.0
    %668 = vmatprep.subr.mxu0 0.0
    %669 = vmatpush2.msra.mxu0 0.0
    %670 = vmatprep.subr.mxu0 0.0
    %671 = vmatpush2.msra.mxu0 0.0
    %672 = vmatprep.subr.mxu0 0.0
    %673 = vmatpush2.msra.mxu0 0.0
    %674 = vmatprep.subr.mxu0 0.0
    %675 = vmatpush2.msra.mxu0 0.0
    %676 = vmatprep.subr.mxu0 0.0
    %677 = vmatpush2.msra.mxu0 0.0
    %678 = vmatprep.subr.mxu0 0.0
    %679 = vmatpush2.msra.mxu0 0.0
    %680 = vmatprep.subr.mxu0 0.0
    %681 = vmatpush2.msra.mxu0 0.0
    %682 = vmatprep.subr.mxu0 0.0
    %683 = vmatpush2.msra.mxu0 0.0
    %684 = vmatprep.subr.mxu0 0.0
    %685 = vmatpush2.msra.mxu0 0.0
    %686 = vmatprep.mubr.f32.mxu0 0.0
    %687 = vmatmul.mubr.f32.gmra.mxu0 %v620
    %v688 = vpop.f32.mrf.mxu0
    %v689 = vadd.f32 0.0, %v688
    %v690 = vpop.f32.mrf.mxu0
    %691 = vdwg.mxu0
    %v692 = vadd.f32 %v619, %v689
    %v693 = vxor.u32 %v692, 2147483648
    %v694 = vmul.f32 %v693, 1.442695
    %v695 = vpow.pop %v694
    %v696 = vadd.f32 %v695, 1.0
    %v697 = vrcp.pop %v696
    %v698 = vmul.f32 1.0, %v697
    %v699 = vtanh.pop %v692
    %v700 = vmul.f32 %v698, %v601
    %702 = vrot.lane.b32.xlu0 %v699, 64
    %v703 = vpop.permute.xlu0 %702
    %v705 = vmul.f32 %v698, %v703
    %707 = vrot.lane.b32.xlu0 %v705, 32
    %v708 = vpop.permute.xlu0 %707
    %v710 = vadd.f32 %v700, %v708
    %v711 = vtanh.pop %v710
    %713 = vrot.lane.b32.xlu0 %v711, 64
    %v714 = vpop.permute.xlu0 %713
    %v716 = vmul.f32 %v698, %v714
    %718 = vrot.lane.b32.xlu0 %v716, 32
    %v719 = vpop.permute.xlu0 %718
    %721 = vst.msk [vmem:[#allocation3 + $0x4] sm:$0x1] %vm283, %v719
    %722 = vst.msk [vmem:[#allocation3 + $0xb] sm:$0x2] %vm285, %v719
    %v723 = vld [vmem:[#allocation2 + $0x5] sm:$0x1]
    %v724 = vld [vmem:[#allocation2 + $0xd] sm:$0x1]
    %v726 = vrot.slane %v724, 7
    %v728 = vsel %vm178, %v723, %v726
    %v729 = vsel %vm180, %v719, 0
    %731 = vmatprep.subr.mxu0 0.0
    %732 = vmatpush1.msra.mxu0 0.0
    %733 = vmatprep.subr.mxu0 0.0
    %734 = vmatpush1.msra.mxu0 0.0
    %735 = vmatprep.subr.mxu0 0.0
    %736 = vmatpush1.msra.mxu0 0.0
    %737 = vmatprep.subr.mxu0 0.0
    %738 = vmatpush1.msra.mxu0 0.0
    %739 = vmatprep.subr.mxu0 0.0
    %740 = vmatpush1.msra.mxu0 0.0
    %741 = vmatprep.subr.mxu0 0.0
    %742 = vmatpush1.msra.mxu0 0.0
    %743 = vmatprep.subr.mxu0 0.0
    %744 = vmatpush1.msra.mxu0 0.0
    %745 = vmatprep.subr.mxu0 0.0
    %746 = vmatpush1.msra.mxu0 0.0
    %747 = vmatprep.subr.mxu0 0.0
    %748 = vmatpush1.msra.mxu0 0.0
    %749 = vmatprep.subr.mxu0 0.0
    %750 = vmatpush1.msra.mxu0 0.0
    %751 = vmatprep.subr.mxu0 0.0
    %752 = vmatpush1.msra.mxu0 0.0
    %753 = vmatprep.subr.mxu0 0.0
    %754 = vmatpush1.msra.mxu0 0.0
    %755 = vmatprep.subr.mxu0 0.0
    %756 = vmatpush1.msra.mxu0 %v172
    %757 = vmatprep.subr.mxu0 0.0
    %758 = vmatpush1.msra.mxu0 %v171
    %759 = vmatprep.subr.mxu0 0.0
    %760 = vmatpush1.msra.mxu0 %v170
    %761 = vmatprep.subr.mxu0 0.0
    %762 = vmatpush1.msra.mxu0 %v169
    %763 = vmatprep.subr.mxu0 0.0
    %764 = vmatpush2.msra.mxu0 0.0
    %765 = vmatprep.subr.mxu0 0.0
    %766 = vmatpush2.msra.mxu0 0.0
    %767 = vmatprep.subr.mxu0 0.0
    %768 = vmatpush2.msra.mxu0 0.0
    %769 = vmatprep.subr.mxu0 0.0
    %770 = vmatpush2.msra.mxu0 0.0
    %771 = vmatprep.subr.mxu0 0.0
    %772 = vmatpush2.msra.mxu0 0.0
    %773 = vmatprep.subr.mxu0 0.0
    %774 = vmatpush2.msra.mxu0 0.0
    %775 = vmatprep.subr.mxu0 0.0
    %776 = vmatpush2.msra.mxu0 0.0
    %777 = vmatprep.subr.mxu0 0.0
    %778 = vmatpush2.msra.mxu0 0.0
    %779 = vmatprep.subr.mxu0 0.0
    %780 = vmatpush2.msra.mxu0 0.0
    %781 = vmatprep.subr.mxu0 0.0
    %782 = vmatpush2.msra.mxu0 0.0
    %783 = vmatprep.subr.mxu0 0.0
    %784 = vmatpush2.msra.mxu0 0.0
    %785 = vmatprep.subr.mxu0 0.0
    %786 = vmatpush2.msra.mxu0 0.0
    %787 = vmatprep.subr.mxu0 0.0
    %788 = vmatpush2.msra.mxu0 0.0
    %789 = vmatprep.subr.mxu0 0.0
    %790 = vmatpush2.msra.mxu0 0.0
    %791 = vmatprep.subr.mxu0 0.0
    %792 = vmatpush2.msra.mxu0 0.0
    %793 = vmatprep.subr.mxu0 0.0
    %794 = vmatpush2.msra.mxu0 0.0
    %795 = vmatprep.mubr.f32.mxu0 0.0
    %796 = vmatmul.mubr.f32.gmra.mxu0 %v729
    %v797 = vpop.f32.mrf.mxu0
    %v798 = vadd.f32 0.0, %v797
    %v799 = vpop.f32.mrf.mxu0
    %800 = vdwg.mxu0
    %v801 = vadd.f32 %v728, %v798
    %v802 = vxor.u32 %v801, 2147483648
    %v803 = vmul.f32 %v802, 1.442695
    %v804 = vpow.pop %v803
    %v805 = vadd.f32 %v804, 1.0
    %v806 = vrcp.pop %v805
    %v807 = vmul.f32 1.0, %v806
    %v808 = vtanh.pop %v801
    %v809 = vmul.f32 %v807, %v710
    %811 = vrot.lane.b32.xlu0 %v808, 64
    %v812 = vpop.permute.xlu0 %811
    %v814 = vmul.f32 %v807, %v812
    %816 = vrot.lane.b32.xlu0 %v814, 32
    %v817 = vpop.permute.xlu0 %816
    %v819 = vadd.f32 %v809, %v817
    %v820 = vtanh.pop %v819
    %822 = vrot.lane.b32.xlu0 %v820, 64
    %v823 = vpop.permute.xlu0 %822
    %v825 = vmul.f32 %v807, %v823
    %827 = vrot.lane.b32.xlu0 %v825, 32
    %v828 = vpop.permute.xlu0 %827
    %830 = vst.msk [vmem:[#allocation3 + $0x5] sm:$0x1] %vm283, %v828
    %831 = vst.msk [vmem:[#allocation3 + $0xc] sm:$0x2] %vm285, %v828
    %v832 = vld [vmem:[#allocation2 + $0x6] sm:$0x1]
    %v833 = vld [vmem:[#allocation2 + $0xe] sm:$0x1]
    %v835 = vrot.slane %v833, 7
    %v837 = vsel %vm178, %v832, %v835
    %v838 = vsel %vm180, %v828, 0
    %840 = vmatprep.subr.mxu0 0.0
    %841 = vmatpush1.msra.mxu0 0.0
    %842 = vmatprep.subr.mxu0 0.0
    %843 = vmatpush1.msra.mxu0 0.0
    %844 = vmatprep.subr.mxu0 0.0
    %845 = vmatpush1.msra.mxu0 0.0
    %846 = vmatprep.subr.mxu0 0.0
    %847 = vmatpush1.msra.mxu0 0.0
    %848 = vmatprep.subr.mxu0 0.0
    %849 = vmatpush1.msra.mxu0 0.0
    %850 = vmatprep.subr.mxu0 0.0
    %851 = vmatpush1.msra.mxu0 0.0
    %852 = vmatprep.subr.mxu0 0.0
    %853 = vmatpush1.msra.mxu0 0.0
    %854 = vmatprep.subr.mxu0 0.0
    %855 = vmatpush1.msra.mxu0 0.0
    %856 = vmatprep.subr.mxu0 0.0
    %857 = vmatpush1.msra.mxu0 0.0
    %858 = vmatprep.subr.mxu0 0.0
    %859 = vmatpush1.msra.mxu0 0.0
    %860 = vmatprep.subr.mxu0 0.0
    %861 = vmatpush1.msra.mxu0 0.0
    %862 = vmatprep.subr.mxu0 0.0
    %863 = vmatpush1.msra.mxu0 0.0
    %864 = vmatprep.subr.mxu0 0.0
    %865 = vmatpush1.msra.mxu0 %v172
    %866 = vmatprep.subr.mxu0 0.0
    %867 = vmatpush1.msra.mxu0 %v171
    %868 = vmatprep.subr.mxu0 0.0
    %869 = vmatpush1.msra.mxu0 %v170
    %870 = vmatprep.subr.mxu0 0.0
    %871 = vmatpush1.msra.mxu0 %v169
    %872 = vmatprep.subr.mxu0 0.0
    %873 = vmatpush2.msra.mxu0 0.0
    %874 = vmatprep.subr.mxu0 0.0
    %875 = vmatpush2.msra.mxu0 0.0
    %876 = vmatprep.subr.mxu0 0.0
    %877 = vmatpush2.msra.mxu0 0.0
    %878 = vmatprep.subr.mxu0 0.0
    %879 = vmatpush2.msra.mxu0 0.0
    %880 = vmatprep.subr.mxu0 0.0
    %881 = vmatpush2.msra.mxu0 0.0
    %882 = vmatprep.subr.mxu0 0.0
    %883 = vmatpush2.msra.mxu0 0.0
    %884 = vmatprep.subr.mxu0 0.0
    %885 = vmatpush2.msra.mxu0 0.0
    %886 = vmatprep.subr.mxu0 0.0
    %887 = vmatpush2.msra.mxu0 0.0
    %888 = vmatprep.subr.mxu0 0.0
    %889 = vmatpush2.msra.mxu0 0.0
    %890 = vmatprep.subr.mxu0 0.0
    %891 = vmatpush2.msra.mxu0 0.0
    %892 = vmatprep.subr.mxu0 0.0
    %893 = vmatpush2.msra.mxu0 0.0
    %894 = vmatprep.subr.mxu0 0.0
    %895 = vmatpush2.msra.mxu0 0.0
    %896 = vmatprep.subr.mxu0 0.0
    %897 = vmatpush2.msra.mxu0 0.0
    %898 = vmatprep.subr.mxu0 0.0
    %899 = vmatpush2.msra.mxu0 0.0
    %900 = vmatprep.subr.mxu0 0.0
    %901 = vmatpush2.msra.mxu0 0.0
    %902 = vmatprep.subr.mxu0 0.0
    %903 = vmatpush2.msra.mxu0 0.0
    %904 = vmatprep.mubr.f32.mxu0 0.0
    %905 = vmatmul.mubr.f32.gmra.mxu0 %v838
    %v906 = vpop.f32.mrf.mxu0
    %v907 = vadd.f32 0.0, %v906
    %v908 = vpop.f32.mrf.mxu0
    %909 = vdwg.mxu0
    %v910 = vadd.f32 %v837, %v907
    %v911 = vxor.u32 %v910, 2147483648
    %v912 = vmul.f32 %v911, 1.442695
    %v913 = vpow.pop %v912
    %v914 = vadd.f32 %v913, 1.0
    %v915 = vrcp.pop %v914
    %v916 = vmul.f32 1.0, %v915
    %v917 = vtanh.pop %v910
    %v918 = vmul.f32 %v916, %v819
    %920 = vrot.lane.b32.xlu0 %v917, 64
    %v921 = vpop.permute.xlu0 %920
    %v923 = vmul.f32 %v916, %v921
    %925 = vrot.lane.b32.xlu0 %v923, 32
    %v926 = vpop.permute.xlu0 %925
    %v928 = vadd.f32 %v918, %v926
    %v929 = vtanh.pop %v928
    %931 = vrot.lane.b32.xlu0 %v929, 64
    %v932 = vpop.permute.xlu0 %931
    %v934 = vmul.f32 %v916, %v932
    %936 = vrot.lane.b32.xlu0 %v934, 32
    %v937 = vpop.permute.xlu0 %936
    %939 = vst.msk [vmem:[#allocation3 + $0x6] sm:$0x1] %vm283, %v937
    %940 = vst.msk [vmem:[#allocation3 + $0xd] sm:$0x2] %vm285, %v937
    %v941 = vld [vmem:[#allocation2 + $0x7] sm:$0x1]
    %v942 = vld [vmem:[#allocation2 + $0xf] sm:$0x1]
    %v944 = vrot.slane %v942, 7
    %v946 = vsel %vm178, %v941, %v944
    %v947 = vsel %vm180, %v937, 0
    %949 = vmatprep.subr.mxu0 0.0
    %950 = vmatpush1.msra.mxu0 0.0
    %951 = vmatprep.subr.mxu0 0.0
    %952 = vmatpush1.msra.mxu0 0.0
    %953 = vmatprep.subr.mxu0 0.0
    %954 = vmatpush1.msra.mxu0 0.0
    %955 = vmatprep.subr.mxu0 0.0
    %956 = vmatpush1.msra.mxu0 0.0
    %957 = vmatprep.subr.mxu0 0.0
    %958 = vmatpush1.msra.mxu0 0.0
    %959 = vmatprep.subr.mxu0 0.0
    %960 = vmatpush1.msra.mxu0 0.0
    %961 = vmatprep.subr.mxu0 0.0
    %962 = vmatpush1.msra.mxu0 0.0
    %963 = vmatprep.subr.mxu0 0.0
    %964 = vmatpush1.msra.mxu0 0.0
    %965 = vmatprep.subr.mxu0 0.0
    %966 = vmatpush1.msra.mxu0 0.0
    %967 = vmatprep.subr.mxu0 0.0
    %968 = vmatpush1.msra.mxu0 0.0
    %969 = vmatprep.subr.mxu0 0.0
    %970 = vmatpush1.msra.mxu0 0.0
    %971 = vmatprep.subr.mxu0 0.0
    %972 = vmatpush1.msra.mxu0 0.0
    %973 = vmatprep.subr.mxu0 0.0
    %974 = vmatpush1.msra.mxu0 %v172
    %975 = vmatprep.subr.mxu0 0.0
    %976 = vmatpush1.msra.mxu0 %v171
    %977 = vmatprep.subr.mxu0 0.0
    %978 = vmatpush1.msra.mxu0 %v170
    %979 = vmatprep.subr.mxu0 0.0
    %980 = vmatpush1.msra.mxu0 %v169
    %981 = vmatprep.subr.mxu0 0.0
    %982 = vmatpush2.msra.mxu0 0.0
    %983 = vmatprep.subr.mxu0 0.0
    %984 = vmatpush2.msra.mxu0 0.0
    %985 = vmatprep.subr.mxu0 0.0
    %986 = vmatpush2.msra.mxu0 0.0
    %987 = vmatprep.subr.mxu0 0.0
    %988 = vmatpush2.msra.mxu0 0.0
    %989 = vmatprep.subr.mxu0 0.0
    %990 = vmatpush2.msra.mxu0 0.0
    %991 = vmatprep.subr.mxu0 0.0
    %992 = vmatpush2.msra.mxu0 0.0
    %993 = vmatprep.subr.mxu0 0.0
    %994 = vmatpush2.msra.mxu0 0.0
    %995 = vmatprep.subr.mxu0 0.0
    %996 = vmatpush2.msra.mxu0 0.0
    %997 = vmatprep.subr.mxu0 0.0
    %998 = vmatpush2.msra.mxu0 0.0
    %999 = vmatprep.subr.mxu0 0.0
    %1000 = vmatpush2.msra.mxu0 0.0
    %1001 = vmatprep.subr.mxu0 0.0
    %1002 = vmatpush2.msra.mxu0 0.0
    %1003 = vmatprep.subr.mxu0 0.0
    %1004 = vmatpush2.msra.mxu0 0.0
    %1005 = vmatprep.subr.mxu0 0.0
    %1006 = vmatpush2.msra.mxu0 0.0
    %1007 = vmatprep.subr.mxu0 0.0
    %1008 = vmatpush2.msra.mxu0 0.0
    %1009 = vmatprep.subr.mxu0 0.0
    %1010 = vmatpush2.msra.mxu0 0.0
    %1011 = vmatprep.subr.mxu0 0.0
    %1012 = vmatpush2.msra.mxu0 0.0
    %1013 = vmatprep.mubr.f32.mxu0 0.0
    %1014 = vmatmul.mubr.f32.gmra.mxu0 %v947
    %v1015 = vpop.f32.mrf.mxu0
    %v1016 = vadd.f32 0.0, %v1015
    %v1017 = vpop.f32.mrf.mxu0
    %1018 = vdwg.mxu0
    %v1019 = vadd.f32 %v946, %v1016
    %v1020 = vxor.u32 %v1019, 2147483648
    %v1021 = vmul.f32 %v1020, 1.442695
    %v1022 = vpow.pop %v1021
    %v1023 = vadd.f32 %v1022, 1.0
    %v1024 = vrcp.pop %v1023
    %v1025 = vmul.f32 1.0, %v1024
    %v1026 = vtanh.pop %v1019
    %v1027 = vmul.f32 %v1025, %v928
    %1029 = vrot.lane.b32.xlu0 %v1026, 64
    %v1030 = vpop.permute.xlu0 %1029
    %v1032 = vmul.f32 %v1025, %v1030
    %1034 = vrot.lane.b32.xlu0 %v1032, 32
    %v1035 = vpop.permute.xlu0 %1034
    %v1037 = vadd.f32 %v1027, %v1035
    %v1038 = vtanh.pop %v1037
    %1040 = vrot.lane.b32.xlu0 %v1038, 64
    %v1041 = vpop.permute.xlu0 %1040
    %v1043 = vmul.f32 %v1025, %v1041
    %1045 = vrot.lane.b32.xlu0 %v1043, 32
    %v1046 = vpop.permute.xlu0 %1045
    %1048 = vst.msk [vmem:[#allocation3 + $0x7] sm:$0x1] %vm283, %v1046
    %1049 = vst.msk [vmem:[#allocation3 + $0xe] sm:$0x2] %vm285, %v1046
    %v1050 = vld [vmem:[#allocation3] sm:$0xff]
    %v1051 = vld [vmem:[#allocation3 + $0x8] sm:$0xff]
    %v1052 = vld [vmem:[#allocation7] sm:$0xff]
    %v1053 = vld [vmem:[#allocation7 + $0x8] sm:$0xff]
    %v1054 = vld [vmem:[#allocation7 + $0x10] sm:$0xff]
    %v1055 = vld [vmem:[#allocation7 + $0x18] sm:$0xff]
    %v1056 = vld [vmem:[%s6] sm:$0x1]
    %v1058 = vlaneseq
    %v1059 = vshrl.u32 %v1058, 7
    %v1060 = vsub.s32 0, %v1059
    %v1061 = vrot.slane %v1056, %v1060
    %v1064 = vsel %vm180, %v1050, 0
    %v1067 = vsel %vm180, %v1051, 0
    %1069 = vmatprep.subr.mxu0 0.0
    %1070 = vmatpush1.msra.mxu0 0.0
    %1071 = vmatprep.subr.mxu0 0.0
    %1072 = vmatpush1.msra.mxu0 0.0
    %1073 = vmatprep.subr.mxu0 0.0
    %1074 = vmatpush1.msra.mxu0 0.0
    %1075 = vmatprep.subr.mxu0 0.0
    %1076 = vmatpush1.msra.mxu0 0.0
    %1077 = vmatprep.subr.mxu0 0.0
    %1078 = vmatpush1.msra.mxu0 0.0
    %1079 = vmatprep.subr.mxu0 0.0
    %1080 = vmatpush1.msra.mxu0 0.0
    %1081 = vmatprep.subr.mxu0 0.0
    %1082 = vmatpush1.msra.mxu0 0.0
    %1083 = vmatprep.subr.mxu0 0.0
    %1084 = vmatpush1.msra.mxu0 0.0
    %1085 = vmatprep.subr.mxu0 0.0
    %1086 = vmatpush1.msra.mxu0 0.0
    %1087 = vmatprep.subr.mxu0 0.0
    %1088 = vmatpush1.msra.mxu0 0.0
    %1089 = vmatprep.subr.mxu0 0.0
    %1090 = vmatpush1.msra.mxu0 0.0
    %1091 = vmatprep.subr.mxu0 0.0
    %1092 = vmatpush1.msra.mxu0 0.0
    %1093 = vmatprep.subr.mxu0 0.0
    %1094 = vmatpush1.msra.mxu0 %v1055
    %1095 = vmatprep.subr.mxu0 0.0
    %1096 = vmatpush1.msra.mxu0 %v1054
    %1097 = vmatprep.subr.mxu0 0.0
    %1098 = vmatpush1.msra.mxu0 %v1053
    %1099 = vmatprep.subr.mxu0 0.0
    %1100 = vmatpush1.msra.mxu0 %v1052
    %1101 = vmatprep.subr.mxu0 0.0
    %1102 = vmatpush2.msra.mxu0 0.0
    %1103 = vmatprep.subr.mxu0 0.0
    %1104 = vmatpush2.msra.mxu0 0.0
    %1105 = vmatprep.subr.mxu0 0.0
    %1106 = vmatpush2.msra.mxu0 0.0
    %1107 = vmatprep.subr.mxu0 0.0
    %1108 = vmatpush2.msra.mxu0 0.0
    %1109 = vmatprep.subr.mxu0 0.0
    %1110 = vmatpush2.msra.mxu0 0.0
    %1111 = vmatprep.subr.mxu0 0.0
    %1112 = vmatpush2.msra.mxu0 0.0
    %1113 = vmatprep.subr.mxu0 0.0
    %1114 = vmatpush2.msra.mxu0 0.0
    %1115 = vmatprep.subr.mxu0 0.0
    %1116 = vmatpush2.msra.mxu0 0.0
    %1117 = vmatprep.subr.mxu0 0.0
    %1118 = vmatpush2.msra.mxu0 0.0
    %1119 = vmatprep.subr.mxu0 0.0
    %1120 = vmatpush2.msra.mxu0 0.0
    %1121 = vmatprep.subr.mxu0 0.0
    %1122 = vmatpush2.msra.mxu0 0.0
    %1123 = vmatprep.subr.mxu0 0.0
    %1124 = vmatpush2.msra.mxu0 0.0
    %1125 = vmatprep.subr.mxu0 0.0
    %1126 = vmatpush2.msra.mxu0 0.0
    %1127 = vmatprep.subr.mxu0 0.0
    %1128 = vmatpush2.msra.mxu0 0.0
    %1129 = vmatprep.subr.mxu0 0.0
    %1130 = vmatpush2.msra.mxu0 0.0
    %1131 = vmatprep.subr.mxu0 0.0
    %1132 = vmatpush2.msra.mxu0 0.0
    %1133 = vmatprep.mubr.f32.mxu0 0.0
    %1134 = vmatmul.mubr.f32.gmra.mxu0 %v1064
    %v1135 = vpop.f32.mrf.mxu0
    %v1136 = vadd.f32 %v1061, %v1135
    %v1137 = vpop.f32.mrf.mxu0
    %1138 = vmatprep.mubr.f32.mxu0 0.0
    %1139 = vmatmul.mubr.f32.gmra.mxu0 %v1067
    %v1140 = vpop.f32.mrf.mxu0
    %v1141 = vadd.f32 %v1061, %v1140
    %v1142 = vpop.f32.mrf.mxu0
    %1143 = vdwg.mxu0
    %1144 = vst [vmem:[#allocation2] sm:$0xff] %v1136
    %1145 = vst [vmem:[#allocation2 + $0x8] sm:$0xff] %v1141
    %v1146 = vld [vmem:[#allocation9] sm:$0xff]
    %v1147 = vld [vmem:[#allocation9 + $0x8] sm:$0xff]
    %v1148 = vld [vmem:[#allocation9 + $0x10] sm:$0xff]
    %v1149 = vld [vmem:[#allocation9 + $0x18] sm:$0xff]
    %v1150 = vld [vmem:[#allocation2] sm:$0x1]
    %v1151 = vld [vmem:[#allocation2 + $0x8] sm:$0x1]
    %v1153 = vrot.slane %v1151, 7
    %v1155 = vsel %vm178, %v1150, %v1153
    %1156 = vmatprep.subr.mxu0 0.0
    %1157 = vmatpush1.msra.mxu0 0.0
    %1158 = vmatprep.subr.mxu0 0.0
    %1159 = vmatpush1.msra.mxu0 0.0
    %1160 = vmatprep.subr.mxu0 0.0
    %1161 = vmatpush1.msra.mxu0 0.0
    %1162 = vmatprep.subr.mxu0 0.0
    %1163 = vmatpush1.msra.mxu0 0.0
    %1164 = vmatprep.subr.mxu0 0.0
    %1165 = vmatpush1.msra.mxu0 0.0
    %1166 = vmatprep.subr.mxu0 0.0
    %1167 = vmatpush1.msra.mxu0 0.0
    %1168 = vmatprep.subr.mxu0 0.0
    %1169 = vmatpush1.msra.mxu0 0.0
    %1170 = vmatprep.subr.mxu0 0.0
    %1171 = vmatpush1.msra.mxu0 0.0
    %1172 = vmatprep.subr.mxu0 0.0
    %1173 = vmatpush1.msra.mxu0 0.0
    %1174 = vmatprep.subr.mxu0 0.0
    %1175 = vmatpush1.msra.mxu0 0.0
    %1176 = vmatprep.subr.mxu0 0.0
    %1177 = vmatpush1.msra.mxu0 0.0
    %1178 = vmatprep.subr.mxu0 0.0
    %1179 = vmatpush1.msra.mxu0 0.0
    %1180 = vmatprep.subr.mxu0 0.0
    %1181 = vmatpush1.msra.mxu0 %v1149
    %1182 = vmatprep.subr.mxu0 0.0
    %1183 = vmatpush1.msra.mxu0 %v1148
    %1184 = vmatprep.subr.mxu0 0.0
    %1185 = vmatpush1.msra.mxu0 %v1147
    %1186 = vmatprep.subr.mxu0 0.0
    %1187 = vmatpush1.msra.mxu0 %v1146
    %1188 = vmatprep.subr.mxu0 0.0
    %1189 = vmatpush2.msra.mxu0 0.0
    %1190 = vmatprep.subr.mxu0 0.0
    %1191 = vmatpush2.msra.mxu0 0.0
    %1192 = vmatprep.subr.mxu0 0.0
    %1193 = vmatpush2.msra.mxu0 0.0
    %1194 = vmatprep.subr.mxu0 0.0
    %1195 = vmatpush2.msra.mxu0 0.0
    %1196 = vmatprep.subr.mxu0 0.0
    %1197 = vmatpush2.msra.mxu0 0.0
    %1198 = vmatprep.subr.mxu0 0.0
    %1199 = vmatpush2.msra.mxu0 0.0
    %1200 = vmatprep.subr.mxu0 0.0
    %1201 = vmatpush2.msra.mxu0 0.0
    %1202 = vmatprep.subr.mxu0 0.0
    %1203 = vmatpush2.msra.mxu0 0.0
    %1204 = vmatprep.subr.mxu0 0.0
    %1205 = vmatpush2.msra.mxu0 0.0
    %1206 = vmatprep.subr.mxu0 0.0
    %1207 = vmatpush2.msra.mxu0 0.0
    %1208 = vmatprep.subr.mxu0 0.0
    %1209 = vmatpush2.msra.mxu0 0.0
    %1210 = vmatprep.subr.mxu0 0.0
    %1211 = vmatpush2.msra.mxu0 0.0
    %1212 = vmatprep.subr.mxu0 0.0
    %1213 = vmatpush2.msra.mxu0 0.0
    %1214 = vmatprep.subr.mxu0 0.0
    %1215 = vmatpush2.msra.mxu0 0.0
    %1216 = vmatprep.subr.mxu0 0.0
    %1217 = vmatpush2.msra.mxu0 0.0
    %1218 = vmatprep.subr.mxu0 0.0
    %1219 = vmatpush2.msra.mxu0 0.0
    %1220 = vmatprep.mubr.f32.mxu0 0.0
    %1221 = vmatmul.mubr.f32.gmra.mxu0 %v182
    %v1222 = vpop.f32.mrf.mxu0
    %v1223 = vadd.f32 0.0, %v1222
    %v1224 = vpop.f32.mrf.mxu0
    %1225 = vdwg.mxu0
    %v1226 = vadd.f32 %v1155, %v1223
    %v1227 = vxor.u32 %v1226, 2147483648
    %v1228 = vmul.f32 %v1227, 1.442695
    %v1229 = vpow.pop %v1228
    %v1230 = vadd.f32 %v1229, 1.0
    %v1231 = vrcp.pop %v1230
    %v1232 = vmul.f32 1.0, %v1231
    %v1233 = vtanh.pop %v1226
    %v1234 = vmul.f32 %v1232, 0.0
    %1236 = vrot.lane.b32.xlu0 %v1233, 64
    %v1237 = vpop.permute.xlu0 %1236
    %v1239 = vmul.f32 %v1232, %v1237
    %1241 = vrot.lane.b32.xlu0 %v1239, 32
    %v1242 = vpop.permute.xlu0 %1241
    %v1244 = vadd.f32 %v1234, %v1242
    %v1245 = vtanh.pop %v1244
    %1247 = vrot.lane.b32.xlu0 %v1245, 64
    %v1248 = vpop.permute.xlu0 %1247
    %v1250 = vmul.f32 %v1232, %v1248
    %1252 = vrot.lane.b32.xlu0 %v1250, 32
    %v1253 = vpop.permute.xlu0 %1252
    %1255 = vst.msk [vmem:[#allocation3] sm:$0x1] %vm283, %v1253
    %1256 = vst.msk [vmem:[#allocation3 + $0x7] sm:$0x2] %vm285, %v1253
    %v1257 = vld [vmem:[#allocation2 + $0x1] sm:$0x1]
    %v1258 = vld [vmem:[#allocation2 + $0x9] sm:$0x1]
    %v1260 = vrot.slane %v1258, 7
    %v1262 = vsel %vm178, %v1257, %v1260
    %v1263 = vsel %vm180, %v1253, 0
    %1265 = vmatprep.subr.mxu0 0.0
    %1266 = vmatpush1.msra.mxu0 0.0
    %1267 = vmatprep.subr.mxu0 0.0
    %1268 = vmatpush1.msra.mxu0 0.0
    %1269 = vmatprep.subr.mxu0 0.0
    %1270 = vmatpush1.msra.mxu0 0.0
    %1271 = vmatprep.subr.mxu0 0.0
    %1272 = vmatpush1.msra.mxu0 0.0
    %1273 = vmatprep.subr.mxu0 0.0
    %1274 = vmatpush1.msra.mxu0 0.0
    %1275 = vmatprep.subr.mxu0 0.0
    %1276 = vmatpush1.msra.mxu0 0.0
    %1277 = vmatprep.subr.mxu0 0.0
    %1278 = vmatpush1.msra.mxu0 0.0
    %1279 = vmatprep.subr.mxu0 0.0
    %1280 = vmatpush1.msra.mxu0 0.0
    %1281 = vmatprep.subr.mxu0 0.0
    %1282 = vmatpush1.msra.mxu0 0.0
    %1283 = vmatprep.subr.mxu0 0.0
    %1284 = vmatpush1.msra.mxu0 0.0
    %1285 = vmatprep.subr.mxu0 0.0
    %1286 = vmatpush1.msra.mxu0 0.0
    %1287 = vmatprep.subr.mxu0 0.0
    %1288 = vmatpush1.msra.mxu0 0.0
    %1289 = vmatprep.subr.mxu0 0.0
    %1290 = vmatpush1.msra.mxu0 %v1149
    %1291 = vmatprep.subr.mxu0 0.0
    %1292 = vmatpush1.msra.mxu0 %v1148
    %1293 = vmatprep.subr.mxu0 0.0
    %1294 = vmatpush1.msra.mxu0 %v1147
    %1295 = vmatprep.subr.mxu0 0.0
    %1296 = vmatpush1.msra.mxu0 %v1146
    %1297 = vmatprep.subr.mxu0 0.0
    %1298 = vmatpush2.msra.mxu0 0.0
    %1299 = vmatprep.subr.mxu0 0.0
    %1300 = vmatpush2.msra.mxu0 0.0
    %1301 = vmatprep.subr.mxu0 0.0
    %1302 = vmatpush2.msra.mxu0 0.0
    %1303 = vmatprep.subr.mxu0 0.0
    %1304 = vmatpush2.msra.mxu0 0.0
    %1305 = vmatprep.subr.mxu0 0.0
    %1306 = vmatpush2.msra.mxu0 0.0
    %1307 = vmatprep.subr.mxu0 0.0
    %1308 = vmatpush2.msra.mxu0 0.0
    %1309 = vmatprep.subr.mxu0 0.0
    %1310 = vmatpush2.msra.mxu0 0.0
    %1311 = vmatprep.subr.mxu0 0.0
    %1312 = vmatpush2.msra.mxu0 0.0
    %1313 = vmatprep.subr.mxu0 0.0
    %1314 = vmatpush2.msra.mxu0 0.0
    %1315 = vmatprep.subr.mxu0 0.0
    %1316 = vmatpush2.msra.mxu0 0.0
    %1317 = vmatprep.subr.mxu0 0.0
    %1318 = vmatpush2.msra.mxu0 0.0
    %1319 = vmatprep.subr.mxu0 0.0
    %1320 = vmatpush2.msra.mxu0 0.0
    %1321 = vmatprep.subr.mxu0 0.0
    %1322 = vmatpush2.msra.mxu0 0.0
    %1323 = vmatprep.subr.mxu0 0.0
    %1324 = vmatpush2.msra.mxu0 0.0
    %1325 = vmatprep.subr.mxu0 0.0
    %1326 = vmatpush2.msra.mxu0 0.0
    %1327 = vmatprep.subr.mxu0 0.0
    %1328 = vmatpush2.msra.mxu0 0.0
    %1329 = vmatprep.mubr.f32.mxu0 0.0
    %1330 = vmatmul.mubr.f32.gmra.mxu0 %v1263
    %v1331 = vpop.f32.mrf.mxu0
    %v1332 = vadd.f32 0.0, %v1331
    %v1333 = vpop.f32.mrf.mxu0
    %1334 = vdwg.mxu0
    %v1335 = vadd.f32 %v1262, %v1332
    %v1336 = vxor.u32 %v1335, 2147483648
    %v1337 = vmul.f32 %v1336, 1.442695
    %v1338 = vpow.pop %v1337
    %v1339 = vadd.f32 %v1338, 1.0
    %v1340 = vrcp.pop %v1339
    %v1341 = vmul.f32 1.0, %v1340
    %v1342 = vtanh.pop %v1335
    %v1343 = vmul.f32 %v1341, %v1244
    %1345 = vrot.lane.b32.xlu0 %v1342, 64
    %v1346 = vpop.permute.xlu0 %1345
    %v1348 = vmul.f32 %v1341, %v1346
    %1350 = vrot.lane.b32.xlu0 %v1348, 32
    %v1351 = vpop.permute.xlu0 %1350
    %v1353 = vadd.f32 %v1343, %v1351
    %v1354 = vtanh.pop %v1353
    %1356 = vrot.lane.b32.xlu0 %v1354, 64
    %v1357 = vpop.permute.xlu0 %1356
    %v1359 = vmul.f32 %v1341, %v1357
    %1361 = vrot.lane.b32.xlu0 %v1359, 32
    %v1362 = vpop.permute.xlu0 %1361
    %1364 = vst.msk [vmem:[#allocation3 + $0x1] sm:$0x1] %vm283, %v1362
    %1365 = vst.msk [vmem:[#allocation3 + $0x8] sm:$0x2] %vm285, %v1362
    %v1366 = vld [vmem:[#allocation2 + $0x2] sm:$0x1]
    %v1367 = vld [vmem:[#allocation2 + $0xa] sm:$0x1]
    %v1369 = vrot.slane %v1367, 7
    %v1371 = vsel %vm178, %v1366, %v1369
    %v1372 = vsel %vm180, %v1362, 0
    %1374 = vmatprep.subr.mxu0 0.0
    %1375 = vmatpush1.msra.mxu0 0.0
    %1376 = vmatprep.subr.mxu0 0.0
    %1377 = vmatpush1.msra.mxu0 0.0
    %1378 = vmatprep.subr.mxu0 0.0
    %1379 = vmatpush1.msra.mxu0 0.0
    %1380 = vmatprep.subr.mxu0 0.0
    %1381 = vmatpush1.msra.mxu0 0.0
    %1382 = vmatprep.subr.mxu0 0.0
    %1383 = vmatpush1.msra.mxu0 0.0
    %1384 = vmatprep.subr.mxu0 0.0
    %1385 = vmatpush1.msra.mxu0 0.0
    %1386 = vmatprep.subr.mxu0 0.0
    %1387 = vmatpush1.msra.mxu0 0.0
    %1388 = vmatprep.subr.mxu0 0.0
    %1389 = vmatpush1.msra.mxu0 0.0
    %1390 = vmatprep.subr.mxu0 0.0
    %1391 = vmatpush1.msra.mxu0 0.0
    %1392 = vmatprep.subr.mxu0 0.0
    %1393 = vmatpush1.msra.mxu0 0.0
    %1394 = vmatprep.subr.mxu0 0.0
    %1395 = vmatpush1.msra.mxu0 0.0
    %1396 = vmatprep.subr.mxu0 0.0
    %1397 = vmatpush1.msra.mxu0 0.0
    %1398 = vmatprep.subr.mxu0 0.0
    %1399 = vmatpush1.msra.mxu0 %v1149
    %1400 = vmatprep.subr.mxu0 0.0
    %1401 = vmatpush1.msra.mxu0 %v1148
    %1402 = vmatprep.subr.mxu0 0.0
    %1403 = vmatpush1.msra.mxu0 %v1147
    %1404 = vmatprep.subr.mxu0 0.0
    %1405 = vmatpush1.msra.mxu0 %v1146
    %1406 = vmatprep.subr.mxu0 0.0
    %1407 = vmatpush2.msra.mxu0 0.0
    %1408 = vmatprep.subr.mxu0 0.0
    %1409 = vmatpush2.msra.mxu0 0.0
    %1410 = vmatprep.subr.mxu0 0.0
    %1411 = vmatpush2.msra.mxu0 0.0
    %1412 = vmatprep.subr.mxu0 0.0
    %1413 = vmatpush2.msra.mxu0 0.0
    %1414 = vmatprep.subr.mxu0 0.0
    %1415 = vmatpush2.msra.mxu0 0.0
    %1416 = vmatprep.subr.mxu0 0.0
    %1417 = vmatpush2.msra.mxu0 0.0
    %1418 = vmatprep.subr.mxu0 0.0
    %1419 = vmatpush2.msra.mxu0 0.0
    %1420 = vmatprep.subr.mxu0 0.0
    %1421 = vmatpush2.msra.mxu0 0.0
    %1422 = vmatprep.subr.mxu0 0.0
    %1423 = vmatpush2.msra.mxu0 0.0
    %1424 = vmatprep.subr.mxu0 0.0
    %1425 = vmatpush2.msra.mxu0 0.0
    %1426 = vmatprep.subr.mxu0 0.0
    %1427 = vmatpush2.msra.mxu0 0.0
    %1428 = vmatprep.subr.mxu0 0.0
    %1429 = vmatpush2.msra.mxu0 0.0
    %1430 = vmatprep.subr.mxu0 0.0
    %1431 = vmatpush2.msra.mxu0 0.0
    %1432 = vmatprep.subr.mxu0 0.0
    %1433 = vmatpush2.msra.mxu0 0.0
    %1434 = vmatprep.subr.mxu0 0.0
    %1435 = vmatpush2.msra.mxu0 0.0
    %1436 = vmatprep.subr.mxu0 0.0
    %1437 = vmatpush2.msra.mxu0 0.0
    %1438 = vmatprep.mubr.f32.mxu0 0.0
    %1439 = vmatmul.mubr.f32.gmra.mxu0 %v1372
    %v1440 = vpop.f32.mrf.mxu0
    %v1441 = vadd.f32 0.0, %v1440
    %v1442 = vpop.f32.mrf.mxu0
    %1443 = vdwg.mxu0
    %v1444 = vadd.f32 %v1371, %v1441
    %v1445 = vxor.u32 %v1444, 2147483648
    %v1446 = vmul.f32 %v1445, 1.442695
    %v1447 = vpow.pop %v1446
    %v1448 = vadd.f32 %v1447, 1.0
    %v1449 = vrcp.pop %v1448
    %v1450 = vmul.f32 1.0, %v1449
    %v1451 = vtanh.pop %v1444
    %v1452 = vmul.f32 %v1450, %v1353
    %1454 = vrot.lane.b32.xlu0 %v1451, 64
    %v1455 = vpop.permute.xlu0 %1454
    %v1457 = vmul.f32 %v1450, %v1455
    %1459 = vrot.lane.b32.xlu0 %v1457, 32
    %v1460 = vpop.permute.xlu0 %1459
    %v1462 = vadd.f32 %v1452, %v1460
    %v1463 = vtanh.pop %v1462
    %1465 = vrot.lane.b32.xlu0 %v1463, 64
    %v1466 = vpop.permute.xlu0 %1465
    %v1468 = vmul.f32 %v1450, %v1466
    %1470 = vrot.lane.b32.xlu0 %v1468, 32
    %v1471 = vpop.permute.xlu0 %1470
    %1473 = vst.msk [vmem:[#allocation3 + $0x2] sm:$0x1] %vm283, %v1471
    %1474 = vst.msk [vmem:[#allocation3 + $0x9] sm:$0x2] %vm285, %v1471
    %v1475 = vld [vmem:[#allocation2 + $0x3] sm:$0x1]
    %v1476 = vld [vmem:[#allocation2 + $0xb] sm:$0x1]
    %v1478 = vrot.slane %v1476, 7
    %v1480 = vsel %vm178, %v1475, %v1478
    %v1481 = vsel %vm180, %v1471, 0
    %1483 = vmatprep.subr.mxu0 0.0
    %1484 = vmatpush1.msra.mxu0 0.0
    %1485 = vmatprep.subr.mxu0 0.0
    %1486 = vmatpush1.msra.mxu0 0.0
    %1487 = vmatprep.subr.mxu0 0.0
    %1488 = vmatpush1.msra.mxu0 0.0
    %1489 = vmatprep.subr.mxu0 0.0
    %1490 = vmatpush1.msra.mxu0 0.0
    %1491 = vmatprep.subr.mxu0 0.0
    %1492 = vmatpush1.msra.mxu0 0.0
    %1493 = vmatprep.subr.mxu0 0.0
    %1494 = vmatpush1.msra.mxu0 0.0
    %1495 = vmatprep.subr.mxu0 0.0
    %1496 = vmatpush1.msra.mxu0 0.0
    %1497 = vmatprep.subr.mxu0 0.0
    %1498 = vmatpush1.msra.mxu0 0.0
    %1499 = vmatprep.subr.mxu0 0.0
    %1500 = vmatpush1.msra.mxu0 0.0
    %1501 = vmatprep.subr.mxu0 0.0
    %1502 = vmatpush1.msra.mxu0 0.0
    %1503 = vmatprep.subr.mxu0 0.0
    %1504 = vmatpush1.msra.mxu0 0.0
    %1505 = vmatprep.subr.mxu0 0.0
    %1506 = vmatpush1.msra.mxu0 0.0
    %1507 = vmatprep.subr.mxu0 0.0
    %1508 = vmatpush1.msra.mxu0 %v1149
    %1509 = vmatprep.subr.mxu0 0.0
    %1510 = vmatpush1.msra.mxu0 %v1148
    %1511 = vmatprep.subr.mxu0 0.0
    %1512 = vmatpush1.msra.mxu0 %v1147
    %1513 = vmatprep.subr.mxu0 0.0
    %1514 = vmatpush1.msra.mxu0 %v1146
    %1515 = vmatprep.subr.mxu0 0.0
    %1516 = vmatpush2.msra.mxu0 0.0
    %1517 = vmatprep.subr.mxu0 0.0
    %1518 = vmatpush2.msra.mxu0 0.0
    %1519 = vmatprep.subr.mxu0 0.0
    %1520 = vmatpush2.msra.mxu0 0.0
    %1521 = vmatprep.subr.mxu0 0.0
    %1522 = vmatpush2.msra.mxu0 0.0
    %1523 = vmatprep.subr.mxu0 0.0
    %1524 = vmatpush2.msra.mxu0 0.0
    %1525 = vmatprep.subr.mxu0 0.0
    %1526 = vmatpush2.msra.mxu0 0.0
    %1527 = vmatprep.subr.mxu0 0.0
    %1528 = vmatpush2.msra.mxu0 0.0
    %1529 = vmatprep.subr.mxu0 0.0
    %1530 = vmatpush2.msra.mxu0 0.0
    %1531 = vmatprep.subr.mxu0 0.0
    %1532 = vmatpush2.msra.mxu0 0.0
    %1533 = vmatprep.subr.mxu0 0.0
    %1534 = vmatpush2.msra.mxu0 0.0
    %1535 = vmatprep.subr.mxu0 0.0
    %1536 = vmatpush2.msra.mxu0 0.0
    %1537 = vmatprep.subr.mxu0 0.0
    %1538 = vmatpush2.msra.mxu0 0.0
    %1539 = vmatprep.subr.mxu0 0.0
    %1540 = vmatpush2.msra.mxu0 0.0
    %1541 = vmatprep.subr.mxu0 0.0
    %1542 = vmatpush2.msra.mxu0 0.0
    %1543 = vmatprep.subr.mxu0 0.0
    %1544 = vmatpush2.msra.mxu0 0.0
    %1545 = vmatprep.subr.mxu0 0.0
    %1546 = vmatpush2.msra.mxu0 0.0
    %1547 = vmatprep.mubr.f32.mxu0 0.0
    %1548 = vmatmul.mubr.f32.gmra.mxu0 %v1481
    %v1549 = vpop.f32.mrf.mxu0
    %v1550 = vadd.f32 0.0, %v1549
    %v1551 = vpop.f32.mrf.mxu0
    %1552 = vdwg.mxu0
    %v1553 = vadd.f32 %v1480, %v1550
    %v1554 = vxor.u32 %v1553, 2147483648
    %v1555 = vmul.f32 %v1554, 1.442695
    %v1556 = vpow.pop %v1555
    %v1557 = vadd.f32 %v1556, 1.0
    %v1558 = vrcp.pop %v1557
    %v1559 = vmul.f32 1.0, %v1558
    %v1560 = vtanh.pop %v1553
    %v1561 = vmul.f32 %v1559, %v1462
    %1563 = vrot.lane.b32.xlu0 %v1560, 64
    %v1564 = vpop.permute.xlu0 %1563
    %v1566 = vmul.f32 %v1559, %v1564
    %1568 = vrot.lane.b32.xlu0 %v1566, 32
    %v1569 = vpop.permute.xlu0 %1568
    %v1571 = vadd.f32 %v1561, %v1569
    %v1572 = vtanh.pop %v1571
    %1574 = vrot.lane.b32.xlu0 %v1572, 64
    %v1575 = vpop.permute.xlu0 %1574
    %v1577 = vmul.f32 %v1559, %v1575
    %1579 = vrot.lane.b32.xlu0 %v1577, 32
    %v1580 = vpop.permute.xlu0 %1579
    %1582 = vst.msk [vmem:[#allocation3 + $0x3] sm:$0x1] %vm283, %v1580
    %1583 = vst.msk [vmem:[#allocation3 + $0xa] sm:$0x2] %vm285, %v1580
    %v1584 = vld [vmem:[#allocation2 + $0x4] sm:$0x1]
    %v1585 = vld [vmem:[#allocation2 + $0xc] sm:$0x1]
    %v1587 = vrot.slane %v1585, 7
    %v1589 = vsel %vm178, %v1584, %v1587
    %v1590 = vsel %vm180, %v1580, 0
    %1592 = vmatprep.subr.mxu0 0.0
    %1593 = vmatpush1.msra.mxu0 0.0
    %1594 = vmatprep.subr.mxu0 0.0
    %1595 = vmatpush1.msra.mxu0 0.0
    %1596 = vmatprep.subr.mxu0 0.0
    %1597 = vmatpush1.msra.mxu0 0.0
    %1598 = vmatprep.subr.mxu0 0.0
    %1599 = vmatpush1.msra.mxu0 0.0
    %1600 = vmatprep.subr.mxu0 0.0
    %1601 = vmatpush1.msra.mxu0 0.0
    %1602 = vmatprep.subr.mxu0 0.0
    %1603 = vmatpush1.msra.mxu0 0.0
    %1604 = vmatprep.subr.mxu0 0.0
    %1605 = vmatpush1.msra.mxu0 0.0
    %1606 = vmatprep.subr.mxu0 0.0
    %1607 = vmatpush1.msra.mxu0 0.0
    %1608 = vmatprep.subr.mxu0 0.0
    %1609 = vmatpush1.msra.mxu0 0.0
    %1610 = vmatprep.subr.mxu0 0.0
    %1611 = vmatpush1.msra.mxu0 0.0
    %1612 = vmatprep.subr.mxu0 0.0
    %1613 = vmatpush1.msra.mxu0 0.0
    %1614 = vmatprep.subr.mxu0 0.0
    %1615 = vmatpush1.msra.mxu0 0.0
    %1616 = vmatprep.subr.mxu0 0.0
    %1617 = vmatpush1.msra.mxu0 %v1149
    %1618 = vmatprep.subr.mxu0 0.0
    %1619 = vmatpush1.msra.mxu0 %v1148
    %1620 = vmatprep.subr.mxu0 0.0
    %1621 = vmatpush1.msra.mxu0 %v1147
    %1622 = vmatprep.subr.mxu0 0.0
    %1623 = vmatpush1.msra.mxu0 %v1146
    %1624 = vmatprep.subr.mxu0 0.0
    %1625 = vmatpush2.msra.mxu0 0.0
    %1626 = vmatprep.subr.mxu0 0.0
    %1627 = vmatpush2.msra.mxu0 0.0
    %1628 = vmatprep.subr.mxu0 0.0
    %1629 = vmatpush2.msra.mxu0 0.0
    %1630 = vmatprep.subr.mxu0 0.0
    %1631 = vmatpush2.msra.mxu0 0.0
    %1632 = vmatprep.subr.mxu0 0.0
    %1633 = vmatpush2.msra.mxu0 0.0
    %1634 = vmatprep.subr.mxu0 0.0
    %1635 = vmatpush2.msra.mxu0 0.0
    %1636 = vmatprep.subr.mxu0 0.0
    %1637 = vmatpush2.msra.mxu0 0.0
    %1638 = vmatprep.subr.mxu0 0.0
    %1639 = vmatpush2.msra.mxu0 0.0
    %1640 = vmatprep.subr.mxu0 0.0
    %1641 = vmatpush2.msra.mxu0 0.0
    %1642 = vmatprep.subr.mxu0 0.0
    %1643 = vmatpush2.msra.mxu0 0.0
    %1644 = vmatprep.subr.mxu0 0.0
    %1645 = vmatpush2.msra.mxu0 0.0
    %1646 = vmatprep.subr.mxu0 0.0
    %1647 = vmatpush2.msra.mxu0 0.0
    %1648 = vmatprep.subr.mxu0 0.0
    %1649 = vmatpush2.msra.mxu0 0.0
    %1650 = vmatprep.subr.mxu0 0.0
    %1651 = vmatpush2.msra.mxu0 0.0
    %1652 = vmatprep.subr.mxu0 0.0
    %1653 = vmatpush2.msra.mxu0 0.0
    %1654 = vmatprep.subr.mxu0 0.0
    %1655 = vmatpush2.msra.mxu0 0.0
    %1656 = vmatprep.mubr.f32.mxu0 0.0
    %1657 = vmatmul.mubr.f32.gmra.mxu0 %v1590
    %v1658 = vpop.f32.mrf.mxu0
    %v1659 = vadd.f32 0.0, %v1658
    %v1660 = vpop.f32.mrf.mxu0
    %1661 = vdwg.mxu0
    %v1662 = vadd.f32 %v1589, %v1659
    %v1663 = vxor.u32 %v1662, 2147483648
    %v1664 = vmul.f32 %v1663, 1.442695
    %v1665 = vpow.pop %v1664
    %v1666 = vadd.f32 %v1665, 1.0
    %v1667 = vrcp.pop %v1666
    %v1668 = vmul.f32 1.0, %v1667
    %v1669 = vtanh.pop %v1662
    %v1670 = vmul.f32 %v1668, %v1571
    %1672 = vrot.lane.b32.xlu0 %v1669, 64
    %v1673 = vpop.permute.xlu0 %1672
    %v1675 = vmul.f32 %v1668, %v1673
    %1677 = vrot.lane.b32.xlu0 %v1675, 32
    %v1678 = vpop.permute.xlu0 %1677
    %v1680 = vadd.f32 %v1670, %v1678
    %v1681 = vtanh.pop %v1680
    %1683 = vrot.lane.b32.xlu0 %v1681, 64
    %v1684 = vpop.permute.xlu0 %1683
    %v1686 = vmul.f32 %v1668, %v1684
    %1688 = vrot.lane.b32.xlu0 %v1686, 32
    %v1689 = vpop.permute.xlu0 %1688
    %1691 = vst.msk [vmem:[#allocation3 + $0x4] sm:$0x1] %vm283, %v1689
    %1692 = vst.msk [vmem:[#allocation3 + $0xb] sm:$0x2] %vm285, %v1689
    %v1693 = vld [vmem:[#allocation2 + $0x5] sm:$0x1]
    %v1694 = vld [vmem:[#allocation2 + $0xd] sm:$0x1]
    %v1696 = vrot.slane %v1694, 7
    %v1698 = vsel %vm178, %v1693, %v1696
    %v1699 = vsel %vm180, %v1689, 0
    %1701 = vmatprep.subr.mxu0 0.0
    %1702 = vmatpush1.msra.mxu0 0.0
    %1703 = vmatprep.subr.mxu0 0.0
    %1704 = vmatpush1.msra.mxu0 0.0
    %1705 = vmatprep.subr.mxu0 0.0
    %1706 = vmatpush1.msra.mxu0 0.0
    %1707 = vmatprep.subr.mxu0 0.0
    %1708 = vmatpush1.msra.mxu0 0.0
    %1709 = vmatprep.subr.mxu0 0.0
    %1710 = vmatpush1.msra.mxu0 0.0
    %1711 = vmatprep.subr.mxu0 0.0
    %1712 = vmatpush1.msra.mxu0 0.0
    %1713 = vmatprep.subr.mxu0 0.0
    %1714 = vmatpush1.msra.mxu0 0.0
    %1715 = vmatprep.subr.mxu0 0.0
    %1716 = vmatpush1.msra.mxu0 0.0
    %1717 = vmatprep.subr.mxu0 0.0
    %1718 = vmatpush1.msra.mxu0 0.0
    %1719 = vmatprep.subr.mxu0 0.0
    %1720 = vmatpush1.msra.mxu0 0.0
    %1721 = vmatprep.subr.mxu0 0.0
    %1722 = vmatpush1.msra.mxu0 0.0
    %1723 = vmatprep.subr.mxu0 0.0
    %1724 = vmatpush1.msra.mxu0 0.0
    %1725 = vmatprep.subr.mxu0 0.0
    %1726 = vmatpush1.msra.mxu0 %v1149
    %1727 = vmatprep.subr.mxu0 0.0
    %1728 = vmatpush1.msra.mxu0 %v1148
    %1729 = vmatprep.subr.mxu0 0.0
    %1730 = vmatpush1.msra.mxu0 %v1147
    %1731 = vmatprep.subr.mxu0 0.0
    %1732 = vmatpush1.msra.mxu0 %v1146
    %1733 = vmatprep.subr.mxu0 0.0
    %1734 = vmatpush2.msra.mxu0 0.0
    %1735 = vmatprep.subr.mxu0 0.0
    %1736 = vmatpush2.msra.mxu0 0.0
    %1737 = vmatprep.subr.mxu0 0.0
    %1738 = vmatpush2.msra.mxu0 0.0
    %1739 = vmatprep.subr.mxu0 0.0
    %1740 = vmatpush2.msra.mxu0 0.0
    %1741 = vmatprep.subr.mxu0 0.0
    %1742 = vmatpush2.msra.mxu0 0.0
    %1743 = vmatprep.subr.mxu0 0.0
    %1744 = vmatpush2.msra.mxu0 0.0
    %1745 = vmatprep.subr.mxu0 0.0
    %1746 = vmatpush2.msra.mxu0 0.0
    %1747 = vmatprep.subr.mxu0 0.0
    %1748 = vmatpush2.msra.mxu0 0.0
    %1749 = vmatprep.subr.mxu0 0.0
    %1750 = vmatpush2.msra.mxu0 0.0
    %1751 = vmatprep.subr.mxu0 0.0
    %1752 = vmatpush2.msra.mxu0 0.0
    %1753 = vmatprep.subr.mxu0 0.0
    %1754 = vmatpush2.msra.mxu0 0.0
    %1755 = vmatprep.subr.mxu0 0.0
    %1756 = vmatpush2.msra.mxu0 0.0
    %1757 = vmatprep.subr.mxu0 0.0
    %1758 = vmatpush2.msra.mxu0 0.0
    %1759 = vmatprep.subr.mxu0 0.0
    %1760 = vmatpush2.msra.mxu0 0.0
    %1761 = vmatprep.subr.mxu0 0.0
    %1762 = vmatpush2.msra.mxu0 0.0
    %1763 = vmatprep.subr.mxu0 0.0
    %1764 = vmatpush2.msra.mxu0 0.0
    %1765 = vmatprep.mubr.f32.mxu0 0.0
    %1766 = vmatmul.mubr.f32.gmra.mxu0 %v1699
    %v1767 = vpop.f32.mrf.mxu0
    %v1768 = vadd.f32 0.0, %v1767
    %v1769 = vpop.f32.mrf.mxu0
    %1770 = vdwg.mxu0
    %v1771 = vadd.f32 %v1698, %v1768
    %v1772 = vxor.u32 %v1771, 2147483648
    %v1773 = vmul.f32 %v1772, 1.442695
    %v1774 = vpow.pop %v1773
    %v1775 = vadd.f32 %v1774, 1.0
    %v1776 = vrcp.pop %v1775
    %v1777 = vmul.f32 1.0, %v1776
    %v1778 = vtanh.pop %v1771
    %v1779 = vmul.f32 %v1777, %v1680
    %1781 = vrot.lane.b32.xlu0 %v1778, 64
    %v1782 = vpop.permute.xlu0 %1781
    %v1784 = vmul.f32 %v1777, %v1782
    %1786 = vrot.lane.b32.xlu0 %v1784, 32
    %v1787 = vpop.permute.xlu0 %1786
    %v1789 = vadd.f32 %v1779, %v1787
    %v1790 = vtanh.pop %v1789
    %1792 = vrot.lane.b32.xlu0 %v1790, 64
    %v1793 = vpop.permute.xlu0 %1792
    %v1795 = vmul.f32 %v1777, %v1793
    %1797 = vrot.lane.b32.xlu0 %v1795, 32
    %v1798 = vpop.permute.xlu0 %1797
    %1800 = vst.msk [vmem:[#allocation3 + $0x5] sm:$0x1] %vm283, %v1798
    %1801 = vst.msk [vmem:[#allocation3 + $0xc] sm:$0x2] %vm285, %v1798
    %v1802 = vld [vmem:[#allocation2 + $0x6] sm:$0x1]
    %v1803 = vld [vmem:[#allocation2 + $0xe] sm:$0x1]
    %v1805 = vrot.slane %v1803, 7
    %v1807 = vsel %vm178, %v1802, %v1805
    %v1808 = vsel %vm180, %v1798, 0
    %1810 = vmatprep.subr.mxu0 0.0
    %1811 = vmatpush1.msra.mxu0 0.0
    %1812 = vmatprep.subr.mxu0 0.0
    %1813 = vmatpush1.msra.mxu0 0.0
    %1814 = vmatprep.subr.mxu0 0.0
    %1815 = vmatpush1.msra.mxu0 0.0
    %1816 = vmatprep.subr.mxu0 0.0
    %1817 = vmatpush1.msra.mxu0 0.0
    %1818 = vmatprep.subr.mxu0 0.0
    %1819 = vmatpush1.msra.mxu0 0.0
    %1820 = vmatprep.subr.mxu0 0.0
    %1821 = vmatpush1.msra.mxu0 0.0
    %1822 = vmatprep.subr.mxu0 0.0
    %1823 = vmatpush1.msra.mxu0 0.0
    %1824 = vmatprep.subr.mxu0 0.0
    %1825 = vmatpush1.msra.mxu0 0.0
    %1826 = vmatprep.subr.mxu0 0.0
    %1827 = vmatpush1.msra.mxu0 0.0
    %1828 = vmatprep.subr.mxu0 0.0
    %1829 = vmatpush1.msra.mxu0 0.0
    %1830 = vmatprep.subr.mxu0 0.0
    %1831 = vmatpush1.msra.mxu0 0.0
    %1832 = vmatprep.subr.mxu0 0.0
    %1833 = vmatpush1.msra.mxu0 0.0
    %1834 = vmatprep.subr.mxu0 0.0
    %1835 = vmatpush1.msra.mxu0 %v1149
    %1836 = vmatprep.subr.mxu0 0.0
    %1837 = vmatpush1.msra.mxu0 %v1148
    %1838 = vmatprep.subr.mxu0 0.0
    %1839 = vmatpush1.msra.mxu0 %v1147
    %1840 = vmatprep.subr.mxu0 0.0
    %1841 = vmatpush1.msra.mxu0 %v1146
    %1842 = vmatprep.subr.mxu0 0.0
    %1843 = vmatpush2.msra.mxu0 0.0
    %1844 = vmatprep.subr.mxu0 0.0
    %1845 = vmatpush2.msra.mxu0 0.0
    %1846 = vmatprep.subr.mxu0 0.0
    %1847 = vmatpush2.msra.mxu0 0.0
    %1848 = vmatprep.subr.mxu0 0.0
    %1849 = vmatpush2.msra.mxu0 0.0
    %1850 = vmatprep.subr.mxu0 0.0
    %1851 = vmatpush2.msra.mxu0 0.0
    %1852 = vmatprep.subr.mxu0 0.0
    %1853 = vmatpush2.msra.mxu0 0.0
    %1854 = vmatprep.subr.mxu0 0.0
    %1855 = vmatpush2.msra.mxu0 0.0
    %1856 = vmatprep.subr.mxu0 0.0
    %1857 = vmatpush2.msra.mxu0 0.0
    %1858 = vmatprep.subr.mxu0 0.0
    %1859 = vmatpush2.msra.mxu0 0.0
    %1860 = vmatprep.subr.mxu0 0.0
    %1861 = vmatpush2.msra.mxu0 0.0
    %1862 = vmatprep.subr.mxu0 0.0
    %1863 = vmatpush2.msra.mxu0 0.0
    %1864 = vmatprep.subr.mxu0 0.0
    %1865 = vmatpush2.msra.mxu0 0.0
    %1866 = vmatprep.subr.mxu0 0.0
    %1867 = vmatpush2.msra.mxu0 0.0
    %1868 = vmatprep.subr.mxu0 0.0
    %1869 = vmatpush2.msra.mxu0 0.0
    %1870 = vmatprep.subr.mxu0 0.0
    %1871 = vmatpush2.msra.mxu0 0.0
    %1872 = vmatprep.subr.mxu0 0.0
    %1873 = vmatpush2.msra.mxu0 0.0
    %1874 = vmatprep.mubr.f32.mxu0 0.0
    %1875 = vmatmul.mubr.f32.gmra.mxu0 %v1808
    %v1876 = vpop.f32.mrf.mxu0
    %v1877 = vadd.f32 0.0, %v1876
    %v1878 = vpop.f32.mrf.mxu0
    %1879 = vdwg.mxu0
    %v1880 = vadd.f32 %v1807, %v1877
    %v1881 = vxor.u32 %v1880, 2147483648
    %v1882 = vmul.f32 %v1881, 1.442695
    %v1883 = vpow.pop %v1882
    %v1884 = vadd.f32 %v1883, 1.0
    %v1885 = vrcp.pop %v1884
    %v1886 = vmul.f32 1.0, %v1885
    %v1887 = vtanh.pop %v1880
    %v1888 = vmul.f32 %v1886, %v1789
    %1890 = vrot.lane.b32.xlu0 %v1887, 64
    %v1891 = vpop.permute.xlu0 %1890
    %v1893 = vmul.f32 %v1886, %v1891
    %1895 = vrot.lane.b32.xlu0 %v1893, 32
    %v1896 = vpop.permute.xlu0 %1895
    %v1898 = vadd.f32 %v1888, %v1896
    %v1899 = vtanh.pop %v1898
    %1901 = vrot.lane.b32.xlu0 %v1899, 64
    %v1902 = vpop.permute.xlu0 %1901
    %v1904 = vmul.f32 %v1886, %v1902
    %1906 = vrot.lane.b32.xlu0 %v1904, 32
    %v1907 = vpop.permute.xlu0 %1906
    %1909 = vst.msk [vmem:[#allocation3 + $0x6] sm:$0x1] %vm283, %v1907
    %1910 = vst.msk [vmem:[#allocation3 + $0xd] sm:$0x2] %vm285, %v1907
    %v1911 = vld [vmem:[#allocation2 + $0x7] sm:$0x1]
    %v1912 = vld [vmem:[#allocation2 + $0xf] sm:$0x1]
    %v1914 = vrot.slane %v1912, 7
    %v1916 = vsel %vm178, %v1911, %v1914
    %v1917 = vsel %vm180, %v1907, 0
    %1919 = vmatprep.subr.mxu0 0.0
    %1920 = vmatpush1.msra.mxu0 0.0
    %1921 = vmatprep.subr.mxu0 0.0
    %1922 = vmatpush1.msra.mxu0 0.0
    %1923 = vmatprep.subr.mxu0 0.0
    %1924 = vmatpush1.msra.mxu0 0.0
    %1925 = vmatprep.subr.mxu0 0.0
    %1926 = vmatpush1.msra.mxu0 0.0
    %1927 = vmatprep.subr.mxu0 0.0
    %1928 = vmatpush1.msra.mxu0 0.0
    %1929 = vmatprep.subr.mxu0 0.0
    %1930 = vmatpush1.msra.mxu0 0.0
    %1931 = vmatprep.subr.mxu0 0.0
    %1932 = vmatpush1.msra.mxu0 0.0
    %1933 = vmatprep.subr.mxu0 0.0
    %1934 = vmatpush1.msra.mxu0 0.0
    %1935 = vmatprep.subr.mxu0 0.0
    %1936 = vmatpush1.msra.mxu0 0.0
    %1937 = vmatprep.subr.mxu0 0.0
    %1938 = vmatpush1.msra.mxu0 0.0
    %1939 = vmatprep.subr.mxu0 0.0
    %1940 = vmatpush1.msra.mxu0 0.0
    %1941 = vmatprep.subr.mxu0 0.0
    %1942 = vmatpush1.msra.mxu0 0.0
    %1943 = vmatprep.subr.mxu0 0.0
    %1944 = vmatpush1.msra.mxu0 %v1149
    %1945 = vmatprep.subr.mxu0 0.0
    %1946 = vmatpush1.msra.mxu0 %v1148
    %1947 = vmatprep.subr.mxu0 0.0
    %1948 = vmatpush1.msra.mxu0 %v1147
    %1949 = vmatprep.subr.mxu0 0.0
    %1950 = vmatpush1.msra.mxu0 %v1146
    %1951 = vmatprep.subr.mxu0 0.0
    %1952 = vmatpush2.msra.mxu0 0.0
    %1953 = vmatprep.subr.mxu0 0.0
    %1954 = vmatpush2.msra.mxu0 0.0
    %1955 = vmatprep.subr.mxu0 0.0
    %1956 = vmatpush2.msra.mxu0 0.0
    %1957 = vmatprep.subr.mxu0 0.0
    %1958 = vmatpush2.msra.mxu0 0.0
    %1959 = vmatprep.subr.mxu0 0.0
    %1960 = vmatpush2.msra.mxu0 0.0
    %1961 = vmatprep.subr.mxu0 0.0
    %1962 = vmatpush2.msra.mxu0 0.0
    %1963 = vmatprep.subr.mxu0 0.0
    %1964 = vmatpush2.msra.mxu0 0.0
    %1965 = vmatprep.subr.mxu0 0.0
    %1966 = vmatpush2.msra.mxu0 0.0
    %1967 = vmatprep.subr.mxu0 0.0
    %1968 = vmatpush2.msra.mxu0 0.0
    %1969 = vmatprep.subr.mxu0 0.0
    %1970 = vmatpush2.msra.mxu0 0.0
    %1971 = vmatprep.subr.mxu0 0.0
    %1972 = vmatpush2.msra.mxu0 0.0
    %1973 = vmatprep.subr.mxu0 0.0
    %1974 = vmatpush2.msra.mxu0 0.0
    %1975 = vmatprep.subr.mxu0 0.0
    %1976 = vmatpush2.msra.mxu0 0.0
    %1977 = vmatprep.subr.mxu0 0.0
    %1978 = vmatpush2.msra.mxu0 0.0
    %1979 = vmatprep.subr.mxu0 0.0
    %1980 = vmatpush2.msra.mxu0 0.0
    %1981 = vmatprep.subr.mxu0 0.0
    %1982 = vmatpush2.msra.mxu0 0.0
    %1983 = vmatprep.mubr.f32.mxu0 0.0
    %1984 = vmatmul.mubr.f32.gmra.mxu0 %v1917
    %v1985 = vpop.f32.mrf.mxu0
    %v1986 = vadd.f32 0.0, %v1985
    %v1987 = vpop.f32.mrf.mxu0
    %1988 = vdwg.mxu0
    %v1989 = vadd.f32 %v1916, %v1986
    %v1990 = vxor.u32 %v1989, 2147483648
    %v1991 = vmul.f32 %v1990, 1.442695
    %v1992 = vpow.pop %v1991
    %v1993 = vadd.f32 %v1992, 1.0
    %v1994 = vrcp.pop %v1993
    %v1995 = vmul.f32 1.0, %v1994
    %v1996 = vtanh.pop %v1989
    %v1997 = vmul.f32 %v1995, %v1898
    %1999 = vrot.lane.b32.xlu0 %v1996, 64
    %v2000 = vpop.permute.xlu0 %1999
    %v2002 = vmul.f32 %v1995, %v2000
    %2004 = vrot.lane.b32.xlu0 %v2002, 32
    %v2005 = vpop.permute.xlu0 %2004
    %v2007 = vadd.f32 %v1997, %v2005
    %v2008 = vtanh.pop %v2007
    %2010 = vrot.lane.b32.xlu0 %v2008, 64
    %v2011 = vpop.permute.xlu0 %2010
    %v2013 = vmul.f32 %v1995, %v2011
    %2015 = vrot.lane.b32.xlu0 %v2013, 32
    %v2016 = vpop.permute.xlu0 %2015
    %2018 = vst.msk [vmem:[#allocation3 + $0x7] sm:$0x1] %vm283, %v2016
    %2019 = vst.msk [vmem:[#allocation3 + $0xe] sm:$0x2] %vm285, %v2016
    %v2020 = vld [vmem:[#allocation3] sm:$0xff]
    %v2021 = vld [vmem:[#allocation3 + $0x8] sm:$0xff]
    %v2022 = vld [vmem:[%s7] sm:$0xff]
    %v2023 = vld [vmem:[%s7 + $0x8] sm:$0xff]
    %v2024 = vld [vmem:[%s7 + $0x10] sm:$0xff]
    %v2025 = vld [vmem:[%s7 + $0x18] sm:$0xff]
    %v2026 = vld [vmem:[%s8] sm:$0x1]
    %v2028 = vlaneseq
    %v2029 = vshrl.u32 %v2028, 7
    %v2030 = vsub.s32 0, %v2029
    %v2031 = vrot.slane %v2026, %v2030
    %v2034 = vsel %vm180, %v2020, 0
    %v2037 = vsel %vm180, %v2021, 0
    %2039 = vmatprep.subr.mxu0 0.0
    %2040 = vmatpush1.msra.mxu0 0.0
    %2041 = vmatprep.subr.mxu0 0.0
    %2042 = vmatpush1.msra.mxu0 0.0
    %2043 = vmatprep.subr.mxu0 0.0
    %2044 = vmatpush1.msra.mxu0 0.0
    %2045 = vmatprep.subr.mxu0 0.0
    %2046 = vmatpush1.msra.mxu0 0.0
    %2047 = vmatprep.subr.mxu0 0.0
    %2048 = vmatpush1.msra.mxu0 0.0
    %2049 = vmatprep.subr.mxu0 0.0
    %2050 = vmatpush1.msra.mxu0 0.0
    %2051 = vmatprep.subr.mxu0 0.0
    %2052 = vmatpush1.msra.mxu0 0.0
    %2053 = vmatprep.subr.mxu0 0.0
    %2054 = vmatpush1.msra.mxu0 0.0
    %2055 = vmatprep.subr.mxu0 0.0
    %2056 = vmatpush1.msra.mxu0 0.0
    %2057 = vmatprep.subr.mxu0 0.0
    %2058 = vmatpush1.msra.mxu0 0.0
    %2059 = vmatprep.subr.mxu0 0.0
    %2060 = vmatpush1.msra.mxu0 0.0
    %2061 = vmatprep.subr.mxu0 0.0
    %2062 = vmatpush1.msra.mxu0 0.0
    %2063 = vmatprep.subr.mxu0 0.0
    %2064 = vmatpush1.msra.mxu0 %v2025
    %2065 = vmatprep.subr.mxu0 0.0
    %2066 = vmatpush1.msra.mxu0 %v2024
    %2067 = vmatprep.subr.mxu0 0.0
    %2068 = vmatpush1.msra.mxu0 %v2023
    %2069 = vmatprep.subr.mxu0 0.0
    %2070 = vmatpush1.msra.mxu0 %v2022
    %2071 = vmatprep.subr.mxu0 0.0
    %2072 = vmatpush2.msra.mxu0 0.0
    %2073 = vmatprep.subr.mxu0 0.0
    %2074 = vmatpush2.msra.mxu0 0.0
    %2075 = vmatprep.subr.mxu0 0.0
    %2076 = vmatpush2.msra.mxu0 0.0
    %2077 = vmatprep.subr.mxu0 0.0
    %2078 = vmatpush2.msra.mxu0 0.0
    %2079 = vmatprep.subr.mxu0 0.0
    %2080 = vmatpush2.msra.mxu0 0.0
    %2081 = vmatprep.subr.mxu0 0.0
    %2082 = vmatpush2.msra.mxu0 0.0
    %2083 = vmatprep.subr.mxu0 0.0
    %2084 = vmatpush2.msra.mxu0 0.0
    %2085 = vmatprep.subr.mxu0 0.0
    %2086 = vmatpush2.msra.mxu0 0.0
    %2087 = vmatprep.subr.mxu0 0.0
    %2088 = vmatpush2.msra.mxu0 0.0
    %2089 = vmatprep.subr.mxu0 0.0
    %2090 = vmatpush2.msra.mxu0 0.0
    %2091 = vmatprep.subr.mxu0 0.0
    %2092 = vmatpush2.msra.mxu0 0.0
    %2093 = vmatprep.subr.mxu0 0.0
    %2094 = vmatpush2.msra.mxu0 0.0
    %2095 = vmatprep.subr.mxu0 0.0
    %2096 = vmatpush2.msra.mxu0 0.0
    %2097 = vmatprep.subr.mxu0 0.0
    %2098 = vmatpush2.msra.mxu0 0.0
    %2099 = vmatprep.subr.mxu0 0.0
    %2100 = vmatpush2.msra.mxu0 0.0
    %2101 = vmatprep.subr.mxu0 0.0
    %2102 = vmatpush2.msra.mxu0 0.0
    %2103 = vmatprep.mubr.f32.mxu0 0.0
    %2104 = vmatmul.mubr.f32.gmra.mxu0 %v2034
    %v2105 = vpop.f32.mrf.mxu0
    %v2106 = vadd.f32 %v2031, %v2105
    %v2107 = vpop.f32.mrf.mxu0
    %2108 = vmatprep.mubr.f32.mxu0 0.0
    %2109 = vmatmul.mubr.f32.gmra.mxu0 %v2037
    %v2110 = vpop.f32.mrf.mxu0
    %v2111 = vadd.f32 %v2031, %v2110
    %v2112 = vpop.f32.mrf.mxu0
    %2113 = vdwg.mxu0
    %2114 = vst.msk [vmem:[#allocation10] sm:$0xff] %vm85, %v2106
    %2115 = vst.msk [vmem:[#allocation10 + $0x8] sm:$0xff] %vm85, %v2111
    // Predicated region
    $region50: #{lstm_forward.1} parent=1 // pred_check
      _
    $region51: #{lstm_forward.1} parent=1 // pred_check_branch
      %2117 = sbr.rel (0) target = $region53
    $region52: #{lstm_forward.1} parent=1 // pred_region
      %s2119 = ssub.s32 256, 256
      %2120 = vsyncadd [#allocation6], %s2119
      %s2121 = sshll.u32 [#allocation10], 4
      %s2122 = int_to_ptr.vmem [resolvable:$true] %s2121
      %2127 = dma.vmem_to_hbm [thread:$0]  %s2122, 256, %s9, [#allocation6], 128, 128, 8
    $region53: #{lstm_forward.1} parent=1 // pred_fallthru
      _
    // Predicated region
    $region54: #{lstm_forward.1} parent=1 // pred_check
      _
    $region55: #{lstm_forward.1} parent=1 // pred_check_branch
      %2129 = sbr.rel (0) target = $region57
    $region56: #{lstm_forward.1} parent=1 // pred_region
      %2130 = dma.done [#allocation6], 256
    $region57: #{lstm_forward.1} parent=1 // pred_fallthru
      _
    %2131 = vsyncpa [#allocation5], 1
    %2132 = vsyncpa [#allocation8], 1
    %2133 = vsyncpa [#allocation6], 1

</llo_original>
